<compile_context>
chip_gen: v6e
topology: v6e:2x2x1
jax: 0.10.0
libtpu: 0.0.40
codegen_flags: <defaults>
</compile_context>

<pallas_src>
import jax
import jax.numpy as jnp
from jax.experimental import pallas as pl
from jax.experimental.pallas import tpu as pltpu

# ----- ESM2 hyper-parameters (small synthetic config, same structure as the module) -----
NUM_LAYERS = 2
EMBED_DIM = 32
NUM_HEADS = 4
HEAD_DIM = EMBED_DIM // NUM_HEADS
FFN_DIM = 4 * EMBED_DIM
ALPHABET_SIZE = 33          # ESM-1b alphabet size
LOGITS_PAD = 128            # lane-dense logits (padded, sliced back to 33 outside)
PADDING_IDX = 1
MASK_IDX = 32
CLS_IDX = 0
EOS_IDX = 2
TOKEN_DROPOUT = True
LN_EPS = 1e-5               # torch.nn.LayerNorm default (ESM1bLayerNorm fallback)
NEG_BIG = -1e30             # finite mask sentinel (NaN-safe, unlike -inf)


# --------------------------------------------------------------------------------------
# in-kernel math helpers
# --------------------------------------------------------------------------------------
def _erf(x):
    # Abramowitz & Stegun 7.1.26 polynomial erf (max abs err ~1.5e-7);
    # reproduces ESM's exact (erf-based) gelu to float32 tolerance.
    a1, a2, a3, a4, a5 = 0.254829592, -0.284496736, 1.421413741, -1.453152027, 1.061405429
    p = 0.3275911
    ax = jnp.abs(x)
    t = 1.0 / (1.0 + p * ax)
    poly = ((((a5 * t + a4) * t + a3) * t + a2) * t + a1) * t
    y = 1.0 - poly * jnp.exp(-ax * ax)
    return jnp.where(x < 0.0, -y, y)


def _gelu(x):
    # ESM gelu: x * 0.5 * (1 + erf(x / sqrt(2)))
    return x * 0.5 * (1.0 + _erf(x * 0.7071067811865476))


def _layer_norm(x, w, b):
    mu = jnp.mean(x, axis=-1, keepdims=True)
    var = jnp.mean(jnp.square(x - mu), axis=-1, keepdims=True)
    return (x - mu) * jax.lax.rsqrt(var + LN_EPS) * w + b


# --------------------------------------------------------------------------------------
# Fused kernel: all transformer layers + final LN + RobertaLMHead, one batch elem / step
# --------------------------------------------------------------------------------------
def _esm2_fused_kernel(x_ref, bias_ref, cos_ref, sin_ref, rot_ref,
                       ln1w_ref, ln1b_ref,
                       qw_ref, qb_ref, kw_ref, kb_ref, vw_ref, vb_ref,
                       ow_ref, ob_ref, ln2w_ref, ln2b_ref,
                       f1w_ref, f1b_ref, f2w_ref, f2b_ref,
                       lnaw_ref, lnab_ref, dw_ref, db_ref,
                       lnhw_ref, lnhb_ref, ew_ref, eb_ref,
                       o_ref):
    x = x_ref[0]                         # (T, E) activations for this batch element
    bias = bias_ref[0]                   # (1, T) additive key-padding bias (0 / -1e30)
    cos = cos_ref[...]                   # (T, E)  per-head rotary cos, tiled head-major
    sin = sin_ref[...]                   # (T, E)
    rot = rot_ref[...]                   # (E, E)  block-diag signed rotate_half permutation
    scaling = HEAD_DIM ** -0.5

    for li in range(NUM_LAYERS):
        # ---- self attention (pre layer norm) ----
        h = _layer_norm(x, ln1w_ref[li], ln1b_ref[li])
        q = (jnp.dot(h, qw_ref[li], preferred_element_type=jnp.float32) + qb_ref[li]) * scaling
        k = jnp.dot(h, kw_ref[li], preferred_element_type=jnp.float32) + kb_ref[li]
        v = jnp.dot(h, vw_ref[li], preferred_element_type=jnp.float32) + vb_ref[li]
        # rotary (ESM half-rotation), applied on the packed (T, E) layout:
        # x*cos + rotate_half(x)*sin, with rotate_half as one block-diag permutation matmul.
        q = q * cos + jnp.dot(q, rot, preferred_element_type=jnp.float32) * sin
        k = k * cos + jnp.dot(k, rot, preferred_element_type=jnp.float32) * sin

        # per-head scores / softmax / context (T is tiny; everything else is whole-E)
        ctx_heads = []
        for hh in range(NUM_HEADS):
            s0, s1 = hh * HEAD_DIM, (hh + 1) * HEAD_DIM
            qh, kh, vh = q[:, s0:s1], k[:, s0:s1], v[:, s0:s1]
            scores = jax.lax.dot_general(qh, kh, (((1,), (1,)), ((), ())),
                                         preferred_element_type=jnp.float32) + bias
            m = jnp.max(scores, axis=-1, keepdims=True)
            p = jnp.exp(scores - m)
            p = p / jnp.sum(p, axis=-1, keepdims=True)
            ctx_heads.append(jnp.dot(p, vh, preferred_element_type=jnp.float32))
        ctx = jnp.concatenate(ctx_heads, axis=-1)                       # (T, E), head-major
        attn_out = jnp.dot(ctx, ow_ref[li], preferred_element_type=jnp.float32) + ob_ref[li]
        x = x + attn_out

        # ---- feed-forward (pre layer norm) ----
        h2 = _layer_norm(x, ln2w_ref[li], ln2b_ref[li])
        f = _gelu(jnp.dot(h2, f1w_ref[li], preferred_element_type=jnp.float32) + f1b_ref[li])
        x = x + jnp.dot(f, f2w_ref[li], preferred_element_type=jnp.float32) + f2b_ref[li]

    # ---- emb_layer_norm_after + RobertaLMHead (lane-dense padded logits) ----
    h = _layer_norm(x, lnaw_ref[...], lnab_ref[...])
    h = jnp.dot(h, dw_ref[...], preferred_element_type=jnp.float32) + db_ref[...]
    h = _gelu(h)
    h = _layer_norm(h, lnhw_ref[...], lnhb_ref[...])
    o_ref[0] = jnp.dot(h, ew_ref[...], preferred_element_type=jnp.float32) + eb_ref[...]


def _full_spec(shape):
    zeros = (0,) * len(shape)
    return pl.BlockSpec(shape, lambda b, _z=zeros: _z)


def esm2_fused_pallas(x, bias, cos, sin, rot, params):
    B, T, E = x.shape
    VP = params['lm_out_w_pad'].shape[1]
    args = (x, bias, cos, sin, rot,
            params['ln1_w'], params['ln1_b'],
            params['q_w'], params['q_b'], params['k_w'], params['k_b'],
            params['v_w'], params['v_b'], params['o_w'], params['o_b'],
            params['ln2_w'], params['ln2_b'],
            params['f1_w'], params['f1_b'], params['f2_w'], params['f2_b'],
            params['ln_after_w'], params['ln_after_b'],
            params['lm_dense_w'], params['lm_dense_b'],
            params['lm_ln_w'], params['lm_ln_b'],
            params['lm_out_w_pad'], params['lm_out_b_pad'])
    in_specs = [pl.BlockSpec((1, T, E), lambda b: (b, 0, 0)),   # x : per-batch tile
                pl.BlockSpec((1, 1, T), lambda b: (b, 0, 0))    # additive key-padding bias
                ] + [_full_spec(a.shape) for a in args[2:]]
    return pl.pallas_call(
        _esm2_fused_kernel,
        out_shape=jax.ShapeDtypeStruct((B, T, VP), jnp.float32),
        grid=(B,),
        in_specs=in_specs,
        out_specs=pl.BlockSpec((1, T, VP), lambda b: (b, 0, 0)),
        compiler_params=pltpu.CompilerParams(dimension_semantics=("parallel",)),
    )(*args)


# --------------------------------------------------------------------------------------
# Parameter construction (deterministic, synthetic) — weights pre-transposed / stacked
# --------------------------------------------------------------------------------------
def init_params(key):
    E, H, HD, F, V = EMBED_DIM, NUM_HEADS, HEAD_DIM, FFN_DIM, ALPHABET_SIZE
    keys = jax.random.split(key, 2 + NUM_LAYERS)

    def nrm(k, shape, scale):
        return (scale * jax.random.normal(k, shape)).astype(jnp.float32)

    emb = nrm(keys[0], (V, E), 1.0)
    emb = emb.at[PADDING_IDX].set(0.0)           # nn.Embedding zeroes the padding row

    names = ('ln1_w', 'ln1_b', 'q_w', 'q_b', 'k_w', 'k_b', 'v_w', 'v_b',
             'o_w', 'o_b', 'ln2_w', 'ln2_b', 'f1_w', 'f1_b', 'f2_w', 'f2_b')
    per_layer = {n: [] for n in names}
    for li in range(NUM_LAYERS):
        lk = jax.random.split(keys[1 + li], 12)
        qw, qb = nrm(lk[0], (E, E), 0.08), nrm(lk[1], (E,), 0.02)
        kw_, kb_ = nrm(lk[2], (E, E), 0.08), nrm(lk[3], (E,), 0.02)
        vw, vb = nrm(lk[4], (E, E), 0.08), nrm(lk[5], (E,), 0.02)
        ow, ob = nrm(lk[6], (E, E), 0.08), nrm(lk[7], (E,), 0.02)
        f1w, f1b = nrm(lk[8], (F, E), 0.08), nrm(lk[9], (F,), 0.02)
        f2w, f2b = nrm(lk[10], (E, F), 0.08), nrm(lk[11], (E,), 0.02)
        # nn.Linear computes x @ W.T + b; kernels take pre-transposed packed weights.
        # Columns of W.T are head-major (h, d) packed, matching ESM's view(T, H, HD).
        per_layer['q_w'].append(qw.T);  per_layer['q_b'].append(qb.reshape(1, E))
        per_layer['k_w'].append(kw_.T); per_layer['k_b'].append(kb_.reshape(1, E))
        per_layer['v_w'].append(vw.T);  per_layer['v_b'].append(vb.reshape(1, E))
        per_layer['o_w'].append(ow.T);  per_layer['o_b'].append(ob.reshape(1, E))
        per_layer['ln1_w'].append(jnp.ones((1, E), jnp.float32))
        per_layer['ln1_b'].append(jnp.zeros((1, E), jnp.float32))
        per_layer['ln2_w'].append(jnp.ones((1, E), jnp.float32))
        per_layer['ln2_b'].append(jnp.zeros((1, E), jnp.float32))
        per_layer['f1_w'].append(f1w.T); per_layer['f1_b'].append(f1b.reshape(1, F))
        per_layer['f2_w'].append(f2w.T); per_layer['f2_b'].append(f2b.reshape(1, E))

    params = {k: jnp.stack(v, axis=0) for k, v in per_layer.items()}   # leading layer axis

    hk = jax.random.split(keys[-1], 2)
    dense_w = nrm(hk[0], (E, E), 0.08)
    dense_b = nrm(hk[1], (E,), 0.02)

    # Tied embedding output projection, padded to a lane-dense 128-wide output.
    lm_out_w_pad = jnp.zeros((E, LOGITS_PAD), jnp.float32).at[:, :V].set(emb.T)
    lm_out_b_pad = jnp.zeros((1, LOGITS_PAD), jnp.float32)

    params.update({
        'embed_tokens': emb,
        'ln_after_w': jnp.ones((1, E), jnp.float32),
        'ln_after_b': jnp.zeros((1, E), jnp.float32),
        'lm_dense_w': dense_w.T,
        'lm_dense_b': dense_b.reshape(1, E),
        'lm_ln_w': jnp.ones((1, E), jnp.float32),
        'lm_ln_b': jnp.zeros((1, E), jnp.float32),
        'lm_out_w_pad': lm_out_w_pad,
        'lm_out_b_pad': lm_out_b_pad,
    })
    return params


def make_rotary_tables(seq_len, head_dim):
    """cos/sin tiled to the packed (T, E) head-major layout + block-diag rotate_half matrix."""
    inv_freq = 1.0 / (10000.0 ** (jnp.arange(0, head_dim, 2, dtype=jnp.float32) / head_dim))
    t = jnp.arange(seq_len, dtype=jnp.float32)
    freqs = t[:, None] * inv_freq[None, :]
    emb_r = jnp.concatenate([freqs, freqs], axis=-1)          # (T, HD)
    cos, sin = jnp.cos(emb_r), jnp.sin(emb_r)
    cos_full = jnp.tile(cos, (1, NUM_HEADS))                  # (T, E)
    sin_full = jnp.tile(sin, (1, NUM_HEADS))
    half = head_dim // 2
    idx = jnp.arange(half)
    rot = jnp.zeros((head_dim, head_dim), jnp.float32)
    rot = rot.at[idx + half, idx].set(-1.0)                   # x @ rot == rotate_half(x)
    rot = rot.at[idx, idx + half].set(1.0)
    rot_full = jnp.kron(jnp.eye(NUM_HEADS, dtype=jnp.float32), rot)   # (E, E) block-diag
    return cos_full, sin_full, rot_full


# --------------------------------------------------------------------------------------
# Forward glue (equivalent of ESM2.forward(tokens) with defaults)
# --------------------------------------------------------------------------------------
@jax.jit
def esm2_forward(params, tokens):
    B, T = tokens.shape
    padding_mask = tokens == PADDING_IDX
    x = params['embed_tokens'][tokens]                         # (B, T, E) gather (glue)

    if TOKEN_DROPOUT:
        mask_tok = tokens == MASK_IDX
        mask_ratio_train = 0.15 * 0.8
        src_lengths = jnp.sum(jnp.logical_not(padding_mask), axis=-1)
        # NOTE: an all-MASK sequence would divide by zero here — matches upstream ESM.
        mask_ratio_observed = jnp.sum(mask_tok, axis=-1).astype(jnp.float32) / src_lengths
        scale = (1.0 - mask_ratio_train) / (1.0 - mask_ratio_observed)     # (B,)
        mult = jnp.where(mask_tok, 0.0, 1.0) * scale[:, None]
    else:
        mult = jnp.ones((B, T), jnp.float32)
    mult = mult * jnp.where(padding_mask, 0.0, 1.0)            # x *= (1 - padding_mask)
    x = (x * mult[:, :, None]).astype(jnp.float32)             # fused by XLA with the gather

    # Additive key-padding bias (finite sentinel, NaN-safe) — zeros when nothing is padded,
    # which matches the PyTorch `padding_mask = None` fast path numerically.
    bias = jnp.where(padding_mask, NEG_BIG, 0.0).astype(jnp.float32)[:, None, :]

    cos, sin, rot = make_rotary_tables(T, HEAD_DIM)
    logits_pad = esm2_fused_pallas(x, bias, cos, sin, rot, params)
    logits = logits_pad[:, :, :ALPHABET_SIZE]
    return {'logits': logits, 'representations': {}}


# --------------------------------------------------------------------------------------
# Plain-JAX reference (mirrors the PyTorch math) for a numerical sanity check
# --------------------------------------------------------------------------------------
def _ref_layer_norm(x, w, b):
    mu = jnp.mean(x, axis=-1, keepdims=True)
    var = jnp.mean(jnp.square(x - mu), axis=-1, keepdims=True)
    return (x - mu) / jnp.sqrt(var + LN_EPS) * w + b


def esm2_reference(params, tokens):
    B, T = tokens.shape
    E, H, HD = EMBED_DIM, NUM_HEADS, HEAD_DIM
    hp = jax.lax.Precision.HIGHEST
    padding_mask = tokens == PADDING_IDX
    mask_tok = tokens == MASK_IDX
    x = params['embed_tokens'][tokens]
    x = jnp.where(mask_tok[..., None], 0.0, x)
    src_lengths = jnp.sum(jnp.logical_not(padding_mask), axis=-1)
    mask_ratio_observed = jnp.sum(mask_tok, -1).astype(jnp.float32) / src_lengths
    x = x * ((1.0 - 0.15 * 0.8) / (1.0 - mask_ratio_observed))[:, None, None]
    x = x * (1.0 - padding_mask[..., None].astype(jnp.float32))

    inv_freq = 1.0 / (10000.0 ** (jnp.arange(0, HD, 2, dtype=jnp.float32) / HD))
    t = jnp.arange(T, dtype=jnp.float32)
    freqs = t[:, None] * inv_freq[None, :]
    emb_r = jnp.concatenate([freqs, freqs], axis=-1)
    cos, sin = jnp.cos(emb_r), jnp.sin(emb_r)                  # (T, HD)

    def rope(z):                                               # z: (B, H, T, HD)
        z1, z2 = z[..., :HD // 2], z[..., HD // 2:]
        return z * cos + jnp.concatenate([-z2, z1], axis=-1) * sin

    for li in range(NUM_LAYERS):
        h = _ref_layer_norm(x, params['ln1_w'][li], params['ln1_b'][li])
        q = jnp.einsum('bte,ef->btf', h, params['q_w'][li], precision=hp) + params['q_b'][li]
        k = jnp.einsum('bte,ef->btf', h, params['k_w'][li], precision=hp) + params['k_b'][li]
        v = jnp.einsum('bte,ef->btf', h, params['v_w'][li], precision=hp) + params['v_b'][li]
        q = q * (HD ** -0.5)
        q = rope(q.reshape(B, T, H, HD).transpose(0, 2, 1, 3))
        k = rope(k.reshape(B, T, H, HD).transpose(0, 2, 1, 3))
        v = v.reshape(B, T, H, HD).transpose(0, 2, 1, 3)
        scores = jnp.einsum('bhqd,bhkd->bhqk', q, k, precision=hp)
        scores = jnp.where(padding_mask[:, None, None, :], -jnp.inf, scores)
        p = jax.nn.softmax(scores, axis=-1)
        ctx = jnp.einsum('bhqk,bhkd->bhqd', p, v, precision=hp)
        ctx = ctx.transpose(0, 2, 1, 3).reshape(B, T, E)
        x = x + jnp.einsum('bte,ef->btf', ctx, params['o_w'][li], precision=hp) + params['o_b'][li]
        h2 = _ref_layer_norm(x, params['ln2_w'][li], params['ln2_b'][li])
        f = jnp.einsum('bte,ef->btf', h2, params['f1_w'][li], precision=hp) + params['f1_b'][li]
        f = jax.nn.gelu(f, approximate=False)
        x = x + jnp.einsum('btf,fe->bte', f, params['f2_w'][li], precision=hp) + params['f2_b'][li]

    h = _ref_layer_norm(x, params['ln_after_w'], params['ln_after_b'])
    h = jnp.einsum('bte,ef->btf', h, params['lm_dense_w'], precision=hp) + params['lm_dense_b']
    h = jax.nn.gelu(h, approximate=False)
    h = _ref_layer_norm(h, params['lm_ln_w'], params['lm_ln_b'])
    return (jnp.einsum('bte,ev->btv', h, params['lm_out_w_pad'][:, :ALPHABET_SIZE],
                       precision=hp) + params['lm_out_b_pad'][:, :ALPHABET_SIZE])


if __name__ == "__main__":
    key = jax.random.PRNGKey(0)
    pkey, _ = jax.random.split(key)
    params = init_params(pkey)

    B, T = 2, 8
    tokens = jnp.array(
        [[CLS_IDX, 5, 6, MASK_IDX, 7, 8, EOS_IDX, PADDING_IDX],
         [CLS_IDX, 9, 10, 11, 12, 13, 14, EOS_IDX]],
        dtype=jnp.int32)

    out = esm2_forward(params, tokens)
    logits = jax.block_until_ready(out['logits'])

    assert logits.shape == (B, T, ALPHABET_SIZE), logits.shape
    assert logits.dtype == jnp.float32
    assert bool(jnp.all(jnp.isfinite(logits)))

    ref = esm2_reference(params, tokens)
    max_err = float(jnp.max(jnp.abs(logits - ref)))
    assert max_err < 3e-2, f"max abs err vs reference: {max_err}"

    print("KERNEL_OK")
</pallas_src>

<mosaic_0001>
module attributes {stable_mosaic.version = 11 : i64} {
  func.func @_esm2_fused_kernel(%arg0: i32, %arg1: memref<1x8x32xf32, #tpu.memory_space<vmem>>, %arg2: memref<1x1x8xf32, #tpu.memory_space<vmem>>, %arg3: memref<8x32xf32, #tpu.memory_space<vmem>>, %arg4: memref<8x32xf32, #tpu.memory_space<vmem>>, %arg5: memref<32x32xf32, #tpu.memory_space<vmem>>, %arg6: memref<2x1x32xf32, #tpu.memory_space<vmem>>, %arg7: memref<2x1x32xf32, #tpu.memory_space<vmem>>, %arg8: memref<2x32x32xf32, #tpu.memory_space<vmem>>, %arg9: memref<2x1x32xf32, #tpu.memory_space<vmem>>, %arg10: memref<2x32x32xf32, #tpu.memory_space<vmem>>, %arg11: memref<2x1x32xf32, #tpu.memory_space<vmem>>, %arg12: memref<2x32x32xf32, #tpu.memory_space<vmem>>, %arg13: memref<2x1x32xf32, #tpu.memory_space<vmem>>, %arg14: memref<2x32x32xf32, #tpu.memory_space<vmem>>, %arg15: memref<2x1x32xf32, #tpu.memory_space<vmem>>, %arg16: memref<2x1x32xf32, #tpu.memory_space<vmem>>, %arg17: memref<2x1x32xf32, #tpu.memory_space<vmem>>, %arg18: memref<2x32x128xf32, #tpu.memory_space<vmem>>, %arg19: memref<2x1x128xf32, #tpu.memory_space<vmem>>, %arg20: memref<2x128x32xf32, #tpu.memory_space<vmem>>, %arg21: memref<2x1x32xf32, #tpu.memory_space<vmem>>, %arg22: memref<1x32xf32, #tpu.memory_space<vmem>>, %arg23: memref<1x32xf32, #tpu.memory_space<vmem>>, %arg24: memref<32x32xf32, #tpu.memory_space<vmem>>, %arg25: memref<1x32xf32, #tpu.memory_space<vmem>>, %arg26: memref<1x32xf32, #tpu.memory_space<vmem>>, %arg27: memref<1x32xf32, #tpu.memory_space<vmem>>, %arg28: memref<32x128xf32, #tpu.memory_space<vmem>>, %arg29: memref<1x128xf32, #tpu.memory_space<vmem>>, %arg30: memref<1x8x128xf32, #tpu.memory_space<vmem>>) attributes {dimension_semantics = [#tpu.dimension_semantics<parallel>], iteration_bounds = array<i64: 2>, scalar_prefetch = 0 : i64, scratch_operands = 0 : i64, tpu.core_type = #tpu.core_type<tc>, window_params = [{transform_indices = @transform_0, window_bounds = array<i64: 1, 8, 32>}, {transform_indices = @transform_1, window_bounds = array<i64: 1, 1, 8>}, {pipeline_mode = #tpu.pipeline_mode<synchronous>, transform_indices = @transform_2, window_bounds = array<i64: 8, 32>}, {pipeline_mode = #tpu.pipeline_mode<synchronous>, transform_indices = @transform_3, window_bounds = array<i64: 8, 32>}, {pipeline_mode = #tpu.pipeline_mode<synchronous>, transform_indices = @transform_4, window_bounds = array<i64: 32, 32>}, {pipeline_mode = #tpu.pipeline_mode<synchronous>, transform_indices = @transform_5, window_bounds = array<i64: 2, 1, 32>}, {pipeline_mode = #tpu.pipeline_mode<synchronous>, transform_indices = @transform_6, window_bounds = array<i64: 2, 1, 32>}, {pipeline_mode = #tpu.pipeline_mode<synchronous>, transform_indices = @transform_7, window_bounds = array<i64: 2, 32, 32>}, {pipeline_mode = #tpu.pipeline_mode<synchronous>, transform_indices = @transform_8, window_bounds = array<i64: 2, 1, 32>}, {pipeline_mode = #tpu.pipeline_mode<synchronous>, transform_indices = @transform_9, window_bounds = array<i64: 2, 32, 32>}, {pipeline_mode = #tpu.pipeline_mode<synchronous>, transform_indices = @transform_10, window_bounds = array<i64: 2, 1, 32>}, {pipeline_mode = #tpu.pipeline_mode<synchronous>, transform_indices = @transform_11, window_bounds = array<i64: 2, 32, 32>}, {pipeline_mode = #tpu.pipeline_mode<synchronous>, transform_indices = @transform_12, window_bounds = array<i64: 2, 1, 32>}, {pipeline_mode = #tpu.pipeline_mode<synchronous>, transform_indices = @transform_13, window_bounds = array<i64: 2, 32, 32>}, {pipeline_mode = #tpu.pipeline_mode<synchronous>, transform_indices = @transform_14, window_bounds = array<i64: 2, 1, 32>}, {pipeline_mode = #tpu.pipeline_mode<synchronous>, transform_indices = @transform_15, window_bounds = array<i64: 2, 1, 32>}, {pipeline_mode = #tpu.pipeline_mode<synchronous>, transform_indices = @transform_16, window_bounds = array<i64: 2, 1, 32>}, {pipeline_mode = #tpu.pipeline_mode<synchronous>, transform_indices = @transform_17, window_bounds = array<i64: 2, 32, 128>}, {pipeline_mode = #tpu.pipeline_mode<synchronous>, transform_indices = @transform_18, window_bounds = array<i64: 2, 1, 128>}, {pipeline_mode = #tpu.pipeline_mode<synchronous>, transform_indices = @transform_19, window_bounds = array<i64: 2, 128, 32>}, {pipeline_mode = #tpu.pipeline_mode<synchronous>, transform_indices = @transform_20, window_bounds = array<i64: 2, 1, 32>}, {pipeline_mode = #tpu.pipeline_mode<synchronous>, transform_indices = @transform_21, window_bounds = array<i64: 1, 32>}, {pipeline_mode = #tpu.pipeline_mode<synchronous>, transform_indices = @transform_22, window_bounds = array<i64: 1, 32>}, {pipeline_mode = #tpu.pipeline_mode<synchronous>, transform_indices = @transform_23, window_bounds = array<i64: 32, 32>}, {pipeline_mode = #tpu.pipeline_mode<synchronous>, transform_indices = @transform_24, window_bounds = array<i64: 1, 32>}, {pipeline_mode = #tpu.pipeline_mode<synchronous>, transform_indices = @transform_25, window_bounds = array<i64: 1, 32>}, {pipeline_mode = #tpu.pipeline_mode<synchronous>, transform_indices = @transform_26, window_bounds = array<i64: 1, 32>}, {pipeline_mode = #tpu.pipeline_mode<synchronous>, transform_indices = @transform_27, window_bounds = array<i64: 32, 128>}, {pipeline_mode = #tpu.pipeline_mode<synchronous>, transform_indices = @transform_28, window_bounds = array<i64: 1, 128>}, {transform_indices = @transform_29, window_bounds = array<i64: 1, 8, 128>}]} {
    %c0 = arith.constant 0 : index
    %c0_0 = arith.constant 0 : index
    %c0_1 = arith.constant 0 : index
    %0 = vector.load %arg1[%c0, %c0_0, %c0_1] : memref<1x8x32xf32, #tpu.memory_space<vmem>>, vector<1x8x32xf32>
    %1 = vector.shape_cast %0 : vector<1x8x32xf32> to vector<8x32xf32>
    %c0_2 = arith.constant 0 : index
    %c0_3 = arith.constant 0 : index
    %c0_4 = arith.constant 0 : index
    %2 = vector.load %arg2[%c0_2, %c0_3, %c0_4] : memref<1x1x8xf32, #tpu.memory_space<vmem>>, vector<1x1x8xf32>
    %3 = vector.shape_cast %2 : vector<1x1x8xf32> to vector<1x8xf32>
    %c0_5 = arith.constant 0 : index
    %c0_6 = arith.constant 0 : index
    %4 = vector.load %arg3[%c0_5, %c0_6] : memref<8x32xf32, #tpu.memory_space<vmem>>, vector<8x32xf32>
    %c0_7 = arith.constant 0 : index
    %c0_8 = arith.constant 0 : index
    %5 = vector.load %arg4[%c0_7, %c0_8] : memref<8x32xf32, #tpu.memory_space<vmem>>, vector<8x32xf32>
    %c0_9 = arith.constant 0 : index
    %c0_10 = arith.constant 0 : index
    %6 = vector.load %arg5[%c0_9, %c0_10] : memref<32x32xf32, #tpu.memory_space<vmem>>, vector<32x32xf32>
    %c0_11 = arith.constant 0 : index
    %c0_12 = arith.constant 0 : index
    %c0_13 = arith.constant 0 : index
    %7 = vector.load %arg6[%c0_11, %c0_12, %c0_13] : memref<2x1x32xf32, #tpu.memory_space<vmem>>, vector<1x1x32xf32>
    %8 = vector.shape_cast %7 : vector<1x1x32xf32> to vector<1x32xf32>
    %c0_14 = arith.constant 0 : index
    %c0_15 = arith.constant 0 : index
    %c0_16 = arith.constant 0 : index
    %9 = vector.load %arg7[%c0_14, %c0_15, %c0_16] : memref<2x1x32xf32, #tpu.memory_space<vmem>>, vector<1x1x32xf32>
    %10 = vector.shape_cast %9 : vector<1x1x32xf32> to vector<1x32xf32>
    %cst = arith.constant dense<0.000000e+00> : vector<8xf32>
    %11 = vector.multi_reduction <add>, %1, %cst [1] : vector<8x32xf32> to vector<8xf32>
    %12 = vector.shape_cast %11 : vector<8xf32> to vector<8x1xf32>
    %cst_17 = arith.constant 3.200000e+01 : f32
    %13 = vector.broadcast %cst_17 : f32 to vector<8x1xf32>
    %14 = arith.divf %12, %13 : vector<8x1xf32>
    %15 = vector.broadcast %14 : vector<8x1xf32> to vector<8x32xf32>
    %16 = arith.subf %1, %15 : vector<8x32xf32>
    %17 = arith.mulf %16, %16 : vector<8x32xf32>
    %cst_18 = arith.constant dense<0.000000e+00> : vector<8xf32>
    %18 = vector.multi_reduction <add>, %17, %cst_18 [1] : vector<8x32xf32> to vector<8xf32>
    %19 = vector.shape_cast %18 : vector<8xf32> to vector<8x1xf32>
    %cst_19 = arith.constant 3.200000e+01 : f32
    %20 = vector.broadcast %cst_19 : f32 to vector<8x1xf32>
    %21 = arith.divf %19, %20 : vector<8x1xf32>
    %22 = vector.broadcast %14 : vector<8x1xf32> to vector<8x32xf32>
    %23 = arith.subf %1, %22 : vector<8x32xf32>
    %cst_20 = arith.constant 9.99999974E-6 : f32
    %24 = vector.broadcast %cst_20 : f32 to vector<8x1xf32>
    %25 = arith.addf %21, %24 : vector<8x1xf32>
    %26 = math.rsqrt %25 : vector<8x1xf32>
    %27 = vector.broadcast %26 : vector<8x1xf32> to vector<8x32xf32>
    %28 = arith.mulf %23, %27 : vector<8x32xf32>
    %29 = vector.broadcast %8 : vector<1x32xf32> to vector<8x32xf32>
    %30 = arith.mulf %28, %29 : vector<8x32xf32>
    %31 = vector.broadcast %10 : vector<1x32xf32> to vector<8x32xf32>
    %32 = arith.addf %30, %31 : vector<8x32xf32>
    %c0_21 = arith.constant 0 : index
    %c0_22 = arith.constant 0 : index
    %c0_23 = arith.constant 0 : index
    %33 = vector.load %arg8[%c0_21, %c0_22, %c0_23] : memref<2x32x32xf32, #tpu.memory_space<vmem>>, vector<1x32x32xf32>
    %34 = vector.shape_cast %33 : vector<1x32x32xf32> to vector<32x32xf32>
    %cst_24 = arith.constant dense<0.000000e+00> : vector<8x32xf32>
    %35 = tpu.matmul %32, %34, %cst_24 {dimension_numbers = #tpu.dot_dimension_numbers<[1], [0], [0], [1], [0, 0, 1, 1], [], []>} : vector<8x32xf32>, vector<32x32xf32>, vector<8x32xf32> -> vector<8x32xf32>
    %c0_25 = arith.constant 0 : index
    %c0_26 = arith.constant 0 : index
    %c0_27 = arith.constant 0 : index
    %36 = vector.load %arg9[%c0_25, %c0_26, %c0_27] : memref<2x1x32xf32, #tpu.memory_space<vmem>>, vector<1x1x32xf32>
    %37 = vector.shape_cast %36 : vector<1x1x32xf32> to vector<1x32xf32>
    %38 = vector.broadcast %37 : vector<1x32xf32> to vector<8x32xf32>
    %39 = arith.addf %35, %38 : vector<8x32xf32>
    %cst_28 = arith.constant 0.353553385 : f32
    %40 = vector.broadcast %cst_28 : f32 to vector<8x32xf32>
    %41 = arith.mulf %39, %40 : vector<8x32xf32>
    %c0_29 = arith.constant 0 : index
    %c0_30 = arith.constant 0 : index
    %c0_31 = arith.constant 0 : index
    %42 = vector.load %arg10[%c0_29, %c0_30, %c0_31] : memref<2x32x32xf32, #tpu.memory_space<vmem>>, vector<1x32x32xf32>
    %43 = vector.shape_cast %42 : vector<1x32x32xf32> to vector<32x32xf32>
    %cst_32 = arith.constant dense<0.000000e+00> : vector<8x32xf32>
    %44 = tpu.matmul %32, %43, %cst_32 {dimension_numbers = #tpu.dot_dimension_numbers<[1], [0], [0], [1], [0, 0, 1, 1], [], []>} : vector<8x32xf32>, vector<32x32xf32>, vector<8x32xf32> -> vector<8x32xf32>
    %c0_33 = arith.constant 0 : index
    %c0_34 = arith.constant 0 : index
    %c0_35 = arith.constant 0 : index
    %45 = vector.load %arg11[%c0_33, %c0_34, %c0_35] : memref<2x1x32xf32, #tpu.memory_space<vmem>>, vector<1x1x32xf32>
    %46 = vector.shape_cast %45 : vector<1x1x32xf32> to vector<1x32xf32>
    %47 = vector.broadcast %46 : vector<1x32xf32> to vector<8x32xf32>
    %48 = arith.addf %44, %47 : vector<8x32xf32>
    %c0_36 = arith.constant 0 : index
    %c0_37 = arith.constant 0 : index
    %c0_38 = arith.constant 0 : index
    %49 = vector.load %arg12[%c0_36, %c0_37, %c0_38] : memref<2x32x32xf32, #tpu.memory_space<vmem>>, vector<1x32x32xf32>
    %50 = vector.shape_cast %49 : vector<1x32x32xf32> to vector<32x32xf32>
    %cst_39 = arith.constant dense<0.000000e+00> : vector<8x32xf32>
    %51 = tpu.matmul %32, %50, %cst_39 {dimension_numbers = #tpu.dot_dimension_numbers<[1], [0], [0], [1], [0, 0, 1, 1], [], []>} : vector<8x32xf32>, vector<32x32xf32>, vector<8x32xf32> -> vector<8x32xf32>
    %c0_40 = arith.constant 0 : index
    %c0_41 = arith.constant 0 : index
    %c0_42 = arith.constant 0 : index
    %52 = vector.load %arg13[%c0_40, %c0_41, %c0_42] : memref<2x1x32xf32, #tpu.memory_space<vmem>>, vector<1x1x32xf32>
    %53 = vector.shape_cast %52 : vector<1x1x32xf32> to vector<1x32xf32>
    %54 = vector.broadcast %53 : vector<1x32xf32> to vector<8x32xf32>
    %55 = arith.addf %51, %54 : vector<8x32xf32>
    %56 = arith.mulf %41, %4 : vector<8x32xf32>
    %cst_43 = arith.constant dense<0.000000e+00> : vector<8x32xf32>
    %57 = tpu.matmul %41, %6, %cst_43 {dimension_numbers = #tpu.dot_dimension_numbers<[1], [0], [0], [1], [0, 0, 1, 1], [], []>} : vector<8x32xf32>, vector<32x32xf32>, vector<8x32xf32> -> vector<8x32xf32>
    %58 = arith.mulf %57, %5 : vector<8x32xf32>
    %59 = arith.addf %56, %58 : vector<8x32xf32>
    %60 = arith.mulf %48, %4 : vector<8x32xf32>
    %cst_44 = arith.constant dense<0.000000e+00> : vector<8x32xf32>
    %61 = tpu.matmul %48, %6, %cst_44 {dimension_numbers = #tpu.dot_dimension_numbers<[1], [0], [0], [1], [0, 0, 1, 1], [], []>} : vector<8x32xf32>, vector<32x32xf32>, vector<8x32xf32> -> vector<8x32xf32>
    %62 = arith.mulf %61, %5 : vector<8x32xf32>
    %63 = arith.addf %60, %62 : vector<8x32xf32>
    %64 = vector.extract_strided_slice %59 {offsets = [0, 0], sizes = [8, 8], strides = [1, 1]} : vector<8x32xf32> to vector<8x8xf32>
    %65 = vector.extract_strided_slice %63 {offsets = [0, 0], sizes = [8, 8], strides = [1, 1]} : vector<8x32xf32> to vector<8x8xf32>
    %66 = vector.extract_strided_slice %55 {offsets = [0, 0], sizes = [8, 8], strides = [1, 1]} : vector<8x32xf32> to vector<8x8xf32>
    %cst_45 = arith.constant dense<0.000000e+00> : vector<8x8xf32>
    %67 = tpu.matmul %64, %65, %cst_45 {dimension_numbers = #tpu.dot_dimension_numbers<[1], [1], [0], [0], [0, 0, 1, 0], [], []>} : vector<8x8xf32>, vector<8x8xf32>, vector<8x8xf32> -> vector<8x8xf32>
    %68 = vector.broadcast %3 : vector<1x8xf32> to vector<8x8xf32>
    %69 = arith.addf %67, %68 : vector<8x8xf32>
    %cst_46 = arith.constant dense<0xFF800000> : vector<8xf32>
    %70 = vector.multi_reduction <maximumf>, %69, %cst_46 [1] : vector<8x8xf32> to vector<8xf32>
    %71 = vector.shape_cast %70 : vector<8xf32> to vector<8x1xf32>
    %72 = vector.broadcast %71 : vector<8x1xf32> to vector<8x8xf32>
    %73 = arith.subf %69, %72 : vector<8x8xf32>
    %74 = math.exp %73 : vector<8x8xf32>
    %cst_47 = arith.constant dense<0.000000e+00> : vector<8xf32>
    %75 = vector.multi_reduction <add>, %74, %cst_47 [1] : vector<8x8xf32> to vector<8xf32>
    %76 = vector.shape_cast %75 : vector<8xf32> to vector<8x1xf32>
    %77 = vector.broadcast %76 : vector<8x1xf32> to vector<8x8xf32>
    %78 = arith.divf %74, %77 : vector<8x8xf32>
    %cst_48 = arith.constant dense<0.000000e+00> : vector<8x8xf32>
    %79 = tpu.matmul %78, %66, %cst_48 {dimension_numbers = #tpu.dot_dimension_numbers<[1], [0], [0], [1], [0, 0, 1, 1], [], []>} : vector<8x8xf32>, vector<8x8xf32>, vector<8x8xf32> -> vector<8x8xf32>
    %80 = vector.extract_strided_slice %59 {offsets = [0, 8], sizes = [8, 8], strides = [1, 1]} : vector<8x32xf32> to vector<8x8xf32>
    %81 = vector.extract_strided_slice %63 {offsets = [0, 8], sizes = [8, 8], strides = [1, 1]} : vector<8x32xf32> to vector<8x8xf32>
    %82 = vector.extract_strided_slice %55 {offsets = [0, 8], sizes = [8, 8], strides = [1, 1]} : vector<8x32xf32> to vector<8x8xf32>
    %cst_49 = arith.constant dense<0.000000e+00> : vector<8x8xf32>
    %83 = tpu.matmul %80, %81, %cst_49 {dimension_numbers = #tpu.dot_dimension_numbers<[1], [1], [0], [0], [0, 0, 1, 0], [], []>} : vector<8x8xf32>, vector<8x8xf32>, vector<8x8xf32> -> vector<8x8xf32>
    %84 = vector.broadcast %3 : vector<1x8xf32> to vector<8x8xf32>
    %85 = arith.addf %83, %84 : vector<8x8xf32>
    %cst_50 = arith.constant dense<0xFF800000> : vector<8xf32>
    %86 = vector.multi_reduction <maximumf>, %85, %cst_50 [1] : vector<8x8xf32> to vector<8xf32>
    %87 = vector.shape_cast %86 : vector<8xf32> to vector<8x1xf32>
    %88 = vector.broadcast %87 : vector<8x1xf32> to vector<8x8xf32>
    %89 = arith.subf %85, %88 : vector<8x8xf32>
    %90 = math.exp %89 : vector<8x8xf32>
    %cst_51 = arith.constant dense<0.000000e+00> : vector<8xf32>
    %91 = vector.multi_reduction <add>, %90, %cst_51 [1] : vector<8x8xf32> to vector<8xf32>
    %92 = vector.shape_cast %91 : vector<8xf32> to vector<8x1xf32>
    %93 = vector.broadcast %92 : vector<8x1xf32> to vector<8x8xf32>
    %94 = arith.divf %90, %93 : vector<8x8xf32>
    %cst_52 = arith.constant dense<0.000000e+00> : vector<8x8xf32>
    %95 = tpu.matmul %94, %82, %cst_52 {dimension_numbers = #tpu.dot_dimension_numbers<[1], [0], [0], [1], [0, 0, 1, 1], [], []>} : vector<8x8xf32>, vector<8x8xf32>, vector<8x8xf32> -> vector<8x8xf32>
    %96 = vector.extract_strided_slice %59 {offsets = [0, 16], sizes = [8, 8], strides = [1, 1]} : vector<8x32xf32> to vector<8x8xf32>
    %97 = vector.extract_strided_slice %63 {offsets = [0, 16], sizes = [8, 8], strides = [1, 1]} : vector<8x32xf32> to vector<8x8xf32>
    %98 = vector.extract_strided_slice %55 {offsets = [0, 16], sizes = [8, 8], strides = [1, 1]} : vector<8x32xf32> to vector<8x8xf32>
    %cst_53 = arith.constant dense<0.000000e+00> : vector<8x8xf32>
    %99 = tpu.matmul %96, %97, %cst_53 {dimension_numbers = #tpu.dot_dimension_numbers<[1], [1], [0], [0], [0, 0, 1, 0], [], []>} : vector<8x8xf32>, vector<8x8xf32>, vector<8x8xf32> -> vector<8x8xf32>
    %100 = vector.broadcast %3 : vector<1x8xf32> to vector<8x8xf32>
    %101 = arith.addf %99, %100 : vector<8x8xf32>
    %cst_54 = arith.constant dense<0xFF800000> : vector<8xf32>
    %102 = vector.multi_reduction <maximumf>, %101, %cst_54 [1] : vector<8x8xf32> to vector<8xf32>
    %103 = vector.shape_cast %102 : vector<8xf32> to vector<8x1xf32>
    %104 = vector.broadcast %103 : vector<8x1xf32> to vector<8x8xf32>
    %105 = arith.subf %101, %104 : vector<8x8xf32>
    %106 = math.exp %105 : vector<8x8xf32>
    %cst_55 = arith.constant dense<0.000000e+00> : vector<8xf32>
    %107 = vector.multi_reduction <add>, %106, %cst_55 [1] : vector<8x8xf32> to vector<8xf32>
    %108 = vector.shape_cast %107 : vector<8xf32> to vector<8x1xf32>
    %109 = vector.broadcast %108 : vector<8x1xf32> to vector<8x8xf32>
    %110 = arith.divf %106, %109 : vector<8x8xf32>
    %cst_56 = arith.constant dense<0.000000e+00> : vector<8x8xf32>
    %111 = tpu.matmul %110, %98, %cst_56 {dimension_numbers = #tpu.dot_dimension_numbers<[1], [0], [0], [1], [0, 0, 1, 1], [], []>} : vector<8x8xf32>, vector<8x8xf32>, vector<8x8xf32> -> vector<8x8xf32>
    %112 = vector.extract_strided_slice %59 {offsets = [0, 24], sizes = [8, 8], strides = [1, 1]} : vector<8x32xf32> to vector<8x8xf32>
    %113 = vector.extract_strided_slice %63 {offsets = [0, 24], sizes = [8, 8], strides = [1, 1]} : vector<8x32xf32> to vector<8x8xf32>
    %114 = vector.extract_strided_slice %55 {offsets = [0, 24], sizes = [8, 8], strides = [1, 1]} : vector<8x32xf32> to vector<8x8xf32>
    %cst_57 = arith.constant dense<0.000000e+00> : vector<8x8xf32>
    %115 = tpu.matmul %112, %113, %cst_57 {dimension_numbers = #tpu.dot_dimension_numbers<[1], [1], [0], [0], [0, 0, 1, 0], [], []>} : vector<8x8xf32>, vector<8x8xf32>, vector<8x8xf32> -> vector<8x8xf32>
    %116 = vector.broadcast %3 : vector<1x8xf32> to vector<8x8xf32>
    %117 = arith.addf %115, %116 : vector<8x8xf32>
    %cst_58 = arith.constant dense<0xFF800000> : vector<8xf32>
    %118 = vector.multi_reduction <maximumf>, %117, %cst_58 [1] : vector<8x8xf32> to vector<8xf32>
    %119 = vector.shape_cast %118 : vector<8xf32> to vector<8x1xf32>
    %120 = vector.broadcast %119 : vector<8x1xf32> to vector<8x8xf32>
    %121 = arith.subf %117, %120 : vector<8x8xf32>
    %122 = math.exp %121 : vector<8x8xf32>
    %cst_59 = arith.constant dense<0.000000e+00> : vector<8xf32>
    %123 = vector.multi_reduction <add>, %122, %cst_59 [1] : vector<8x8xf32> to vector<8xf32>
    %124 = vector.shape_cast %123 : vector<8xf32> to vector<8x1xf32>
    %125 = vector.broadcast %124 : vector<8x1xf32> to vector<8x8xf32>
    %126 = arith.divf %122, %125 : vector<8x8xf32>
    %cst_60 = arith.constant dense<0.000000e+00> : vector<8x8xf32>
    %127 = tpu.matmul %126, %114, %cst_60 {dimension_numbers = #tpu.dot_dimension_numbers<[1], [0], [0], [1], [0, 0, 1, 1], [], []>} : vector<8x8xf32>, vector<8x8xf32>, vector<8x8xf32> -> vector<8x8xf32>
    %128 = tpu.concatenate %79, %95, %111, %127 in 1 : vector<8x8xf32>, vector<8x8xf32>, vector<8x8xf32>, vector<8x8xf32> -> vector<8x32xf32>
    %c0_61 = arith.constant 0 : index
    %c0_62 = arith.constant 0 : index
    %c0_63 = arith.constant 0 : index
    %129 = vector.load %arg14[%c0_61, %c0_62, %c0_63] : memref<2x32x32xf32, #tpu.memory_space<vmem>>, vector<1x32x32xf32>
    %130 = vector.shape_cast %129 : vector<1x32x32xf32> to vector<32x32xf32>
    %cst_64 = arith.constant dense<0.000000e+00> : vector<8x32xf32>
    %131 = tpu.matmul %128, %130, %cst_64 {dimension_numbers = #tpu.dot_dimension_numbers<[1], [0], [0], [1], [0, 0, 1, 1], [], []>} : vector<8x32xf32>, vector<32x32xf32>, vector<8x32xf32> -> vector<8x32xf32>
    %c0_65 = arith.constant 0 : index
    %c0_66 = arith.constant 0 : index
    %c0_67 = arith.constant 0 : index
    %132 = vector.load %arg15[%c0_65, %c0_66, %c0_67] : memref<2x1x32xf32, #tpu.memory_space<vmem>>, vector<1x1x32xf32>
    %133 = vector.shape_cast %132 : vector<1x1x32xf32> to vector<1x32xf32>
    %134 = vector.broadcast %133 : vector<1x32xf32> to vector<8x32xf32>
    %135 = arith.addf %131, %134 : vector<8x32xf32>
    %136 = arith.addf %1, %135 : vector<8x32xf32>
    %c0_68 = arith.constant 0 : index
    %c0_69 = arith.constant 0 : index
    %c0_70 = arith.constant 0 : index
    %137 = vector.load %arg16[%c0_68, %c0_69, %c0_70] : memref<2x1x32xf32, #tpu.memory_space<vmem>>, vector<1x1x32xf32>
    %138 = vector.shape_cast %137 : vector<1x1x32xf32> to vector<1x32xf32>
    %c0_71 = arith.constant 0 : index
    %c0_72 = arith.constant 0 : index
    %c0_73 = arith.constant 0 : index
    %139 = vector.load %arg17[%c0_71, %c0_72, %c0_73] : memref<2x1x32xf32, #tpu.memory_space<vmem>>, vector<1x1x32xf32>
    %140 = vector.shape_cast %139 : vector<1x1x32xf32> to vector<1x32xf32>
    %cst_74 = arith.constant dense<0.000000e+00> : vector<8xf32>
    %141 = vector.multi_reduction <add>, %136, %cst_74 [1] : vector<8x32xf32> to vector<8xf32>
    %142 = vector.shape_cast %141 : vector<8xf32> to vector<8x1xf32>
    %cst_75 = arith.constant 3.200000e+01 : f32
    %143 = vector.broadcast %cst_75 : f32 to vector<8x1xf32>
    %144 = arith.divf %142, %143 : vector<8x1xf32>
    %145 = vector.broadcast %144 : vector<8x1xf32> to vector<8x32xf32>
    %146 = arith.subf %136, %145 : vector<8x32xf32>
    %147 = arith.mulf %146, %146 : vector<8x32xf32>
    %cst_76 = arith.constant dense<0.000000e+00> : vector<8xf32>
    %148 = vector.multi_reduction <add>, %147, %cst_76 [1] : vector<8x32xf32> to vector<8xf32>
    %149 = vector.shape_cast %148 : vector<8xf32> to vector<8x1xf32>
    %cst_77 = arith.constant 3.200000e+01 : f32
    %150 = vector.broadcast %cst_77 : f32 to vector<8x1xf32>
    %151 = arith.divf %149, %150 : vector<8x1xf32>
    %152 = vector.broadcast %144 : vector<8x1xf32> to vector<8x32xf32>
    %153 = arith.subf %136, %152 : vector<8x32xf32>
    %cst_78 = arith.constant 9.99999974E-6 : f32
    %154 = vector.broadcast %cst_78 : f32 to vector<8x1xf32>
    %155 = arith.addf %151, %154 : vector<8x1xf32>
    %156 = math.rsqrt %155 : vector<8x1xf32>
    %157 = vector.broadcast %156 : vector<8x1xf32> to vector<8x32xf32>
    %158 = arith.mulf %153, %157 : vector<8x32xf32>
    %159 = vector.broadcast %138 : vector<1x32xf32> to vector<8x32xf32>
    %160 = arith.mulf %158, %159 : vector<8x32xf32>
    %161 = vector.broadcast %140 : vector<1x32xf32> to vector<8x32xf32>
    %162 = arith.addf %160, %161 : vector<8x32xf32>
    %c0_79 = arith.constant 0 : index
    %c0_80 = arith.constant 0 : index
    %c0_81 = arith.constant 0 : index
    %163 = vector.load %arg18[%c0_79, %c0_80, %c0_81] : memref<2x32x128xf32, #tpu.memory_space<vmem>>, vector<1x32x128xf32>
    %164 = vector.shape_cast %163 : vector<1x32x128xf32> to vector<32x128xf32>
    %cst_82 = arith.constant dense<0.000000e+00> : vector<8x128xf32>
    %165 = tpu.matmul %162, %164, %cst_82 {dimension_numbers = #tpu.dot_dimension_numbers<[1], [0], [0], [1], [0, 0, 1, 1], [], []>} : vector<8x32xf32>, vector<32x128xf32>, vector<8x128xf32> -> vector<8x128xf32>
    %c0_83 = arith.constant 0 : index
    %c0_84 = arith.constant 0 : index
    %c0_85 = arith.constant 0 : index
    %166 = vector.load %arg19[%c0_83, %c0_84, %c0_85] : memref<2x1x128xf32, #tpu.memory_space<vmem>>, vector<1x1x128xf32>
    %167 = vector.shape_cast %166 : vector<1x1x128xf32> to vector<1x128xf32>
    %168 = vector.broadcast %167 : vector<1x128xf32> to vector<8x128xf32>
    %169 = arith.addf %165, %168 : vector<8x128xf32>
    %cst_86 = arith.constant 5.000000e-01 : f32
    %170 = vector.broadcast %cst_86 : f32 to vector<8x128xf32>
    %171 = arith.mulf %169, %170 : vector<8x128xf32>
    %cst_87 = arith.constant 0.707106769 : f32
    %172 = vector.broadcast %cst_87 : f32 to vector<8x128xf32>
    %173 = arith.mulf %169, %172 : vector<8x128xf32>
    %174 = math.absf %173 : vector<8x128xf32>
    %cst_88 = arith.constant 0.327591091 : f32
    %175 = vector.broadcast %cst_88 : f32 to vector<8x128xf32>
    %176 = arith.mulf %175, %174 : vector<8x128xf32>
    %cst_89 = arith.constant 1.000000e+00 : f32
    %177 = vector.broadcast %cst_89 : f32 to vector<8x128xf32>
    %178 = arith.addf %177, %176 : vector<8x128xf32>
    %cst_90 = arith.constant 1.000000e+00 : f32
    %179 = vector.broadcast %cst_90 : f32 to vector<8x128xf32>
    %180 = arith.divf %179, %178 : vector<8x128xf32>
    %cst_91 = arith.constant 1.06140542 : f32
    %181 = vector.broadcast %cst_91 : f32 to vector<8x128xf32>
    %182 = arith.mulf %181, %180 : vector<8x128xf32>
    %cst_92 = arith.constant -1.45315206 : f32
    %183 = vector.broadcast %cst_92 : f32 to vector<8x128xf32>
    %184 = arith.addf %182, %183 : vector<8x128xf32>
    %185 = arith.mulf %184, %180 : vector<8x128xf32>
    %cst_93 = arith.constant 1.42141378 : f32
    %186 = vector.broadcast %cst_93 : f32 to vector<8x128xf32>
    %187 = arith.addf %185, %186 : vector<8x128xf32>
    %188 = arith.mulf %187, %180 : vector<8x128xf32>
    %cst_94 = arith.constant -0.284496725 : f32
    %189 = vector.broadcast %cst_94 : f32 to vector<8x128xf32>
    %190 = arith.addf %188, %189 : vector<8x128xf32>
    %191 = arith.mulf %190, %180 : vector<8x128xf32>
    %cst_95 = arith.constant 0.254829586 : f32
    %192 = vector.broadcast %cst_95 : f32 to vector<8x128xf32>
    %193 = arith.addf %191, %192 : vector<8x128xf32>
    %194 = arith.mulf %193, %180 : vector<8x128xf32>
    %cst_96 = arith.constant 0.000000e+00 : f32
    %195 = vector.broadcast %cst_96 : f32 to vector<8x128xf32>
    %196 = arith.subf %195, %174 : vector<8x128xf32>
    %197 = arith.mulf %196, %174 : vector<8x128xf32>
    %198 = math.exp %197 : vector<8x128xf32>
    %199 = arith.mulf %194, %198 : vector<8x128xf32>
    %cst_97 = arith.constant 1.000000e+00 : f32
    %200 = vector.broadcast %cst_97 : f32 to vector<8x128xf32>
    %201 = arith.subf %200, %199 : vector<8x128xf32>
    %cst_98 = arith.constant 0.000000e+00 : f32
    %202 = vector.broadcast %cst_98 : f32 to vector<8x128xf32>
    %203 = arith.cmpf olt, %173, %202 : vector<8x128xf32>
    %cst_99 = arith.constant 0.000000e+00 : f32
    %204 = vector.broadcast %cst_99 : f32 to vector<8x128xf32>
    %205 = arith.subf %204, %201 : vector<8x128xf32>
    %206 = arith.select %203, %205, %201 : vector<8x128xi1>, vector<8x128xf32>
    %cst_100 = arith.constant 1.000000e+00 : f32
    %207 = vector.broadcast %cst_100 : f32 to vector<8x128xf32>
    %208 = arith.addf %207, %206 : vector<8x128xf32>
    %209 = arith.mulf %171, %208 : vector<8x128xf32>
    %c0_101 = arith.constant 0 : index
    %c0_102 = arith.constant 0 : index
    %c0_103 = arith.constant 0 : index
    %210 = vector.load %arg20[%c0_101, %c0_102, %c0_103] : memref<2x128x32xf32, #tpu.memory_space<vmem>>, vector<1x128x32xf32>
    %211 = vector.shape_cast %210 : vector<1x128x32xf32> to vector<128x32xf32>
    %cst_104 = arith.constant dense<0.000000e+00> : vector<8x32xf32>
    %212 = tpu.matmul %209, %211, %cst_104 {dimension_numbers = #tpu.dot_dimension_numbers<[1], [0], [0], [1], [0, 0, 1, 1], [], []>} : vector<8x128xf32>, vector<128x32xf32>, vector<8x32xf32> -> vector<8x32xf32>
    %213 = arith.addf %136, %212 : vector<8x32xf32>
    %c0_105 = arith.constant 0 : index
    %c0_106 = arith.constant 0 : index
    %c0_107 = arith.constant 0 : index
    %214 = vector.load %arg21[%c0_105, %c0_106, %c0_107] : memref<2x1x32xf32, #tpu.memory_space<vmem>>, vector<1x1x32xf32>
    %215 = vector.shape_cast %214 : vector<1x1x32xf32> to vector<1x32xf32>
    %216 = vector.broadcast %215 : vector<1x32xf32> to vector<8x32xf32>
    %217 = arith.addf %213, %216 : vector<8x32xf32>
    %c1 = arith.constant 1 : index
    %c0_108 = arith.constant 0 : index
    %c0_109 = arith.constant 0 : index
    %218 = vector.load %arg6[%c1, %c0_108, %c0_109] : memref<2x1x32xf32, #tpu.memory_space<vmem>>, vector<1x1x32xf32>
    %219 = vector.shape_cast %218 : vector<1x1x32xf32> to vector<1x32xf32>
    %c1_110 = arith.constant 1 : index
    %c0_111 = arith.constant 0 : index
    %c0_112 = arith.constant 0 : index
    %220 = vector.load %arg7[%c1_110, %c0_111, %c0_112] : memref<2x1x32xf32, #tpu.memory_space<vmem>>, vector<1x1x32xf32>
    %221 = vector.shape_cast %220 : vector<1x1x32xf32> to vector<1x32xf32>
    %cst_113 = arith.constant dense<0.000000e+00> : vector<8xf32>
    %222 = vector.multi_reduction <add>, %217, %cst_113 [1] : vector<8x32xf32> to vector<8xf32>
    %223 = vector.shape_cast %222 : vector<8xf32> to vector<8x1xf32>
    %cst_114 = arith.constant 3.200000e+01 : f32
    %224 = vector.broadcast %cst_114 : f32 to vector<8x1xf32>
    %225 = arith.divf %223, %224 : vector<8x1xf32>
    %226 = vector.broadcast %225 : vector<8x1xf32> to vector<8x32xf32>
    %227 = arith.subf %217, %226 : vector<8x32xf32>
    %228 = arith.mulf %227, %227 : vector<8x32xf32>
    %cst_115 = arith.constant dense<0.000000e+00> : vector<8xf32>
    %229 = vector.multi_reduction <add>, %228, %cst_115 [1] : vector<8x32xf32> to vector<8xf32>
    %230 = vector.shape_cast %229 : vector<8xf32> to vector<8x1xf32>
    %cst_116 = arith.constant 3.200000e+01 : f32
    %231 = vector.broadcast %cst_116 : f32 to vector<8x1xf32>
    %232 = arith.divf %230, %231 : vector<8x1xf32>
    %233 = vector.broadcast %225 : vector<8x1xf32> to vector<8x32xf32>
    %234 = arith.subf %217, %233 : vector<8x32xf32>
    %cst_117 = arith.constant 9.99999974E-6 : f32
    %235 = vector.broadcast %cst_117 : f32 to vector<8x1xf32>
    %236 = arith.addf %232, %235 : vector<8x1xf32>
    %237 = math.rsqrt %236 : vector<8x1xf32>
    %238 = vector.broadcast %237 : vector<8x1xf32> to vector<8x32xf32>
    %239 = arith.mulf %234, %238 : vector<8x32xf32>
    %240 = vector.broadcast %219 : vector<1x32xf32> to vector<8x32xf32>
    %241 = arith.mulf %239, %240 : vector<8x32xf32>
    %242 = vector.broadcast %221 : vector<1x32xf32> to vector<8x32xf32>
    %243 = arith.addf %241, %242 : vector<8x32xf32>
    %c1_118 = arith.constant 1 : index
    %c0_119 = arith.constant 0 : index
    %c0_120 = arith.constant 0 : index
    %244 = vector.load %arg8[%c1_118, %c0_119, %c0_120] : memref<2x32x32xf32, #tpu.memory_space<vmem>>, vector<1x32x32xf32>
    %245 = vector.shape_cast %244 : vector<1x32x32xf32> to vector<32x32xf32>
    %cst_121 = arith.constant dense<0.000000e+00> : vector<8x32xf32>
    %246 = tpu.matmul %243, %245, %cst_121 {dimension_numbers = #tpu.dot_dimension_numbers<[1], [0], [0], [1], [0, 0, 1, 1], [], []>} : vector<8x32xf32>, vector<32x32xf32>, vector<8x32xf32> -> vector<8x32xf32>
    %c1_122 = arith.constant 1 : index
    %c0_123 = arith.constant 0 : index
    %c0_124 = arith.constant 0 : index
    %247 = vector.load %arg9[%c1_122, %c0_123, %c0_124] : memref<2x1x32xf32, #tpu.memory_space<vmem>>, vector<1x1x32xf32>
    %248 = vector.shape_cast %247 : vector<1x1x32xf32> to vector<1x32xf32>
    %249 = vector.broadcast %248 : vector<1x32xf32> to vector<8x32xf32>
    %250 = arith.addf %246, %249 : vector<8x32xf32>
    %cst_125 = arith.constant 0.353553385 : f32
    %251 = vector.broadcast %cst_125 : f32 to vector<8x32xf32>
    %252 = arith.mulf %250, %251 : vector<8x32xf32>
    %c1_126 = arith.constant 1 : index
    %c0_127 = arith.constant 0 : index
    %c0_128 = arith.constant 0 : index
    %253 = vector.load %arg10[%c1_126, %c0_127, %c0_128] : memref<2x32x32xf32, #tpu.memory_space<vmem>>, vector<1x32x32xf32>
    %254 = vector.shape_cast %253 : vector<1x32x32xf32> to vector<32x32xf32>
    %cst_129 = arith.constant dense<0.000000e+00> : vector<8x32xf32>
    %255 = tpu.matmul %243, %254, %cst_129 {dimension_numbers = #tpu.dot_dimension_numbers<[1], [0], [0], [1], [0, 0, 1, 1], [], []>} : vector<8x32xf32>, vector<32x32xf32>, vector<8x32xf32> -> vector<8x32xf32>
    %c1_130 = arith.constant 1 : index
    %c0_131 = arith.constant 0 : index
    %c0_132 = arith.constant 0 : index
    %256 = vector.load %arg11[%c1_130, %c0_131, %c0_132] : memref<2x1x32xf32, #tpu.memory_space<vmem>>, vector<1x1x32xf32>
    %257 = vector.shape_cast %256 : vector<1x1x32xf32> to vector<1x32xf32>
    %258 = vector.broadcast %257 : vector<1x32xf32> to vector<8x32xf32>
    %259 = arith.addf %255, %258 : vector<8x32xf32>
    %c1_133 = arith.constant 1 : index
    %c0_134 = arith.constant 0 : index
    %c0_135 = arith.constant 0 : index
    %260 = vector.load %arg12[%c1_133, %c0_134, %c0_135] : memref<2x32x32xf32, #tpu.memory_space<vmem>>, vector<1x32x32xf32>
    %261 = vector.shape_cast %260 : vector<1x32x32xf32> to vector<32x32xf32>
    %cst_136 = arith.constant dense<0.000000e+00> : vector<8x32xf32>
    %262 = tpu.matmul %243, %261, %cst_136 {dimension_numbers = #tpu.dot_dimension_numbers<[1], [0], [0], [1], [0, 0, 1, 1], [], []>} : vector<8x32xf32>, vector<32x32xf32>, vector<8x32xf32> -> vector<8x32xf32>
    %c1_137 = arith.constant 1 : index
    %c0_138 = arith.constant 0 : index
    %c0_139 = arith.constant 0 : index
    %263 = vector.load %arg13[%c1_137, %c0_138, %c0_139] : memref<2x1x32xf32, #tpu.memory_space<vmem>>, vector<1x1x32xf32>
    %264 = vector.shape_cast %263 : vector<1x1x32xf32> to vector<1x32xf32>
    %265 = vector.broadcast %264 : vector<1x32xf32> to vector<8x32xf32>
    %266 = arith.addf %262, %265 : vector<8x32xf32>
    %267 = arith.mulf %252, %4 : vector<8x32xf32>
    %cst_140 = arith.constant dense<0.000000e+00> : vector<8x32xf32>
    %268 = tpu.matmul %252, %6, %cst_140 {dimension_numbers = #tpu.dot_dimension_numbers<[1], [0], [0], [1], [0, 0, 1, 1], [], []>} : vector<8x32xf32>, vector<32x32xf32>, vector<8x32xf32> -> vector<8x32xf32>
    %269 = arith.mulf %268, %5 : vector<8x32xf32>
    %270 = arith.addf %267, %269 : vector<8x32xf32>
    %271 = arith.mulf %259, %4 : vector<8x32xf32>
    %cst_141 = arith.constant dense<0.000000e+00> : vector<8x32xf32>
    %272 = tpu.matmul %259, %6, %cst_141 {dimension_numbers = #tpu.dot_dimension_numbers<[1], [0], [0], [1], [0, 0, 1, 1], [], []>} : vector<8x32xf32>, vector<32x32xf32>, vector<8x32xf32> -> vector<8x32xf32>
    %273 = arith.mulf %272, %5 : vector<8x32xf32>
    %274 = arith.addf %271, %273 : vector<8x32xf32>
    %275 = vector.extract_strided_slice %270 {offsets = [0, 0], sizes = [8, 8], strides = [1, 1]} : vector<8x32xf32> to vector<8x8xf32>
    %276 = vector.extract_strided_slice %274 {offsets = [0, 0], sizes = [8, 8], strides = [1, 1]} : vector<8x32xf32> to vector<8x8xf32>
    %277 = vector.extract_strided_slice %266 {offsets = [0, 0], sizes = [8, 8], strides = [1, 1]} : vector<8x32xf32> to vector<8x8xf32>
    %cst_142 = arith.constant dense<0.000000e+00> : vector<8x8xf32>
    %278 = tpu.matmul %275, %276, %cst_142 {dimension_numbers = #tpu.dot_dimension_numbers<[1], [1], [0], [0], [0, 0, 1, 0], [], []>} : vector<8x8xf32>, vector<8x8xf32>, vector<8x8xf32> -> vector<8x8xf32>
    %279 = vector.broadcast %3 : vector<1x8xf32> to vector<8x8xf32>
    %280 = arith.addf %278, %279 : vector<8x8xf32>
    %cst_143 = arith.constant dense<0xFF800000> : vector<8xf32>
    %281 = vector.multi_reduction <maximumf>, %280, %cst_143 [1] : vector<8x8xf32> to vector<8xf32>
    %282 = vector.shape_cast %281 : vector<8xf32> to vector<8x1xf32>
    %283 = vector.broadcast %282 : vector<8x1xf32> to vector<8x8xf32>
    %284 = arith.subf %280, %283 : vector<8x8xf32>
    %285 = math.exp %284 : vector<8x8xf32>
    %cst_144 = arith.constant dense<0.000000e+00> : vector<8xf32>
    %286 = vector.multi_reduction <add>, %285, %cst_144 [1] : vector<8x8xf32> to vector<8xf32>
    %287 = vector.shape_cast %286 : vector<8xf32> to vector<8x1xf32>
    %288 = vector.broadcast %287 : vector<8x1xf32> to vector<8x8xf32>
    %289 = arith.divf %285, %288 : vector<8x8xf32>
    %cst_145 = arith.constant dense<0.000000e+00> : vector<8x8xf32>
    %290 = tpu.matmul %289, %277, %cst_145 {dimension_numbers = #tpu.dot_dimension_numbers<[1], [0], [0], [1], [0, 0, 1, 1], [], []>} : vector<8x8xf32>, vector<8x8xf32>, vector<8x8xf32> -> vector<8x8xf32>
    %291 = vector.extract_strided_slice %270 {offsets = [0, 8], sizes = [8, 8], strides = [1, 1]} : vector<8x32xf32> to vector<8x8xf32>
    %292 = vector.extract_strided_slice %274 {offsets = [0, 8], sizes = [8, 8], strides = [1, 1]} : vector<8x32xf32> to vector<8x8xf32>
    %293 = vector.extract_strided_slice %266 {offsets = [0, 8], sizes = [8, 8], strides = [1, 1]} : vector<8x32xf32> to vector<8x8xf32>
    %cst_146 = arith.constant dense<0.000000e+00> : vector<8x8xf32>
    %294 = tpu.matmul %291, %292, %cst_146 {dimension_numbers = #tpu.dot_dimension_numbers<[1], [1], [0], [0], [0, 0, 1, 0], [], []>} : vector<8x8xf32>, vector<8x8xf32>, vector<8x8xf32> -> vector<8x8xf32>
    %295 = vector.broadcast %3 : vector<1x8xf32> to vector<8x8xf32>
    %296 = arith.addf %294, %295 : vector<8x8xf32>
    %cst_147 = arith.constant dense<0xFF800000> : vector<8xf32>
    %297 = vector.multi_reduction <maximumf>, %296, %cst_147 [1] : vector<8x8xf32> to vector<8xf32>
    %298 = vector.shape_cast %297 : vector<8xf32> to vector<8x1xf32>
    %299 = vector.broadcast %298 : vector<8x1xf32> to vector<8x8xf32>
    %300 = arith.subf %296, %299 : vector<8x8xf32>
    %301 = math.exp %300 : vector<8x8xf32>
    %cst_148 = arith.constant dense<0.000000e+00> : vector<8xf32>
    %302 = vector.multi_reduction <add>, %301, %cst_148 [1] : vector<8x8xf32> to vector<8xf32>
    %303 = vector.shape_cast %302 : vector<8xf32> to vector<8x1xf32>
    %304 = vector.broadcast %303 : vector<8x1xf32> to vector<8x8xf32>
    %305 = arith.divf %301, %304 : vector<8x8xf32>
    %cst_149 = arith.constant dense<0.000000e+00> : vector<8x8xf32>
    %306 = tpu.matmul %305, %293, %cst_149 {dimension_numbers = #tpu.dot_dimension_numbers<[1], [0], [0], [1], [0, 0, 1, 1], [], []>} : vector<8x8xf32>, vector<8x8xf32>, vector<8x8xf32> -> vector<8x8xf32>
    %307 = vector.extract_strided_slice %270 {offsets = [0, 16], sizes = [8, 8], strides = [1, 1]} : vector<8x32xf32> to vector<8x8xf32>
    %308 = vector.extract_strided_slice %274 {offsets = [0, 16], sizes = [8, 8], strides = [1, 1]} : vector<8x32xf32> to vector<8x8xf32>
    %309 = vector.extract_strided_slice %266 {offsets = [0, 16], sizes = [8, 8], strides = [1, 1]} : vector<8x32xf32> to vector<8x8xf32>
    %cst_150 = arith.constant dense<0.000000e+00> : vector<8x8xf32>
    %310 = tpu.matmul %307, %308, %cst_150 {dimension_numbers = #tpu.dot_dimension_numbers<[1], [1], [0], [0], [0, 0, 1, 0], [], []>} : vector<8x8xf32>, vector<8x8xf32>, vector<8x8xf32> -> vector<8x8xf32>
    %311 = vector.broadcast %3 : vector<1x8xf32> to vector<8x8xf32>
    %312 = arith.addf %310, %311 : vector<8x8xf32>
    %cst_151 = arith.constant dense<0xFF800000> : vector<8xf32>
    %313 = vector.multi_reduction <maximumf>, %312, %cst_151 [1] : vector<8x8xf32> to vector<8xf32>
    %314 = vector.shape_cast %313 : vector<8xf32> to vector<8x1xf32>
    %315 = vector.broadcast %314 : vector<8x1xf32> to vector<8x8xf32>
    %316 = arith.subf %312, %315 : vector<8x8xf32>
    %317 = math.exp %316 : vector<8x8xf32>
    %cst_152 = arith.constant dense<0.000000e+00> : vector<8xf32>
    %318 = vector.multi_reduction <add>, %317, %cst_152 [1] : vector<8x8xf32> to vector<8xf32>
    %319 = vector.shape_cast %318 : vector<8xf32> to vector<8x1xf32>
    %320 = vector.broadcast %319 : vector<8x1xf32> to vector<8x8xf32>
    %321 = arith.divf %317, %320 : vector<8x8xf32>
    %cst_153 = arith.constant dense<0.000000e+00> : vector<8x8xf32>
    %322 = tpu.matmul %321, %309, %cst_153 {dimension_numbers = #tpu.dot_dimension_numbers<[1], [0], [0], [1], [0, 0, 1, 1], [], []>} : vector<8x8xf32>, vector<8x8xf32>, vector<8x8xf32> -> vector<8x8xf32>
    %323 = vector.extract_strided_slice %270 {offsets = [0, 24], sizes = [8, 8], strides = [1, 1]} : vector<8x32xf32> to vector<8x8xf32>
    %324 = vector.extract_strided_slice %274 {offsets = [0, 24], sizes = [8, 8], strides = [1, 1]} : vector<8x32xf32> to vector<8x8xf32>
    %325 = vector.extract_strided_slice %266 {offsets = [0, 24], sizes = [8, 8], strides = [1, 1]} : vector<8x32xf32> to vector<8x8xf32>
    %cst_154 = arith.constant dense<0.000000e+00> : vector<8x8xf32>
    %326 = tpu.matmul %323, %324, %cst_154 {dimension_numbers = #tpu.dot_dimension_numbers<[1], [1], [0], [0], [0, 0, 1, 0], [], []>} : vector<8x8xf32>, vector<8x8xf32>, vector<8x8xf32> -> vector<8x8xf32>
    %327 = vector.broadcast %3 : vector<1x8xf32> to vector<8x8xf32>
    %328 = arith.addf %326, %327 : vector<8x8xf32>
    %cst_155 = arith.constant dense<0xFF800000> : vector<8xf32>
    %329 = vector.multi_reduction <maximumf>, %328, %cst_155 [1] : vector<8x8xf32> to vector<8xf32>
    %330 = vector.shape_cast %329 : vector<8xf32> to vector<8x1xf32>
    %331 = vector.broadcast %330 : vector<8x1xf32> to vector<8x8xf32>
    %332 = arith.subf %328, %331 : vector<8x8xf32>
    %333 = math.exp %332 : vector<8x8xf32>
    %cst_156 = arith.constant dense<0.000000e+00> : vector<8xf32>
    %334 = vector.multi_reduction <add>, %333, %cst_156 [1] : vector<8x8xf32> to vector<8xf32>
    %335 = vector.shape_cast %334 : vector<8xf32> to vector<8x1xf32>
    %336 = vector.broadcast %335 : vector<8x1xf32> to vector<8x8xf32>
    %337 = arith.divf %333, %336 : vector<8x8xf32>
    %cst_157 = arith.constant dense<0.000000e+00> : vector<8x8xf32>
    %338 = tpu.matmul %337, %325, %cst_157 {dimension_numbers = #tpu.dot_dimension_numbers<[1], [0], [0], [1], [0, 0, 1, 1], [], []>} : vector<8x8xf32>, vector<8x8xf32>, vector<8x8xf32> -> vector<8x8xf32>
    %339 = tpu.concatenate %290, %306, %322, %338 in 1 : vector<8x8xf32>, vector<8x8xf32>, vector<8x8xf32>, vector<8x8xf32> -> vector<8x32xf32>
    %c1_158 = arith.constant 1 : index
    %c0_159 = arith.constant 0 : index
    %c0_160 = arith.constant 0 : index
    %340 = vector.load %arg14[%c1_158, %c0_159, %c0_160] : memref<2x32x32xf32, #tpu.memory_space<vmem>>, vector<1x32x32xf32>
    %341 = vector.shape_cast %340 : vector<1x32x32xf32> to vector<32x32xf32>
    %cst_161 = arith.constant dense<0.000000e+00> : vector<8x32xf32>
    %342 = tpu.matmul %339, %341, %cst_161 {dimension_numbers = #tpu.dot_dimension_numbers<[1], [0], [0], [1], [0, 0, 1, 1], [], []>} : vector<8x32xf32>, vector<32x32xf32>, vector<8x32xf32> -> vector<8x32xf32>
    %c1_162 = arith.constant 1 : index
    %c0_163 = arith.constant 0 : index
    %c0_164 = arith.constant 0 : index
    %343 = vector.load %arg15[%c1_162, %c0_163, %c0_164] : memref<2x1x32xf32, #tpu.memory_space<vmem>>, vector<1x1x32xf32>
    %344 = vector.shape_cast %343 : vector<1x1x32xf32> to vector<1x32xf32>
    %345 = vector.broadcast %344 : vector<1x32xf32> to vector<8x32xf32>
    %346 = arith.addf %342, %345 : vector<8x32xf32>
    %347 = arith.addf %217, %346 : vector<8x32xf32>
    %c1_165 = arith.constant 1 : index
    %c0_166 = arith.constant 0 : index
    %c0_167 = arith.constant 0 : index
    %348 = vector.load %arg16[%c1_165, %c0_166, %c0_167] : memref<2x1x32xf32, #tpu.memory_space<vmem>>, vector<1x1x32xf32>
    %349 = vector.shape_cast %348 : vector<1x1x32xf32> to vector<1x32xf32>
    %c1_168 = arith.constant 1 : index
    %c0_169 = arith.constant 0 : index
    %c0_170 = arith.constant 0 : index
    %350 = vector.load %arg17[%c1_168, %c0_169, %c0_170] : memref<2x1x32xf32, #tpu.memory_space<vmem>>, vector<1x1x32xf32>
    %351 = vector.shape_cast %350 : vector<1x1x32xf32> to vector<1x32xf32>
    %cst_171 = arith.constant dense<0.000000e+00> : vector<8xf32>
    %352 = vector.multi_reduction <add>, %347, %cst_171 [1] : vector<8x32xf32> to vector<8xf32>
    %353 = vector.shape_cast %352 : vector<8xf32> to vector<8x1xf32>
    %cst_172 = arith.constant 3.200000e+01 : f32
    %354 = vector.broadcast %cst_172 : f32 to vector<8x1xf32>
    %355 = arith.divf %353, %354 : vector<8x1xf32>
    %356 = vector.broadcast %355 : vector<8x1xf32> to vector<8x32xf32>
    %357 = arith.subf %347, %356 : vector<8x32xf32>
    %358 = arith.mulf %357, %357 : vector<8x32xf32>
    %cst_173 = arith.constant dense<0.000000e+00> : vector<8xf32>
    %359 = vector.multi_reduction <add>, %358, %cst_173 [1] : vector<8x32xf32> to vector<8xf32>
    %360 = vector.shape_cast %359 : vector<8xf32> to vector<8x1xf32>
    %cst_174 = arith.constant 3.200000e+01 : f32
    %361 = vector.broadcast %cst_174 : f32 to vector<8x1xf32>
    %362 = arith.divf %360, %361 : vector<8x1xf32>
    %363 = vector.broadcast %355 : vector<8x1xf32> to vector<8x32xf32>
    %364 = arith.subf %347, %363 : vector<8x32xf32>
    %cst_175 = arith.constant 9.99999974E-6 : f32
    %365 = vector.broadcast %cst_175 : f32 to vector<8x1xf32>
    %366 = arith.addf %362, %365 : vector<8x1xf32>
    %367 = math.rsqrt %366 : vector<8x1xf32>
    %368 = vector.broadcast %367 : vector<8x1xf32> to vector<8x32xf32>
    %369 = arith.mulf %364, %368 : vector<8x32xf32>
    %370 = vector.broadcast %349 : vector<1x32xf32> to vector<8x32xf32>
    %371 = arith.mulf %369, %370 : vector<8x32xf32>
    %372 = vector.broadcast %351 : vector<1x32xf32> to vector<8x32xf32>
    %373 = arith.addf %371, %372 : vector<8x32xf32>
    %c1_176 = arith.constant 1 : index
    %c0_177 = arith.constant 0 : index
    %c0_178 = arith.constant 0 : index
    %374 = vector.load %arg18[%c1_176, %c0_177, %c0_178] : memref<2x32x128xf32, #tpu.memory_space<vmem>>, vector<1x32x128xf32>
    %375 = vector.shape_cast %374 : vector<1x32x128xf32> to vector<32x128xf32>
    %cst_179 = arith.constant dense<0.000000e+00> : vector<8x128xf32>
    %376 = tpu.matmul %373, %375, %cst_179 {dimension_numbers = #tpu.dot_dimension_numbers<[1], [0], [0], [1], [0, 0, 1, 1], [], []>} : vector<8x32xf32>, vector<32x128xf32>, vector<8x128xf32> -> vector<8x128xf32>
    %c1_180 = arith.constant 1 : index
    %c0_181 = arith.constant 0 : index
    %c0_182 = arith.constant 0 : index
    %377 = vector.load %arg19[%c1_180, %c0_181, %c0_182] : memref<2x1x128xf32, #tpu.memory_space<vmem>>, vector<1x1x128xf32>
    %378 = vector.shape_cast %377 : vector<1x1x128xf32> to vector<1x128xf32>
    %379 = vector.broadcast %378 : vector<1x128xf32> to vector<8x128xf32>
    %380 = arith.addf %376, %379 : vector<8x128xf32>
    %cst_183 = arith.constant 5.000000e-01 : f32
    %381 = vector.broadcast %cst_183 : f32 to vector<8x128xf32>
    %382 = arith.mulf %380, %381 : vector<8x128xf32>
    %cst_184 = arith.constant 0.707106769 : f32
    %383 = vector.broadcast %cst_184 : f32 to vector<8x128xf32>
    %384 = arith.mulf %380, %383 : vector<8x128xf32>
    %385 = math.absf %384 : vector<8x128xf32>
    %cst_185 = arith.constant 0.327591091 : f32
    %386 = vector.broadcast %cst_185 : f32 to vector<8x128xf32>
    %387 = arith.mulf %386, %385 : vector<8x128xf32>
    %cst_186 = arith.constant 1.000000e+00 : f32
    %388 = vector.broadcast %cst_186 : f32 to vector<8x128xf32>
    %389 = arith.addf %388, %387 : vector<8x128xf32>
    %cst_187 = arith.constant 1.000000e+00 : f32
    %390 = vector.broadcast %cst_187 : f32 to vector<8x128xf32>
    %391 = arith.divf %390, %389 : vector<8x128xf32>
    %cst_188 = arith.constant 1.06140542 : f32
    %392 = vector.broadcast %cst_188 : f32 to vector<8x128xf32>
    %393 = arith.mulf %392, %391 : vector<8x128xf32>
    %cst_189 = arith.constant -1.45315206 : f32
    %394 = vector.broadcast %cst_189 : f32 to vector<8x128xf32>
    %395 = arith.addf %393, %394 : vector<8x128xf32>
    %396 = arith.mulf %395, %391 : vector<8x128xf32>
    %cst_190 = arith.constant 1.42141378 : f32
    %397 = vector.broadcast %cst_190 : f32 to vector<8x128xf32>
    %398 = arith.addf %396, %397 : vector<8x128xf32>
    %399 = arith.mulf %398, %391 : vector<8x128xf32>
    %cst_191 = arith.constant -0.284496725 : f32
    %400 = vector.broadcast %cst_191 : f32 to vector<8x128xf32>
    %401 = arith.addf %399, %400 : vector<8x128xf32>
    %402 = arith.mulf %401, %391 : vector<8x128xf32>
    %cst_192 = arith.constant 0.254829586 : f32
    %403 = vector.broadcast %cst_192 : f32 to vector<8x128xf32>
    %404 = arith.addf %402, %403 : vector<8x128xf32>
    %405 = arith.mulf %404, %391 : vector<8x128xf32>
    %cst_193 = arith.constant 0.000000e+00 : f32
    %406 = vector.broadcast %cst_193 : f32 to vector<8x128xf32>
    %407 = arith.subf %406, %385 : vector<8x128xf32>
    %408 = arith.mulf %407, %385 : vector<8x128xf32>
    %409 = math.exp %408 : vector<8x128xf32>
    %410 = arith.mulf %405, %409 : vector<8x128xf32>
    %cst_194 = arith.constant 1.000000e+00 : f32
    %411 = vector.broadcast %cst_194 : f32 to vector<8x128xf32>
    %412 = arith.subf %411, %410 : vector<8x128xf32>
    %cst_195 = arith.constant 0.000000e+00 : f32
    %413 = vector.broadcast %cst_195 : f32 to vector<8x128xf32>
    %414 = arith.cmpf olt, %384, %413 : vector<8x128xf32>
    %cst_196 = arith.constant 0.000000e+00 : f32
    %415 = vector.broadcast %cst_196 : f32 to vector<8x128xf32>
    %416 = arith.subf %415, %412 : vector<8x128xf32>
    %417 = arith.select %414, %416, %412 : vector<8x128xi1>, vector<8x128xf32>
    %cst_197 = arith.constant 1.000000e+00 : f32
    %418 = vector.broadcast %cst_197 : f32 to vector<8x128xf32>
    %419 = arith.addf %418, %417 : vector<8x128xf32>
    %420 = arith.mulf %382, %419 : vector<8x128xf32>
    %c1_198 = arith.constant 1 : index
    %c0_199 = arith.constant 0 : index
    %c0_200 = arith.constant 0 : index
    %421 = vector.load %arg20[%c1_198, %c0_199, %c0_200] : memref<2x128x32xf32, #tpu.memory_space<vmem>>, vector<1x128x32xf32>
    %422 = vector.shape_cast %421 : vector<1x128x32xf32> to vector<128x32xf32>
    %cst_201 = arith.constant dense<0.000000e+00> : vector<8x32xf32>
    %423 = tpu.matmul %420, %422, %cst_201 {dimension_numbers = #tpu.dot_dimension_numbers<[1], [0], [0], [1], [0, 0, 1, 1], [], []>} : vector<8x128xf32>, vector<128x32xf32>, vector<8x32xf32> -> vector<8x32xf32>
    %424 = arith.addf %347, %423 : vector<8x32xf32>
    %c1_202 = arith.constant 1 : index
    %c0_203 = arith.constant 0 : index
    %c0_204 = arith.constant 0 : index
    %425 = vector.load %arg21[%c1_202, %c0_203, %c0_204] : memref<2x1x32xf32, #tpu.memory_space<vmem>>, vector<1x1x32xf32>
    %426 = vector.shape_cast %425 : vector<1x1x32xf32> to vector<1x32xf32>
    %427 = vector.broadcast %426 : vector<1x32xf32> to vector<8x32xf32>
    %428 = arith.addf %424, %427 : vector<8x32xf32>
    %c0_205 = arith.constant 0 : index
    %c0_206 = arith.constant 0 : index
    %429 = vector.load %arg22[%c0_205, %c0_206] : memref<1x32xf32, #tpu.memory_space<vmem>>, vector<1x32xf32>
    %c0_207 = arith.constant 0 : index
    %c0_208 = arith.constant 0 : index
    %430 = vector.load %arg23[%c0_207, %c0_208] : memref<1x32xf32, #tpu.memory_space<vmem>>, vector<1x32xf32>
    %cst_209 = arith.constant dense<0.000000e+00> : vector<8xf32>
    %431 = vector.multi_reduction <add>, %428, %cst_209 [1] : vector<8x32xf32> to vector<8xf32>
    %432 = vector.shape_cast %431 : vector<8xf32> to vector<8x1xf32>
    %cst_210 = arith.constant 3.200000e+01 : f32
    %433 = vector.broadcast %cst_210 : f32 to vector<8x1xf32>
    %434 = arith.divf %432, %433 : vector<8x1xf32>
    %435 = vector.broadcast %434 : vector<8x1xf32> to vector<8x32xf32>
    %436 = arith.subf %428, %435 : vector<8x32xf32>
    %437 = arith.mulf %436, %436 : vector<8x32xf32>
    %cst_211 = arith.constant dense<0.000000e+00> : vector<8xf32>
    %438 = vector.multi_reduction <add>, %437, %cst_211 [1] : vector<8x32xf32> to vector<8xf32>
    %439 = vector.shape_cast %438 : vector<8xf32> to vector<8x1xf32>
    %cst_212 = arith.constant 3.200000e+01 : f32
    %440 = vector.broadcast %cst_212 : f32 to vector<8x1xf32>
    %441 = arith.divf %439, %440 : vector<8x1xf32>
    %442 = vector.broadcast %434 : vector<8x1xf32> to vector<8x32xf32>
    %443 = arith.subf %428, %442 : vector<8x32xf32>
    %cst_213 = arith.constant 9.99999974E-6 : f32
    %444 = vector.broadcast %cst_213 : f32 to vector<8x1xf32>
    %445 = arith.addf %441, %444 : vector<8x1xf32>
    %446 = math.rsqrt %445 : vector<8x1xf32>
    %447 = vector.broadcast %446 : vector<8x1xf32> to vector<8x32xf32>
    %448 = arith.mulf %443, %447 : vector<8x32xf32>
    %449 = vector.broadcast %429 : vector<1x32xf32> to vector<8x32xf32>
    %450 = arith.mulf %448, %449 : vector<8x32xf32>
    %451 = vector.broadcast %430 : vector<1x32xf32> to vector<8x32xf32>
    %452 = arith.addf %450, %451 : vector<8x32xf32>
    %c0_214 = arith.constant 0 : index
    %c0_215 = arith.constant 0 : index
    %453 = vector.load %arg24[%c0_214, %c0_215] : memref<32x32xf32, #tpu.memory_space<vmem>>, vector<32x32xf32>
    %cst_216 = arith.constant dense<0.000000e+00> : vector<8x32xf32>
    %454 = tpu.matmul %452, %453, %cst_216 {dimension_numbers = #tpu.dot_dimension_numbers<[1], [0], [0], [1], [0, 0, 1, 1], [], []>} : vector<8x32xf32>, vector<32x32xf32>, vector<8x32xf32> -> vector<8x32xf32>
    %c0_217 = arith.constant 0 : index
    %c0_218 = arith.constant 0 : index
    %455 = vector.load %arg25[%c0_217, %c0_218] : memref<1x32xf32, #tpu.memory_space<vmem>>, vector<1x32xf32>
    %456 = vector.broadcast %455 : vector<1x32xf32> to vector<8x32xf32>
    %457 = arith.addf %454, %456 : vector<8x32xf32>
    %cst_219 = arith.constant 5.000000e-01 : f32
    %458 = vector.broadcast %cst_219 : f32 to vector<8x32xf32>
    %459 = arith.mulf %457, %458 : vector<8x32xf32>
    %cst_220 = arith.constant 0.707106769 : f32
    %460 = vector.broadcast %cst_220 : f32 to vector<8x32xf32>
    %461 = arith.mulf %457, %460 : vector<8x32xf32>
    %462 = math.absf %461 : vector<8x32xf32>
    %cst_221 = arith.constant 0.327591091 : f32
    %463 = vector.broadcast %cst_221 : f32 to vector<8x32xf32>
    %464 = arith.mulf %463, %462 : vector<8x32xf32>
    %cst_222 = arith.constant 1.000000e+00 : f32
    %465 = vector.broadcast %cst_222 : f32 to vector<8x32xf32>
    %466 = arith.addf %465, %464 : vector<8x32xf32>
    %cst_223 = arith.constant 1.000000e+00 : f32
    %467 = vector.broadcast %cst_223 : f32 to vector<8x32xf32>
    %468 = arith.divf %467, %466 : vector<8x32xf32>
    %cst_224 = arith.constant 1.06140542 : f32
    %469 = vector.broadcast %cst_224 : f32 to vector<8x32xf32>
    %470 = arith.mulf %469, %468 : vector<8x32xf32>
    %cst_225 = arith.constant -1.45315206 : f32
    %471 = vector.broadcast %cst_225 : f32 to vector<8x32xf32>
    %472 = arith.addf %470, %471 : vector<8x32xf32>
    %473 = arith.mulf %472, %468 : vector<8x32xf32>
    %cst_226 = arith.constant 1.42141378 : f32
    %474 = vector.broadcast %cst_226 : f32 to vector<8x32xf32>
    %475 = arith.addf %473, %474 : vector<8x32xf32>
    %476 = arith.mulf %475, %468 : vector<8x32xf32>
    %cst_227 = arith.constant -0.284496725 : f32
    %477 = vector.broadcast %cst_227 : f32 to vector<8x32xf32>
    %478 = arith.addf %476, %477 : vector<8x32xf32>
    %479 = arith.mulf %478, %468 : vector<8x32xf32>
    %cst_228 = arith.constant 0.254829586 : f32
    %480 = vector.broadcast %cst_228 : f32 to vector<8x32xf32>
    %481 = arith.addf %479, %480 : vector<8x32xf32>
    %482 = arith.mulf %481, %468 : vector<8x32xf32>
    %cst_229 = arith.constant 0.000000e+00 : f32
    %483 = vector.broadcast %cst_229 : f32 to vector<8x32xf32>
    %484 = arith.subf %483, %462 : vector<8x32xf32>
    %485 = arith.mulf %484, %462 : vector<8x32xf32>
    %486 = math.exp %485 : vector<8x32xf32>
    %487 = arith.mulf %482, %486 : vector<8x32xf32>
    %cst_230 = arith.constant 1.000000e+00 : f32
    %488 = vector.broadcast %cst_230 : f32 to vector<8x32xf32>
    %489 = arith.subf %488, %487 : vector<8x32xf32>
    %cst_231 = arith.constant 0.000000e+00 : f32
    %490 = vector.broadcast %cst_231 : f32 to vector<8x32xf32>
    %491 = arith.cmpf olt, %461, %490 : vector<8x32xf32>
    %cst_232 = arith.constant 0.000000e+00 : f32
    %492 = vector.broadcast %cst_232 : f32 to vector<8x32xf32>
    %493 = arith.subf %492, %489 : vector<8x32xf32>
    %494 = arith.select %491, %493, %489 : vector<8x32xi1>, vector<8x32xf32>
    %cst_233 = arith.constant 1.000000e+00 : f32
    %495 = vector.broadcast %cst_233 : f32 to vector<8x32xf32>
    %496 = arith.addf %495, %494 : vector<8x32xf32>
    %497 = arith.mulf %459, %496 : vector<8x32xf32>
    %c0_234 = arith.constant 0 : index
    %c0_235 = arith.constant 0 : index
    %498 = vector.load %arg26[%c0_234, %c0_235] : memref<1x32xf32, #tpu.memory_space<vmem>>, vector<1x32xf32>
    %c0_236 = arith.constant 0 : index
    %c0_237 = arith.constant 0 : index
    %499 = vector.load %arg27[%c0_236, %c0_237] : memref<1x32xf32, #tpu.memory_space<vmem>>, vector<1x32xf32>
    %cst_238 = arith.constant dense<0.000000e+00> : vector<8xf32>
    %500 = vector.multi_reduction <add>, %497, %cst_238 [1] : vector<8x32xf32> to vector<8xf32>
    %501 = vector.shape_cast %500 : vector<8xf32> to vector<8x1xf32>
    %cst_239 = arith.constant 3.200000e+01 : f32
    %502 = vector.broadcast %cst_239 : f32 to vector<8x1xf32>
    %503 = arith.divf %501, %502 : vector<8x1xf32>
    %504 = vector.broadcast %503 : vector<8x1xf32> to vector<8x32xf32>
    %505 = arith.subf %497, %504 : vector<8x32xf32>
    %506 = arith.mulf %505, %505 : vector<8x32xf32>
    %cst_240 = arith.constant dense<0.000000e+00> : vector<8xf32>
    %507 = vector.multi_reduction <add>, %506, %cst_240 [1] : vector<8x32xf32> to vector<8xf32>
    %508 = vector.shape_cast %507 : vector<8xf32> to vector<8x1xf32>
    %cst_241 = arith.constant 3.200000e+01 : f32
    %509 = vector.broadcast %cst_241 : f32 to vector<8x1xf32>
    %510 = arith.divf %508, %509 : vector<8x1xf32>
    %511 = vector.broadcast %503 : vector<8x1xf32> to vector<8x32xf32>
    %512 = arith.subf %497, %511 : vector<8x32xf32>
    %cst_242 = arith.constant 9.99999974E-6 : f32
    %513 = vector.broadcast %cst_242 : f32 to vector<8x1xf32>
    %514 = arith.addf %510, %513 : vector<8x1xf32>
    %515 = math.rsqrt %514 : vector<8x1xf32>
    %516 = vector.broadcast %515 : vector<8x1xf32> to vector<8x32xf32>
    %517 = arith.mulf %512, %516 : vector<8x32xf32>
    %518 = vector.broadcast %498 : vector<1x32xf32> to vector<8x32xf32>
    %519 = arith.mulf %517, %518 : vector<8x32xf32>
    %520 = vector.broadcast %499 : vector<1x32xf32> to vector<8x32xf32>
    %521 = arith.addf %519, %520 : vector<8x32xf32>
    %c0_243 = arith.constant 0 : index
    %c0_244 = arith.constant 0 : index
    %522 = vector.load %arg28[%c0_243, %c0_244] : memref<32x128xf32, #tpu.memory_space<vmem>>, vector<32x128xf32>
    %cst_245 = arith.constant dense<0.000000e+00> : vector<8x128xf32>
    %523 = tpu.matmul %521, %522, %cst_245 {dimension_numbers = #tpu.dot_dimension_numbers<[1], [0], [0], [1], [0, 0, 1, 1], [], []>} : vector<8x32xf32>, vector<32x128xf32>, vector<8x128xf32> -> vector<8x128xf32>
    %c0_246 = arith.constant 0 : index
    %c0_247 = arith.constant 0 : index
    %524 = vector.load %arg29[%c0_246, %c0_247] : memref<1x128xf32, #tpu.memory_space<vmem>>, vector<1x128xf32>
    %525 = vector.broadcast %524 : vector<1x128xf32> to vector<8x128xf32>
    %526 = arith.addf %523, %525 : vector<8x128xf32>
    %c0_248 = arith.constant 0 : index
    %c0_249 = arith.constant 0 : index
    %c0_250 = arith.constant 0 : index
    %527 = vector.load %arg30[%c0_248, %c0_249, %c0_250] : memref<1x8x128xf32, #tpu.memory_space<vmem>>, vector<1x8x128xf32>
    %528 = vector.shape_cast %527 : vector<1x8x128xf32> to vector<8x128xf32>
    %529 = vector.shape_cast %526 : vector<8x128xf32> to vector<1x8x128xf32>
    tpu.vector_store %arg30[%c0_248, %c0_249, %c0_250], %529 {strides = array<i32>} : memref<1x8x128xf32, #tpu.memory_space<vmem>>, vector<1x8x128xf32>,
    return
  }
  func.func @transform_0(%arg0: i32) -> (i32, i32, i32) {
    %c0_i32 = arith.constant 0 : i32
    %c0_i32_0 = arith.constant 0 : i32
    %c0_i32_1 = arith.constant 0 : i32
    return %arg0, %c0_i32, %c0_i32_0 : i32, i32, i32
  }
  func.func @transform_1(%arg0: i32) -> (i32, i32, i32) {
    %c0_i32 = arith.constant 0 : i32
    %c0_i32_0 = arith.constant 0 : i32
    %c0_i32_1 = arith.constant 0 : i32
    return %arg0, %c0_i32, %c0_i32_0 : i32, i32, i32
  }
  func.func @transform_2(%arg0: i32) -> (i32, i32) {
    %c0_i32 = arith.constant 0 : i32
    %c0_i32_0 = arith.constant 0 : i32
    %c0_i32_1 = arith.constant 0 : i32
    return %c0_i32, %c0_i32_0 : i32, i32
  }
  func.func @transform_3(%arg0: i32) -> (i32, i32) {
    %c0_i32 = arith.constant 0 : i32
    %c0_i32_0 = arith.constant 0 : i32
    %c0_i32_1 = arith.constant 0 : i32
    return %c0_i32, %c0_i32_0 : i32, i32
  }
  func.func @transform_4(%arg0: i32) -> (i32, i32) {
    %c0_i32 = arith.constant 0 : i32
    %c0_i32_0 = arith.constant 0 : i32
    %c0_i32_1 = arith.constant 0 : i32
    return %c0_i32, %c0_i32_0 : i32, i32
  }
  func.func @transform_5(%arg0: i32) -> (i32, i32, i32) {
    %c0_i32 = arith.constant 0 : i32
    %c0_i32_0 = arith.constant 0 : i32
    %c0_i32_1 = arith.constant 0 : i32
    %c0_i32_2 = arith.constant 0 : i32
    return %c0_i32, %c0_i32_0, %c0_i32_1 : i32, i32, i32
  }
  func.func @transform_6(%arg0: i32) -> (i32, i32, i32) {
    %c0_i32 = arith.constant 0 : i32
    %c0_i32_0 = arith.constant 0 : i32
    %c0_i32_1 = arith.constant 0 : i32
    %c0_i32_2 = arith.constant 0 : i32
    return %c0_i32, %c0_i32_0, %c0_i32_1 : i32, i32, i32
  }
  func.func @transform_7(%arg0: i32) -> (i32, i32, i32) {
    %c0_i32 = arith.constant 0 : i32
    %c0_i32_0 = arith.constant 0 : i32
    %c0_i32_1 = arith.constant 0 : i32
    %c0_i32_2 = arith.constant 0 : i32
    return %c0_i32, %c0_i32_0, %c0_i32_1 : i32, i32, i32
  }
  func.func @transform_8(%arg0: i32) -> (i32, i32, i32) {
    %c0_i32 = arith.constant 0 : i32
    %c0_i32_0 = arith.constant 0 : i32
    %c0_i32_1 = arith.constant 0 : i32
    %c0_i32_2 = arith.constant 0 : i32
    return %c0_i32, %c0_i32_0, %c0_i32_1 : i32, i32, i32
  }
  func.func @transform_9(%arg0: i32) -> (i32, i32, i32) {
    %c0_i32 = arith.constant 0 : i32
    %c0_i32_0 = arith.constant 0 : i32
    %c0_i32_1 = arith.constant 0 : i32
    %c0_i32_2 = arith.constant 0 : i32
    return %c0_i32, %c0_i32_0, %c0_i32_1 : i32, i32, i32
  }
  func.func @transform_10(%arg0: i32) -> (i32, i32, i32) {
    %c0_i32 = arith.constant 0 : i32
    %c0_i32_0 = arith.constant 0 : i32
    %c0_i32_1 = arith.constant 0 : i32
    %c0_i32_2 = arith.constant 0 : i32
    return %c0_i32, %c0_i32_0, %c0_i32_1 : i32, i32, i32
  }
  func.func @transform_11(%arg0: i32) -> (i32, i32, i32) {
    %c0_i32 = arith.constant 0 : i32
    %c0_i32_0 = arith.constant 0 : i32
    %c0_i32_1 = arith.constant 0 : i32
    %c0_i32_2 = arith.constant 0 : i32
    return %c0_i32, %c0_i32_0, %c0_i32_1 : i32, i32, i32
  }
  func.func @transform_12(%arg0: i32) -> (i32, i32, i32) {
    %c0_i32 = arith.constant 0 : i32
    %c0_i32_0 = arith.constant 0 : i32
    %c0_i32_1 = arith.constant 0 : i32
    %c0_i32_2 = arith.constant 0 : i32
    return %c0_i32, %c0_i32_0, %c0_i32_1 : i32, i32, i32
  }
  func.func @transform_13(%arg0: i32) -> (i32, i32, i32) {
    %c0_i32 = arith.constant 0 : i32
    %c0_i32_0 = arith.constant 0 : i32
    %c0_i32_1 = arith.constant 0 : i32
    %c0_i32_2 = arith.constant 0 : i32
    return %c0_i32, %c0_i32_0, %c0_i32_1 : i32, i32, i32
  }
  func.func @transform_14(%arg0: i32) -> (i32, i32, i32) {
    %c0_i32 = arith.constant 0 : i32
    %c0_i32_0 = arith.constant 0 : i32
    %c0_i32_1 = arith.constant 0 : i32
    %c0_i32_2 = arith.constant 0 : i32
    return %c0_i32, %c0_i32_0, %c0_i32_1 : i32, i32, i32
  }
  func.func @transform_15(%arg0: i32) -> (i32, i32, i32) {
    %c0_i32 = arith.constant 0 : i32
    %c0_i32_0 = arith.constant 0 : i32
    %c0_i32_1 = arith.constant 0 : i32
    %c0_i32_2 = arith.constant 0 : i32
    return %c0_i32, %c0_i32_0, %c0_i32_1 : i32, i32, i32
  }
  func.func @transform_16(%arg0: i32) -> (i32, i32, i32) {
    %c0_i32 = arith.constant 0 : i32
    %c0_i32_0 = arith.constant 0 : i32
    %c0_i32_1 = arith.constant 0 : i32
    %c0_i32_2 = arith.constant 0 : i32
    return %c0_i32, %c0_i32_0, %c0_i32_1 : i32, i32, i32
  }
  func.func @transform_17(%arg0: i32) -> (i32, i32, i32) {
    %c0_i32 = arith.constant 0 : i32
    %c0_i32_0 = arith.constant 0 : i32
    %c0_i32_1 = arith.constant 0 : i32
    %c0_i32_2 = arith.constant 0 : i32
    return %c0_i32, %c0_i32_0, %c0_i32_1 : i32, i32, i32
  }
  func.func @transform_18(%arg0: i32) -> (i32, i32, i32) {
    %c0_i32 = arith.constant 0 : i32
    %c0_i32_0 = arith.constant 0 : i32
    %c0_i32_1 = arith.constant 0 : i32
    %c0_i32_2 = arith.constant 0 : i32
    return %c0_i32, %c0_i32_0, %c0_i32_1 : i32, i32, i32
  }
  func.func @transform_19(%arg0: i32) -> (i32, i32, i32) {
    %c0_i32 = arith.constant 0 : i32
    %c0_i32_0 = arith.constant 0 : i32
    %c0_i32_1 = arith.constant 0 : i32
    %c0_i32_2 = arith.constant 0 : i32
    return %c0_i32, %c0_i32_0, %c0_i32_1 : i32, i32, i32
  }
  func.func @transform_20(%arg0: i32) -> (i32, i32, i32) {
    %c0_i32 = arith.constant 0 : i32
    %c0_i32_0 = arith.constant 0 : i32
    %c0_i32_1 = arith.constant 0 : i32
    %c0_i32_2 = arith.constant 0 : i32
    return %c0_i32, %c0_i32_0, %c0_i32_1 : i32, i32, i32
  }
  func.func @transform_21(%arg0: i32) -> (i32, i32) {
    %c0_i32 = arith.constant 0 : i32
    %c0_i32_0 = arith.constant 0 : i32
    %c0_i32_1 = arith.constant 0 : i32
    return %c0_i32, %c0_i32_0 : i32, i32
  }
  func.func @transform_22(%arg0: i32) -> (i32, i32) {
    %c0_i32 = arith.constant 0 : i32
    %c0_i32_0 = arith.constant 0 : i32
    %c0_i32_1 = arith.constant 0 : i32
    return %c0_i32, %c0_i32_0 : i32, i32
  }
  func.func @transform_23(%arg0: i32) -> (i32, i32) {
    %c0_i32 = arith.constant 0 : i32
    %c0_i32_0 = arith.constant 0 : i32
    %c0_i32_1 = arith.constant 0 : i32
    return %c0_i32, %c0_i32_0 : i32, i32
  }
  func.func @transform_24(%arg0: i32) -> (i32, i32) {
    %c0_i32 = arith.constant 0 : i32
    %c0_i32_0 = arith.constant 0 : i32
    %c0_i32_1 = arith.constant 0 : i32
    return %c0_i32, %c0_i32_0 : i32, i32
  }
  func.func @transform_25(%arg0: i32) -> (i32, i32) {
    %c0_i32 = arith.constant 0 : i32
    %c0_i32_0 = arith.constant 0 : i32
    %c0_i32_1 = arith.constant 0 : i32
    return %c0_i32, %c0_i32_0 : i32, i32
  }
  func.func @transform_26(%arg0: i32) -> (i32, i32) {
    %c0_i32 = arith.constant 0 : i32
    %c0_i32_0 = arith.constant 0 : i32
    %c0_i32_1 = arith.constant 0 : i32
    return %c0_i32, %c0_i32_0 : i32, i32
  }
  func.func @transform_27(%arg0: i32) -> (i32, i32) {
    %c0_i32 = arith.constant 0 : i32
    %c0_i32_0 = arith.constant 0 : i32
    %c0_i32_1 = arith.constant 0 : i32
    return %c0_i32, %c0_i32_0 : i32, i32
  }
  func.func @transform_28(%arg0: i32) -> (i32, i32) {
    %c0_i32 = arith.constant 0 : i32
    %c0_i32_0 = arith.constant 0 : i32
    %c0_i32_1 = arith.constant 0 : i32
    return %c0_i32, %c0_i32_0 : i32, i32
  }
  func.func @transform_29(%arg0: i32) -> (i32, i32, i32) {
    %c0_i32 = arith.constant 0 : i32
    %c0_i32_0 = arith.constant 0 : i32
    %c0_i32_1 = arith.constant 0 : i32
    return %arg0, %c0_i32, %c0_i32_0 : i32, i32, i32
  }
}

</mosaic_0001>

<llo_original>
// kernel: tile.19
$region0: #{tile.19}
  %s0 = inlined_call_operand.vmem [shape: f32[8,4,8], index: 0, kind: input, shape index: {}]
  %s1 = inlined_call_operand.vmem [shape: f32[8,32], index: 1, kind: output, shape index: {}]
  $region1: #{tile.19} parent=0
    #allocation0 [shape = 'u8[32768]{0}', space=vmem, size = 0x8000, scoped, tag = 'scoped mem for input reshape']
    %s3 = sshll.u32 1, 4
    %s4 = ssub.s32 %s3, 1
    %s5 = smul.addr 4, 7
    %s6 = scalar_lea.vmem %s0, %s5
    %v7 = vld [vmem:[%s6] sm:%s4]
    %s8 = scalar_lea.vmem [#allocation0], 56
    %9 = vst [vmem:[%s8] sm:%s4] %v7
    %s10 = smul.addr 4, 6
    %s11 = scalar_lea.vmem %s0, %s10
    %v12 = vld [vmem:[%s11] sm:%s4]
    %s13 = scalar_lea.vmem [#allocation0], 48
    %14 = vst [vmem:[%s13] sm:%s4] %v12
    %s15 = smul.addr 4, 5
    %s16 = scalar_lea.vmem %s0, %s15
    %v17 = vld [vmem:[%s16] sm:%s4]
    %s18 = scalar_lea.vmem [#allocation0], 40
    %19 = vst [vmem:[%s18] sm:%s4] %v17
    %s20 = smul.addr 4, 4
    %s21 = scalar_lea.vmem %s0, %s20
    %v22 = vld [vmem:[%s21] sm:%s4]
    %s23 = scalar_lea.vmem [#allocation0], 32
    %24 = vst [vmem:[%s23] sm:%s4] %v22
    %s25 = smul.addr 4, 3
    %s26 = scalar_lea.vmem %s0, %s25
    %v27 = vld [vmem:[%s26] sm:%s4]
    %s28 = scalar_lea.vmem [#allocation0], 24
    %29 = vst [vmem:[%s28] sm:%s4] %v27
    %s30 = smul.addr 4, 2
    %s31 = scalar_lea.vmem %s0, %s30
    %v32 = vld [vmem:[%s31] sm:%s4]
    %s33 = scalar_lea.vmem [#allocation0], 16
    %34 = vst [vmem:[%s33] sm:%s4] %v32
    %s35 = scalar_lea.vmem %s0, 4
    %v36 = vld [vmem:[%s35] sm:%s4]
    %s37 = scalar_lea.vmem [#allocation0], 8
    %38 = vst [vmem:[%s37] sm:%s4] %v36
    %v39 = vld [vmem:[%s0] sm:%s4]
    %40 = vst [vmem:[#allocation0] sm:%s4] %v39
    %v41 = vld [vmem:[#allocation0] ss:$8 sm:$0xf]
    %v42 = vld [vmem:[#allocation0] ss:$8 sm:$0xf0]
    %vm43 = vcmask 1047556
    %v44 = vsel %vm43, %v42, %v41
    %vm45 = vcmask 64512
    %46 = vst.msk [vmem:[%s1] sm:$0xff] %vm45, %v44
    %s47 = scalar_lea.vmem [#allocation0], 3
    %v48 = vld [vmem:[%s47] ss:$8 sm:$0xf]
    %s49 = scalar_lea.vmem [#allocation0], 3
    %v50 = vld [vmem:[%s49] ss:$8 sm:$0xf0]
    %vm51 = vcmask 1047556
    %v52 = vsel %vm51, %v50, %v48
    %53 = vrot.lane.b32.xlu0 %v52, 24
    %v54 = vpop.permute.xlu0 %53
    %vm55 = vcmask 261312
    %56 = vst.msk [vmem:[%s1] sm:$0xff] %vm55, %v54
    %s57 = scalar_lea.vmem [#allocation0], 2
    %v58 = vld [vmem:[%s57] ss:$8 sm:$0xf]
    %s59 = scalar_lea.vmem [#allocation0], 2
    %v60 = vld [vmem:[%s59] ss:$8 sm:$0xf0]
    %vm61 = vcmask 1047556
    %v62 = vsel %vm61, %v60, %v58
    %63 = vrot.lane.b32.xlu0 %v62, 16
    %v64 = vpop.permute.xlu0 %63
    %vm65 = vcmask 195712
    %66 = vst.msk [vmem:[%s1] sm:$0xff] %vm65, %v64
    %s67 = scalar_lea.vmem [#allocation0], 1
    %v68 = vld [vmem:[%s67] ss:$8 sm:$0xf]
    %s69 = scalar_lea.vmem [#allocation0], 1
    %v70 = vld [vmem:[%s69] ss:$8 sm:$0xf0]
    %vm71 = vcmask 1047556
    %v72 = vsel %vm71, %v70, %v68
    %73 = vrot.lane.b32.xlu0 %v72, 8
    %v74 = vpop.permute.xlu0 %73
    %vm75 = vcmask 130112
    %76 = vst.msk [vmem:[%s1] sm:$0xff] %vm75, %v74

// kernel: esm2_forward.1
$region0: #{esm2_forward.1}
  #allocation0 [shape = 'u32[]', space=smem, size = 0x4, offset = 0x4, fixed_abs, tag = 'smem constant byte address 0x4 - core index']
  #allocation1 [shape = 'u32[144,128]{1,0:T(1,128)}', space=vmem, size = 0x12000, scoped, tag = 'internal scratch']
  %s0 = inlined_call_operand.smem [shape: u32[30], index: -1, kind: input, shape index: {}]
  %s1 = sld [smem:[%s0]]
  %s2 = scalar_lea.smem %s0, 1
  %s3 = sld [smem:[%s2]]
  %s4 = scalar_lea.smem %s0, 2
  %s5 = sld [smem:[%s4]]
  %s6 = scalar_lea.smem %s0, 3
  %s7 = sld [smem:[%s6]]
  %s8 = scalar_lea.smem %s0, 4
  %s9 = sld [smem:[%s8]]
  %s10 = scalar_lea.smem %s0, 5
  %s11 = sld [smem:[%s10]]
  %s12 = scalar_lea.smem %s0, 6
  %s13 = sld [smem:[%s12]]
  %s14 = scalar_lea.smem %s0, 7
  %s15 = sld [smem:[%s14]]
  %s16 = scalar_lea.smem %s0, 8
  %s17 = sld [smem:[%s16]]
  %s18 = scalar_lea.smem %s0, 9
  %s19 = sld [smem:[%s18]]
  %s20 = scalar_lea.smem %s0, 10
  %s21 = sld [smem:[%s20]]
  %s22 = scalar_lea.smem %s0, 11
  %s23 = sld [smem:[%s22]]
  %s24 = scalar_lea.smem %s0, 12
  %s25 = sld [smem:[%s24]]
  %s26 = scalar_lea.smem %s0, 13
  %s27 = sld [smem:[%s26]]
  %s28 = scalar_lea.smem %s0, 14
  %s29 = sld [smem:[%s28]]
  %s30 = scalar_lea.smem %s0, 15
  %s31 = sld [smem:[%s30]]
  %s32 = scalar_lea.smem %s0, 16
  %s33 = sld [smem:[%s32]]
  %s34 = scalar_lea.smem %s0, 17
  %s35 = sld [smem:[%s34]]
  %s36 = scalar_lea.smem %s0, 18
  %s37 = sld [smem:[%s36]]
  %s38 = scalar_lea.smem %s0, 19
  %s39 = sld [smem:[%s38]]
  %s40 = scalar_lea.smem %s0, 20
  %s41 = sld [smem:[%s40]]
  %s42 = scalar_lea.smem %s0, 21
  %s43 = sld [smem:[%s42]]
  %s44 = scalar_lea.smem %s0, 22
  %s45 = sld [smem:[%s44]]
  %s46 = scalar_lea.smem %s0, 23
  %s47 = sld [smem:[%s46]]
  %s48 = scalar_lea.smem %s0, 24
  %s49 = sld [smem:[%s48]]
  %s50 = scalar_lea.smem %s0, 25
  %s51 = sld [smem:[%s50]]
  %s52 = scalar_lea.smem %s0, 26
  %s53 = sld [smem:[%s52]]
  %s54 = scalar_lea.smem %s0, 27
  %s55 = sld [smem:[%s54]]
  %s56 = scalar_lea.smem %s0, 28
  %s57 = sld [smem:[%s56]]
  %s58 = scalar_lea.smem %s0, 29
  %s59 = sld [smem:[%s58]]
  %s60 = sld [smem:[#allocation0]]
  $region149: #{esm2_forward.1} parent=0
    _
  %s62 = ssub.s32 1, %s60
  %s63 = scalar_select 0, %s62, %s60
  $region1: #{esm2_forward.1} parent=0
    #allocation2 [shape = 'u8[8192]{0}', space=vmem, size = 0x2000, scoped, tag = 'output window, operand 0']
    #allocation3 [shape = 's32[2]{0}', space=sflag, size = 0x8, scoped, tag = 'scoped memory for esm2_forward.1']
    %64 = vsyncpa [#allocation3], 0
    %s65 = scalar_lea.sflag [#allocation3], 1
    %66 = vsyncpa %s65, 0
    loop: start=0, step=1, limit=4
    $region2: #{esm2_forward.1} parent=1 // loop_pre_header
      _
    $region3: #{esm2_forward.1} parent=1 // loop_header
      %s68 = sphi 0, %s72
      %p69 = scmp.ge.s32.totalorder %s68, 4
      %s78 = sphi 0, %s80
      %s81 = sphi 0, %s78
      %s82 = sphi 0, %s81
      %s98 = sphi 0, %s82
      %s104 = sphi 0, %s106
      %s107 = sphi 0, %s104
      %s108 = sphi 0, %s107
      %s124 = sphi 0, %s108
      %s128 = sphi 0, %s128
      %s130 = sphi 0, %s128
      %s131 = sphi 0, %s130
      %s145 = sphi 0, %s131
      %s149 = sphi 0, %s149
      %s151 = sphi 0, %s149
      %s152 = sphi 0, %s151
      %s166 = sphi 0, %s152
      %s170 = sphi 0, %s170
      %s172 = sphi 0, %s170
      %s173 = sphi 0, %s172
      %s187 = sphi 0, %s173
      %s191 = sphi 0, %s191
      %s193 = sphi 0, %s191
      %s194 = sphi 0, %s193
      %s208 = sphi 0, %s194
      %s212 = sphi 0, %s212
      %s214 = sphi 0, %s212
      %s215 = sphi 0, %s214
      %s229 = sphi 0, %s215
      %s233 = sphi 0, %s233
      %s235 = sphi 0, %s233
      %s236 = sphi 0, %s235
      %s250 = sphi 0, %s236
      %s254 = sphi 0, %s254
      %s256 = sphi 0, %s254
      %s257 = sphi 0, %s256
      %s271 = sphi 0, %s257
      %s275 = sphi 0, %s275
      %s277 = sphi 0, %s275
      %s278 = sphi 0, %s277
      %s292 = sphi 0, %s278
      %s296 = sphi 0, %s296
      %s298 = sphi 0, %s296
      %s299 = sphi 0, %s298
      %s313 = sphi 0, %s299
      %s317 = sphi 0, %s317
      %s319 = sphi 0, %s317
      %s320 = sphi 0, %s319
      %s334 = sphi 0, %s320
      %s338 = sphi 0, %s338
      %s340 = sphi 0, %s338
      %s341 = sphi 0, %s340
      %s355 = sphi 0, %s341
      %s359 = sphi 0, %s359
      %s361 = sphi 0, %s359
      %s362 = sphi 0, %s361
      %s376 = sphi 0, %s362
      %s380 = sphi 0, %s380
      %s382 = sphi 0, %s380
      %s383 = sphi 0, %s382
      %s397 = sphi 0, %s383
      %s401 = sphi 0, %s401
      %s403 = sphi 0, %s401
      %s404 = sphi 0, %s403
      %s418 = sphi 0, %s404
      %s422 = sphi 0, %s422
      %s424 = sphi 0, %s422
      %s425 = sphi 0, %s424
      %s439 = sphi 0, %s425
      %s443 = sphi 0, %s443
      %s445 = sphi 0, %s443
      %s446 = sphi 0, %s445
      %s460 = sphi 0, %s446
      %s464 = sphi 0, %s464
      %s466 = sphi 0, %s464
      %s467 = sphi 0, %s466
      %s481 = sphi 0, %s467
      %s485 = sphi 0, %s485
      %s487 = sphi 0, %s485
      %s488 = sphi 0, %s487
      %s502 = sphi 0, %s488
      %s506 = sphi 0, %s506
      %s508 = sphi 0, %s506
      %s509 = sphi 0, %s508
      %s523 = sphi 0, %s509
      %s527 = sphi 0, %s527
      %s529 = sphi 0, %s527
      %s530 = sphi 0, %s529
      %s544 = sphi 0, %s530
      %s548 = sphi 0, %s548
      %s550 = sphi 0, %s548
      %s551 = sphi 0, %s550
      %s565 = sphi 0, %s551
      %s569 = sphi 0, %s569
      %s571 = sphi 0, %s569
      %s572 = sphi 0, %s571
      %s586 = sphi 0, %s572
      %s590 = sphi 0, %s590
      %s592 = sphi 0, %s590
      %s593 = sphi 0, %s592
      %s607 = sphi 0, %s593
      %s611 = sphi 0, %s611
      %s613 = sphi 0, %s611
      %s614 = sphi 0, %s613
      %s628 = sphi 0, %s614
      %s632 = sphi 0, %s632
      %s634 = sphi 0, %s632
      %s635 = sphi 0, %s634
      %s649 = sphi 0, %s635
      %s653 = sphi 0, %s653
      %s655 = sphi 0, %s653
      %s656 = sphi 0, %s655
      %s670 = sphi 0, %s656
      %s674 = sphi 0, %s674
      %s676 = sphi 0, %s674
      %s677 = sphi 0, %s676
      %s691 = sphi 0, %s677
      %s697 = sphi 0, %s699
      %s700 = sphi 0, %s697
      %s701 = sphi 0, %s700
      %s717 = sphi 0, %s701
    $region4: #{esm2_forward.1} parent=1 // loop_header_branch
      %71 = sbr.rel (%p69) target = $region8
    $region5: #{esm2_forward.1} parent=1 // loop_body
      %s73 = ssub.s32 %s68, 1
      %s74 = ssub.s32 %s68, 2
      %s75 = sadd.s32 %s68, 1
      %s76 = ssub.s32 %s68, %s75
      %p77 = scmp.eq.s32.totalorder %s76, 0
      %s79 = sadd.s32 %s78, 1
      %s80 = scalar_select %p77, %s78, %s79
      %p83 = pneg %p77
      %p84 = scmp.eq.s32.totalorder %s68, 1
      %p85 = por %p83, %p84
      %p86 = scmp.ne.s32.totalorder %s78, %s81
      %p87 = scmp.eq.s32.totalorder %s68, 0
      %p88 = por %p86, %p87
      %p89 = scmp.ne.s32.totalorder %s78, %s81
      %p90 = scmp.eq.s32.totalorder %s73, 1
      %p91 = por %p89, %p90
      %p92 = scmp.ne.s32.totalorder %s81, %s82
      %p93 = scmp.eq.s32.totalorder %s73, 0
      %p94 = por %p92, %p93
      %p95 = scmp.ne.s32.totalorder %s81, %s82
      %p96 = scmp.eq.s32.totalorder %s74, 1
      %p97 = por %p95, %p96
      %p99 = scmp.ne.s32.totalorder %s82, %s98
      %p100 = scmp.eq.s32.totalorder %s74, 0
      %p101 = por %p99, %p100
      %s102 = ssub.s32 %s68, %s75
      %p103 = scmp.eq.s32.totalorder %s102, 0
      %s105 = sadd.s32 %s104, 1
      %s106 = scalar_select %p103, %s104, %s105
      %p109 = pneg %p103
      %p110 = scmp.eq.s32.totalorder %s68, 1
      %p111 = por %p109, %p110
      %p112 = scmp.ne.s32.totalorder %s104, %s107
      %p113 = scmp.eq.s32.totalorder %s68, 0
      %p114 = por %p112, %p113
      %p115 = scmp.ne.s32.totalorder %s104, %s107
      %p116 = scmp.eq.s32.totalorder %s73, 1
      %p117 = por %p115, %p116
      %p118 = scmp.ne.s32.totalorder %s107, %s108
      %p119 = scmp.eq.s32.totalorder %s73, 0
      %p120 = por %p118, %p119
      %p121 = scmp.ne.s32.totalorder %s107, %s108
      %p122 = scmp.eq.s32.totalorder %s74, 1
      %p123 = por %p121, %p122
      %p125 = scmp.ne.s32.totalorder %s108, %s124
      %p126 = scmp.eq.s32.totalorder %s74, 0
      %p127 = por %p125, %p126
      %s129 = sadd.s32 %s128, 1
      %p132 = scmp.eq.s32.totalorder %s68, 1
      %p133 = scmp.ne.s32.totalorder %s128, %s130
      %p134 = scmp.eq.s32.totalorder %s68, 0
      %p135 = por %p133, %p134
      %p136 = scmp.ne.s32.totalorder %s128, %s130
      %p137 = scmp.eq.s32.totalorder %s73, 1
      %p138 = por %p136, %p137
      %p139 = scmp.ne.s32.totalorder %s130, %s131
      %p140 = scmp.eq.s32.totalorder %s73, 0
      %p141 = por %p139, %p140
      %p142 = scmp.ne.s32.totalorder %s130, %s131
      %p143 = scmp.eq.s32.totalorder %s74, 1
      %p144 = por %p142, %p143
      %p146 = scmp.ne.s32.totalorder %s131, %s145
      %p147 = scmp.eq.s32.totalorder %s74, 0
      %p148 = por %p146, %p147
      %s150 = sadd.s32 %s149, 1
      %p153 = scmp.eq.s32.totalorder %s68, 1
      %p154 = scmp.ne.s32.totalorder %s149, %s151
      %p155 = scmp.eq.s32.totalorder %s68, 0
      %p156 = por %p154, %p155
      %p157 = scmp.ne.s32.totalorder %s149, %s151
      %p158 = scmp.eq.s32.totalorder %s73, 1
      %p159 = por %p157, %p158
      %p160 = scmp.ne.s32.totalorder %s151, %s152
      %p161 = scmp.eq.s32.totalorder %s73, 0
      %p162 = por %p160, %p161
      %p163 = scmp.ne.s32.totalorder %s151, %s152
      %p164 = scmp.eq.s32.totalorder %s74, 1
      %p165 = por %p163, %p164
      %p167 = scmp.ne.s32.totalorder %s152, %s166
      %p168 = scmp.eq.s32.totalorder %s74, 0
      %p169 = por %p167, %p168
      %s171 = sadd.s32 %s170, 1
      %p174 = scmp.eq.s32.totalorder %s68, 1
      %p175 = scmp.ne.s32.totalorder %s170, %s172
      %p176 = scmp.eq.s32.totalorder %s68, 0
      %p177 = por %p175, %p176
      %p178 = scmp.ne.s32.totalorder %s170, %s172
      %p179 = scmp.eq.s32.totalorder %s73, 1
      %p180 = por %p178, %p179
      %p181 = scmp.ne.s32.totalorder %s172, %s173
      %p182 = scmp.eq.s32.totalorder %s73, 0
      %p183 = por %p181, %p182
      %p184 = scmp.ne.s32.totalorder %s172, %s173
      %p185 = scmp.eq.s32.totalorder %s74, 1
      %p186 = por %p184, %p185
      %p188 = scmp.ne.s32.totalorder %s173, %s187
      %p189 = scmp.eq.s32.totalorder %s74, 0
      %p190 = por %p188, %p189
      %s192 = sadd.s32 %s191, 1
      %p195 = scmp.eq.s32.totalorder %s68, 1
      %p196 = scmp.ne.s32.totalorder %s191, %s193
      %p197 = scmp.eq.s32.totalorder %s68, 0
      %p198 = por %p196, %p197
      %p199 = scmp.ne.s32.totalorder %s191, %s193
      %p200 = scmp.eq.s32.totalorder %s73, 1
      %p201 = por %p199, %p200
      %p202 = scmp.ne.s32.totalorder %s193, %s194
      %p203 = scmp.eq.s32.totalorder %s73, 0
      %p204 = por %p202, %p203
      %p205 = scmp.ne.s32.totalorder %s193, %s194
      %p206 = scmp.eq.s32.totalorder %s74, 1
      %p207 = por %p205, %p206
      %p209 = scmp.ne.s32.totalorder %s194, %s208
      %p210 = scmp.eq.s32.totalorder %s74, 0
      %p211 = por %p209, %p210
      %s213 = sadd.s32 %s212, 1
      %p216 = scmp.eq.s32.totalorder %s68, 1
      %p217 = scmp.ne.s32.totalorder %s212, %s214
      %p218 = scmp.eq.s32.totalorder %s68, 0
      %p219 = por %p217, %p218
      %p220 = scmp.ne.s32.totalorder %s212, %s214
      %p221 = scmp.eq.s32.totalorder %s73, 1
      %p222 = por %p220, %p221
      %p223 = scmp.ne.s32.totalorder %s214, %s215
      %p224 = scmp.eq.s32.totalorder %s73, 0
      %p225 = por %p223, %p224
      %p226 = scmp.ne.s32.totalorder %s214, %s215
      %p227 = scmp.eq.s32.totalorder %s74, 1
      %p228 = por %p226, %p227
      %p230 = scmp.ne.s32.totalorder %s215, %s229
      %p231 = scmp.eq.s32.totalorder %s74, 0
      %p232 = por %p230, %p231
      %s234 = sadd.s32 %s233, 1
      %p237 = scmp.eq.s32.totalorder %s68, 1
      %p238 = scmp.ne.s32.totalorder %s233, %s235
      %p239 = scmp.eq.s32.totalorder %s68, 0
      %p240 = por %p238, %p239
      %p241 = scmp.ne.s32.totalorder %s233, %s235
      %p242 = scmp.eq.s32.totalorder %s73, 1
      %p243 = por %p241, %p242
      %p244 = scmp.ne.s32.totalorder %s235, %s236
      %p245 = scmp.eq.s32.totalorder %s73, 0
      %p246 = por %p244, %p245
      %p247 = scmp.ne.s32.totalorder %s235, %s236
      %p248 = scmp.eq.s32.totalorder %s74, 1
      %p249 = por %p247, %p248
      %p251 = scmp.ne.s32.totalorder %s236, %s250
      %p252 = scmp.eq.s32.totalorder %s74, 0
      %p253 = por %p251, %p252
      %s255 = sadd.s32 %s254, 1
      %p258 = scmp.eq.s32.totalorder %s68, 1
      %p259 = scmp.ne.s32.totalorder %s254, %s256
      %p260 = scmp.eq.s32.totalorder %s68, 0
      %p261 = por %p259, %p260
      %p262 = scmp.ne.s32.totalorder %s254, %s256
      %p263 = scmp.eq.s32.totalorder %s73, 1
      %p264 = por %p262, %p263
      %p265 = scmp.ne.s32.totalorder %s256, %s257
      %p266 = scmp.eq.s32.totalorder %s73, 0
      %p267 = por %p265, %p266
      %p268 = scmp.ne.s32.totalorder %s256, %s257
      %p269 = scmp.eq.s32.totalorder %s74, 1
      %p270 = por %p268, %p269
      %p272 = scmp.ne.s32.totalorder %s257, %s271
      %p273 = scmp.eq.s32.totalorder %s74, 0
      %p274 = por %p272, %p273
      %s276 = sadd.s32 %s275, 1
      %p279 = scmp.eq.s32.totalorder %s68, 1
      %p280 = scmp.ne.s32.totalorder %s275, %s277
      %p281 = scmp.eq.s32.totalorder %s68, 0
      %p282 = por %p280, %p281
      %p283 = scmp.ne.s32.totalorder %s275, %s277
      %p284 = scmp.eq.s32.totalorder %s73, 1
      %p285 = por %p283, %p284
      %p286 = scmp.ne.s32.totalorder %s277, %s278
      %p287 = scmp.eq.s32.totalorder %s73, 0
      %p288 = por %p286, %p287
      %p289 = scmp.ne.s32.totalorder %s277, %s278
      %p290 = scmp.eq.s32.totalorder %s74, 1
      %p291 = por %p289, %p290
      %p293 = scmp.ne.s32.totalorder %s278, %s292
      %p294 = scmp.eq.s32.totalorder %s74, 0
      %p295 = por %p293, %p294
      %s297 = sadd.s32 %s296, 1
      %p300 = scmp.eq.s32.totalorder %s68, 1
      %p301 = scmp.ne.s32.totalorder %s296, %s298
      %p302 = scmp.eq.s32.totalorder %s68, 0
      %p303 = por %p301, %p302
      %p304 = scmp.ne.s32.totalorder %s296, %s298
      %p305 = scmp.eq.s32.totalorder %s73, 1
      %p306 = por %p304, %p305
      %p307 = scmp.ne.s32.totalorder %s298, %s299
      %p308 = scmp.eq.s32.totalorder %s73, 0
      %p309 = por %p307, %p308
      %p310 = scmp.ne.s32.totalorder %s298, %s299
      %p311 = scmp.eq.s32.totalorder %s74, 1
      %p312 = por %p310, %p311
      %p314 = scmp.ne.s32.totalorder %s299, %s313
      %p315 = scmp.eq.s32.totalorder %s74, 0
      %p316 = por %p314, %p315
      %s318 = sadd.s32 %s317, 1
      %p321 = scmp.eq.s32.totalorder %s68, 1
      %p322 = scmp.ne.s32.totalorder %s317, %s319
      %p323 = scmp.eq.s32.totalorder %s68, 0
      %p324 = por %p322, %p323
      %p325 = scmp.ne.s32.totalorder %s317, %s319
      %p326 = scmp.eq.s32.totalorder %s73, 1
      %p327 = por %p325, %p326
      %p328 = scmp.ne.s32.totalorder %s319, %s320
      %p329 = scmp.eq.s32.totalorder %s73, 0
      %p330 = por %p328, %p329
      %p331 = scmp.ne.s32.totalorder %s319, %s320
      %p332 = scmp.eq.s32.totalorder %s74, 1
      %p333 = por %p331, %p332
      %p335 = scmp.ne.s32.totalorder %s320, %s334
      %p336 = scmp.eq.s32.totalorder %s74, 0
      %p337 = por %p335, %p336
      %s339 = sadd.s32 %s338, 1
      %p342 = scmp.eq.s32.totalorder %s68, 1
      %p343 = scmp.ne.s32.totalorder %s338, %s340
      %p344 = scmp.eq.s32.totalorder %s68, 0
      %p345 = por %p343, %p344
      %p346 = scmp.ne.s32.totalorder %s338, %s340
      %p347 = scmp.eq.s32.totalorder %s73, 1
      %p348 = por %p346, %p347
      %p349 = scmp.ne.s32.totalorder %s340, %s341
      %p350 = scmp.eq.s32.totalorder %s73, 0
      %p351 = por %p349, %p350
      %p352 = scmp.ne.s32.totalorder %s340, %s341
      %p353 = scmp.eq.s32.totalorder %s74, 1
      %p354 = por %p352, %p353
      %p356 = scmp.ne.s32.totalorder %s341, %s355
      %p357 = scmp.eq.s32.totalorder %s74, 0
      %p358 = por %p356, %p357
      %s360 = sadd.s32 %s359, 1
      %p363 = scmp.eq.s32.totalorder %s68, 1
      %p364 = scmp.ne.s32.totalorder %s359, %s361
      %p365 = scmp.eq.s32.totalorder %s68, 0
      %p366 = por %p364, %p365
      %p367 = scmp.ne.s32.totalorder %s359, %s361
      %p368 = scmp.eq.s32.totalorder %s73, 1
      %p369 = por %p367, %p368
      %p370 = scmp.ne.s32.totalorder %s361, %s362
      %p371 = scmp.eq.s32.totalorder %s73, 0
      %p372 = por %p370, %p371
      %p373 = scmp.ne.s32.totalorder %s361, %s362
      %p374 = scmp.eq.s32.totalorder %s74, 1
      %p375 = por %p373, %p374
      %p377 = scmp.ne.s32.totalorder %s362, %s376
      %p378 = scmp.eq.s32.totalorder %s74, 0
      %p379 = por %p377, %p378
      %s381 = sadd.s32 %s380, 1
      %p384 = scmp.eq.s32.totalorder %s68, 1
      %p385 = scmp.ne.s32.totalorder %s380, %s382
      %p386 = scmp.eq.s32.totalorder %s68, 0
      %p387 = por %p385, %p386
      %p388 = scmp.ne.s32.totalorder %s380, %s382
      %p389 = scmp.eq.s32.totalorder %s73, 1
      %p390 = por %p388, %p389
      %p391 = scmp.ne.s32.totalorder %s382, %s383
      %p392 = scmp.eq.s32.totalorder %s73, 0
      %p393 = por %p391, %p392
      %p394 = scmp.ne.s32.totalorder %s382, %s383
      %p395 = scmp.eq.s32.totalorder %s74, 1
      %p396 = por %p394, %p395
      %p398 = scmp.ne.s32.totalorder %s383, %s397
      %p399 = scmp.eq.s32.totalorder %s74, 0
      %p400 = por %p398, %p399
      %s402 = sadd.s32 %s401, 1
      %p405 = scmp.eq.s32.totalorder %s68, 1
      %p406 = scmp.ne.s32.totalorder %s401, %s403
      %p407 = scmp.eq.s32.totalorder %s68, 0
      %p408 = por %p406, %p407
      %p409 = scmp.ne.s32.totalorder %s401, %s403
      %p410 = scmp.eq.s32.totalorder %s73, 1
      %p411 = por %p409, %p410
      %p412 = scmp.ne.s32.totalorder %s403, %s404
      %p413 = scmp.eq.s32.totalorder %s73, 0
      %p414 = por %p412, %p413
      %p415 = scmp.ne.s32.totalorder %s403, %s404
      %p416 = scmp.eq.s32.totalorder %s74, 1
      %p417 = por %p415, %p416
      %p419 = scmp.ne.s32.totalorder %s404, %s418
      %p420 = scmp.eq.s32.totalorder %s74, 0
      %p421 = por %p419, %p420
      %s423 = sadd.s32 %s422, 1
      %p426 = scmp.eq.s32.totalorder %s68, 1
      %p427 = scmp.ne.s32.totalorder %s422, %s424
      %p428 = scmp.eq.s32.totalorder %s68, 0
      %p429 = por %p427, %p428
      %p430 = scmp.ne.s32.totalorder %s422, %s424
      %p431 = scmp.eq.s32.totalorder %s73, 1
      %p432 = por %p430, %p431
      %p433 = scmp.ne.s32.totalorder %s424, %s425
      %p434 = scmp.eq.s32.totalorder %s73, 0
      %p435 = por %p433, %p434
      %p436 = scmp.ne.s32.totalorder %s424, %s425
      %p437 = scmp.eq.s32.totalorder %s74, 1
      %p438 = por %p436, %p437
      %p440 = scmp.ne.s32.totalorder %s425, %s439
      %p441 = scmp.eq.s32.totalorder %s74, 0
      %p442 = por %p440, %p441
      %s444 = sadd.s32 %s443, 1
      %p447 = scmp.eq.s32.totalorder %s68, 1
      %p448 = scmp.ne.s32.totalorder %s443, %s445
      %p449 = scmp.eq.s32.totalorder %s68, 0
      %p450 = por %p448, %p449
      %p451 = scmp.ne.s32.totalorder %s443, %s445
      %p452 = scmp.eq.s32.totalorder %s73, 1
      %p453 = por %p451, %p452
      %p454 = scmp.ne.s32.totalorder %s445, %s446
      %p455 = scmp.eq.s32.totalorder %s73, 0
      %p456 = por %p454, %p455
      %p457 = scmp.ne.s32.totalorder %s445, %s446
      %p458 = scmp.eq.s32.totalorder %s74, 1
      %p459 = por %p457, %p458
      %p461 = scmp.ne.s32.totalorder %s446, %s460
      %p462 = scmp.eq.s32.totalorder %s74, 0
      %p463 = por %p461, %p462
      %s465 = sadd.s32 %s464, 1
      %p468 = scmp.eq.s32.totalorder %s68, 1
      %p469 = scmp.ne.s32.totalorder %s464, %s466
      %p470 = scmp.eq.s32.totalorder %s68, 0
      %p471 = por %p469, %p470
      %p472 = scmp.ne.s32.totalorder %s464, %s466
      %p473 = scmp.eq.s32.totalorder %s73, 1
      %p474 = por %p472, %p473
      %p475 = scmp.ne.s32.totalorder %s466, %s467
      %p476 = scmp.eq.s32.totalorder %s73, 0
      %p477 = por %p475, %p476
      %p478 = scmp.ne.s32.totalorder %s466, %s467
      %p479 = scmp.eq.s32.totalorder %s74, 1
      %p480 = por %p478, %p479
      %p482 = scmp.ne.s32.totalorder %s467, %s481
      %p483 = scmp.eq.s32.totalorder %s74, 0
      %p484 = por %p482, %p483
      %s486 = sadd.s32 %s485, 1
      %p489 = scmp.eq.s32.totalorder %s68, 1
      %p490 = scmp.ne.s32.totalorder %s485, %s487
      %p491 = scmp.eq.s32.totalorder %s68, 0
      %p492 = por %p490, %p491
      %p493 = scmp.ne.s32.totalorder %s485, %s487
      %p494 = scmp.eq.s32.totalorder %s73, 1
      %p495 = por %p493, %p494
      %p496 = scmp.ne.s32.totalorder %s487, %s488
      %p497 = scmp.eq.s32.totalorder %s73, 0
      %p498 = por %p496, %p497
      %p499 = scmp.ne.s32.totalorder %s487, %s488
      %p500 = scmp.eq.s32.totalorder %s74, 1
      %p501 = por %p499, %p500
      %p503 = scmp.ne.s32.totalorder %s488, %s502
      %p504 = scmp.eq.s32.totalorder %s74, 0
      %p505 = por %p503, %p504
      %s507 = sadd.s32 %s506, 1
      %p510 = scmp.eq.s32.totalorder %s68, 1
      %p511 = scmp.ne.s32.totalorder %s506, %s508
      %p512 = scmp.eq.s32.totalorder %s68, 0
      %p513 = por %p511, %p512
      %p514 = scmp.ne.s32.totalorder %s506, %s508
      %p515 = scmp.eq.s32.totalorder %s73, 1
      %p516 = por %p514, %p515
      %p517 = scmp.ne.s32.totalorder %s508, %s509
      %p518 = scmp.eq.s32.totalorder %s73, 0
      %p519 = por %p517, %p518
      %p520 = scmp.ne.s32.totalorder %s508, %s509
      %p521 = scmp.eq.s32.totalorder %s74, 1
      %p522 = por %p520, %p521
      %p524 = scmp.ne.s32.totalorder %s509, %s523
      %p525 = scmp.eq.s32.totalorder %s74, 0
      %p526 = por %p524, %p525
      %s528 = sadd.s32 %s527, 1
      %p531 = scmp.eq.s32.totalorder %s68, 1
      %p532 = scmp.ne.s32.totalorder %s527, %s529
      %p533 = scmp.eq.s32.totalorder %s68, 0
      %p534 = por %p532, %p533
      %p535 = scmp.ne.s32.totalorder %s527, %s529
      %p536 = scmp.eq.s32.totalorder %s73, 1
      %p537 = por %p535, %p536
      %p538 = scmp.ne.s32.totalorder %s529, %s530
      %p539 = scmp.eq.s32.totalorder %s73, 0
      %p540 = por %p538, %p539
      %p541 = scmp.ne.s32.totalorder %s529, %s530
      %p542 = scmp.eq.s32.totalorder %s74, 1
      %p543 = por %p541, %p542
      %p545 = scmp.ne.s32.totalorder %s530, %s544
      %p546 = scmp.eq.s32.totalorder %s74, 0
      %p547 = por %p545, %p546
      %s549 = sadd.s32 %s548, 1
      %p552 = scmp.eq.s32.totalorder %s68, 1
      %p553 = scmp.ne.s32.totalorder %s548, %s550
      %p554 = scmp.eq.s32.totalorder %s68, 0
      %p555 = por %p553, %p554
      %p556 = scmp.ne.s32.totalorder %s548, %s550
      %p557 = scmp.eq.s32.totalorder %s73, 1
      %p558 = por %p556, %p557
      %p559 = scmp.ne.s32.totalorder %s550, %s551
      %p560 = scmp.eq.s32.totalorder %s73, 0
      %p561 = por %p559, %p560
      %p562 = scmp.ne.s32.totalorder %s550, %s551
      %p563 = scmp.eq.s32.totalorder %s74, 1
      %p564 = por %p562, %p563
      %p566 = scmp.ne.s32.totalorder %s551, %s565
      %p567 = scmp.eq.s32.totalorder %s74, 0
      %p568 = por %p566, %p567
      %s570 = sadd.s32 %s569, 1
      %p573 = scmp.eq.s32.totalorder %s68, 1
      %p574 = scmp.ne.s32.totalorder %s569, %s571
      %p575 = scmp.eq.s32.totalorder %s68, 0
      %p576 = por %p574, %p575
      %p577 = scmp.ne.s32.totalorder %s569, %s571
      %p578 = scmp.eq.s32.totalorder %s73, 1
      %p579 = por %p577, %p578
      %p580 = scmp.ne.s32.totalorder %s571, %s572
      %p581 = scmp.eq.s32.totalorder %s73, 0
      %p582 = por %p580, %p581
      %p583 = scmp.ne.s32.totalorder %s571, %s572
      %p584 = scmp.eq.s32.totalorder %s74, 1
      %p585 = por %p583, %p584
      %p587 = scmp.ne.s32.totalorder %s572, %s586
      %p588 = scmp.eq.s32.totalorder %s74, 0
      %p589 = por %p587, %p588
      %s591 = sadd.s32 %s590, 1
      %p594 = scmp.eq.s32.totalorder %s68, 1
      %p595 = scmp.ne.s32.totalorder %s590, %s592
      %p596 = scmp.eq.s32.totalorder %s68, 0
      %p597 = por %p595, %p596
      %p598 = scmp.ne.s32.totalorder %s590, %s592
      %p599 = scmp.eq.s32.totalorder %s73, 1
      %p600 = por %p598, %p599
      %p601 = scmp.ne.s32.totalorder %s592, %s593
      %p602 = scmp.eq.s32.totalorder %s73, 0
      %p603 = por %p601, %p602
      %p604 = scmp.ne.s32.totalorder %s592, %s593
      %p605 = scmp.eq.s32.totalorder %s74, 1
      %p606 = por %p604, %p605
      %p608 = scmp.ne.s32.totalorder %s593, %s607
      %p609 = scmp.eq.s32.totalorder %s74, 0
      %p610 = por %p608, %p609
      %s612 = sadd.s32 %s611, 1
      %p615 = scmp.eq.s32.totalorder %s68, 1
      %p616 = scmp.ne.s32.totalorder %s611, %s613
      %p617 = scmp.eq.s32.totalorder %s68, 0
      %p618 = por %p616, %p617
      %p619 = scmp.ne.s32.totalorder %s611, %s613
      %p620 = scmp.eq.s32.totalorder %s73, 1
      %p621 = por %p619, %p620
      %p622 = scmp.ne.s32.totalorder %s613, %s614
      %p623 = scmp.eq.s32.totalorder %s73, 0
      %p624 = por %p622, %p623
      %p625 = scmp.ne.s32.totalorder %s613, %s614
      %p626 = scmp.eq.s32.totalorder %s74, 1
      %p627 = por %p625, %p626
      %p629 = scmp.ne.s32.totalorder %s614, %s628
      %p630 = scmp.eq.s32.totalorder %s74, 0
      %p631 = por %p629, %p630
      %s633 = sadd.s32 %s632, 1
      %p636 = scmp.eq.s32.totalorder %s68, 1
      %p637 = scmp.ne.s32.totalorder %s632, %s634
      %p638 = scmp.eq.s32.totalorder %s68, 0
      %p639 = por %p637, %p638
      %p640 = scmp.ne.s32.totalorder %s632, %s634
      %p641 = scmp.eq.s32.totalorder %s73, 1
      %p642 = por %p640, %p641
      %p643 = scmp.ne.s32.totalorder %s634, %s635
      %p644 = scmp.eq.s32.totalorder %s73, 0
      %p645 = por %p643, %p644
      %p646 = scmp.ne.s32.totalorder %s634, %s635
      %p647 = scmp.eq.s32.totalorder %s74, 1
      %p648 = por %p646, %p647
      %p650 = scmp.ne.s32.totalorder %s635, %s649
      %p651 = scmp.eq.s32.totalorder %s74, 0
      %p652 = por %p650, %p651
      %s654 = sadd.s32 %s653, 1
      %p657 = scmp.eq.s32.totalorder %s68, 1
      %p658 = scmp.ne.s32.totalorder %s653, %s655
      %p659 = scmp.eq.s32.totalorder %s68, 0
      %p660 = por %p658, %p659
      %p661 = scmp.ne.s32.totalorder %s653, %s655
      %p662 = scmp.eq.s32.totalorder %s73, 1
      %p663 = por %p661, %p662
      %p664 = scmp.ne.s32.totalorder %s655, %s656
      %p665 = scmp.eq.s32.totalorder %s73, 0
      %p666 = por %p664, %p665
      %p667 = scmp.ne.s32.totalorder %s655, %s656
      %p668 = scmp.eq.s32.totalorder %s74, 1
      %p669 = por %p667, %p668
      %p671 = scmp.ne.s32.totalorder %s656, %s670
      %p672 = scmp.eq.s32.totalorder %s74, 0
      %p673 = por %p671, %p672
      %s675 = sadd.s32 %s674, 1
      %p678 = scmp.eq.s32.totalorder %s68, 1
      %p679 = scmp.ne.s32.totalorder %s674, %s676
      %p680 = scmp.eq.s32.totalorder %s68, 0
      %p681 = por %p679, %p680
      %p682 = scmp.ne.s32.totalorder %s674, %s676
      %p683 = scmp.eq.s32.totalorder %s73, 1
      %p684 = por %p682, %p683
      %p685 = scmp.ne.s32.totalorder %s676, %s677
      %p686 = scmp.eq.s32.totalorder %s73, 0
      %p687 = por %p685, %p686
      %p688 = scmp.ne.s32.totalorder %s676, %s677
      %p689 = scmp.eq.s32.totalorder %s74, 1
      %p690 = por %p688, %p689
      %p692 = scmp.ne.s32.totalorder %s677, %s691
      %p693 = scmp.eq.s32.totalorder %s74, 0
      %p694 = por %p692, %p693
      %s695 = ssub.s32 %s68, %s75
      %p696 = scmp.eq.s32.totalorder %s695, 0
      %s698 = sadd.s32 %s697, 1
      %s699 = scalar_select %p696, %s697, %s698
      %p702 = pneg %p696
      %p703 = scmp.eq.s32.totalorder %s68, 1
      %p704 = por %p702, %p703
      %p705 = scmp.ne.s32.totalorder %s697, %s700
      %p706 = scmp.eq.s32.totalorder %s68, 0
      %p707 = por %p705, %p706
      %p708 = scmp.ne.s32.totalorder %s697, %s700
      %p709 = scmp.eq.s32.totalorder %s73, 1
      %p710 = por %p708, %p709
      %p711 = scmp.ne.s32.totalorder %s700, %s701
      %p712 = scmp.eq.s32.totalorder %s73, 0
      %p713 = por %p711, %p712
      %p714 = scmp.ne.s32.totalorder %s700, %s701
      %p715 = scmp.eq.s32.totalorder %s74, 1
      %p716 = por %p714, %p715
      %p718 = scmp.ne.s32.totalorder %s701, %s717
      %p719 = scmp.eq.s32.totalorder %s74, 0
      %p720 = por %p718, %p719
      %p721 = scmp.le.s32.totalorder 1, %s68
      %p722 = scmp.lt.s32.totalorder %s68, 3
      %p723 = pnand %p721, %p722
      %p724 = pneg %p723
      // Predicated region
      $region9: #{esm2_forward.1} parent=5 // pred_check
        _
      $region10: #{esm2_forward.1} parent=5 // pred_check_branch
        %726 = sbr.rel (%p723) target = $region12
      $region11: #{esm2_forward.1} parent=5 // pred_region
        %s727 = ssub.s32 %s68, 1
        // Predicated region
        $region13: #{esm2_forward.1} parent=11 // pred_check
          %p728 = pneg %p141
        $region14: #{esm2_forward.1} parent=11 // pred_check_branch
          %730 = sbr.rel (%p728) target = $region16
        $region15: #{esm2_forward.1} parent=11 // pred_region
          _
        $region16: #{esm2_forward.1} parent=11 // pred_fallthru
          _
        // Predicated region
        $region17: #{esm2_forward.1} parent=11 // pred_check
          %p731 = pneg %p162
        $region18: #{esm2_forward.1} parent=11 // pred_check_branch
          %733 = sbr.rel (%p731) target = $region20
        $region19: #{esm2_forward.1} parent=11 // pred_region
          _
        $region20: #{esm2_forward.1} parent=11 // pred_fallthru
          _
        // Predicated region
        $region21: #{esm2_forward.1} parent=11 // pred_check
          %p734 = pneg %p183
        $region22: #{esm2_forward.1} parent=11 // pred_check_branch
          %736 = sbr.rel (%p734) target = $region24
        $region23: #{esm2_forward.1} parent=11 // pred_region
          _
        $region24: #{esm2_forward.1} parent=11 // pred_fallthru
          _
        // Predicated region
        $region25: #{esm2_forward.1} parent=11 // pred_check
          %p737 = pneg %p204
        $region26: #{esm2_forward.1} parent=11 // pred_check_branch
          %739 = sbr.rel (%p737) target = $region28
        $region27: #{esm2_forward.1} parent=11 // pred_region
          _
        $region28: #{esm2_forward.1} parent=11 // pred_fallthru
          _
        // Predicated region
        $region29: #{esm2_forward.1} parent=11 // pred_check
          %p740 = pneg %p225
        $region30: #{esm2_forward.1} parent=11 // pred_check_branch
          %742 = sbr.rel (%p740) target = $region32
        $region31: #{esm2_forward.1} parent=11 // pred_region
          _
        $region32: #{esm2_forward.1} parent=11 // pred_fallthru
          _
        // Predicated region
        $region33: #{esm2_forward.1} parent=11 // pred_check
          %p743 = pneg %p246
        $region34: #{esm2_forward.1} parent=11 // pred_check_branch
          %745 = sbr.rel (%p743) target = $region36
        $region35: #{esm2_forward.1} parent=11 // pred_region
          _
        $region36: #{esm2_forward.1} parent=11 // pred_fallthru
          _
        // Predicated region
        $region37: #{esm2_forward.1} parent=11 // pred_check
          %p746 = pneg %p267
        $region38: #{esm2_forward.1} parent=11 // pred_check_branch
          %748 = sbr.rel (%p746) target = $region40
        $region39: #{esm2_forward.1} parent=11 // pred_region
          _
        $region40: #{esm2_forward.1} parent=11 // pred_fallthru
          _
        // Predicated region
        $region41: #{esm2_forward.1} parent=11 // pred_check
          %p749 = pneg %p288
        $region42: #{esm2_forward.1} parent=11 // pred_check_branch
          %751 = sbr.rel (%p749) target = $region44
        $region43: #{esm2_forward.1} parent=11 // pred_region
          _
        $region44: #{esm2_forward.1} parent=11 // pred_fallthru
          _
        // Predicated region
        $region45: #{esm2_forward.1} parent=11 // pred_check
          %p752 = pneg %p309
        $region46: #{esm2_forward.1} parent=11 // pred_check_branch
          %754 = sbr.rel (%p752) target = $region48
        $region47: #{esm2_forward.1} parent=11 // pred_region
          _
        $region48: #{esm2_forward.1} parent=11 // pred_fallthru
          _
        // Predicated region
        $region49: #{esm2_forward.1} parent=11 // pred_check
          %p755 = pneg %p330
        $region50: #{esm2_forward.1} parent=11 // pred_check_branch
          %757 = sbr.rel (%p755) target = $region52
        $region51: #{esm2_forward.1} parent=11 // pred_region
          _
        $region52: #{esm2_forward.1} parent=11 // pred_fallthru
          _
        // Predicated region
        $region53: #{esm2_forward.1} parent=11 // pred_check
          %p758 = pneg %p351
        $region54: #{esm2_forward.1} parent=11 // pred_check_branch
          %760 = sbr.rel (%p758) target = $region56
        $region55: #{esm2_forward.1} parent=11 // pred_region
          _
        $region56: #{esm2_forward.1} parent=11 // pred_fallthru
          _
        // Predicated region
        $region57: #{esm2_forward.1} parent=11 // pred_check
          %p761 = pneg %p372
        $region58: #{esm2_forward.1} parent=11 // pred_check_branch
          %763 = sbr.rel (%p761) target = $region60
        $region59: #{esm2_forward.1} parent=11 // pred_region
          _
        $region60: #{esm2_forward.1} parent=11 // pred_fallthru
          _
        // Predicated region
        $region61: #{esm2_forward.1} parent=11 // pred_check
          %p764 = pneg %p393
        $region62: #{esm2_forward.1} parent=11 // pred_check_branch
          %766 = sbr.rel (%p764) target = $region64
        $region63: #{esm2_forward.1} parent=11 // pred_region
          _
        $region64: #{esm2_forward.1} parent=11 // pred_fallthru
          _
        // Predicated region
        $region65: #{esm2_forward.1} parent=11 // pred_check
          %p767 = pneg %p414
        $region66: #{esm2_forward.1} parent=11 // pred_check_branch
          %769 = sbr.rel (%p767) target = $region68
        $region67: #{esm2_forward.1} parent=11 // pred_region
          _
        $region68: #{esm2_forward.1} parent=11 // pred_fallthru
          _
        // Predicated region
        $region69: #{esm2_forward.1} parent=11 // pred_check
          %p770 = pneg %p435
        $region70: #{esm2_forward.1} parent=11 // pred_check_branch
          %772 = sbr.rel (%p770) target = $region72
        $region71: #{esm2_forward.1} parent=11 // pred_region
          _
        $region72: #{esm2_forward.1} parent=11 // pred_fallthru
          _
        // Predicated region
        $region73: #{esm2_forward.1} parent=11 // pred_check
          %p773 = pneg %p456
        $region74: #{esm2_forward.1} parent=11 // pred_check_branch
          %775 = sbr.rel (%p773) target = $region76
        $region75: #{esm2_forward.1} parent=11 // pred_region
          _
        $region76: #{esm2_forward.1} parent=11 // pred_fallthru
          _
        // Predicated region
        $region77: #{esm2_forward.1} parent=11 // pred_check
          %p776 = pneg %p477
        $region78: #{esm2_forward.1} parent=11 // pred_check_branch
          %778 = sbr.rel (%p776) target = $region80
        $region79: #{esm2_forward.1} parent=11 // pred_region
          _
        $region80: #{esm2_forward.1} parent=11 // pred_fallthru
          _
        // Predicated region
        $region81: #{esm2_forward.1} parent=11 // pred_check
          %p779 = pneg %p498
        $region82: #{esm2_forward.1} parent=11 // pred_check_branch
          %781 = sbr.rel (%p779) target = $region84
        $region83: #{esm2_forward.1} parent=11 // pred_region
          _
        $region84: #{esm2_forward.1} parent=11 // pred_fallthru
          _
        // Predicated region
        $region85: #{esm2_forward.1} parent=11 // pred_check
          %p782 = pneg %p519
        $region86: #{esm2_forward.1} parent=11 // pred_check_branch
          %784 = sbr.rel (%p782) target = $region88
        $region87: #{esm2_forward.1} parent=11 // pred_region
          _
        $region88: #{esm2_forward.1} parent=11 // pred_fallthru
          _
        // Predicated region
        $region89: #{esm2_forward.1} parent=11 // pred_check
          %p785 = pneg %p540
        $region90: #{esm2_forward.1} parent=11 // pred_check_branch
          %787 = sbr.rel (%p785) target = $region92
        $region91: #{esm2_forward.1} parent=11 // pred_region
          _
        $region92: #{esm2_forward.1} parent=11 // pred_fallthru
          _
        // Predicated region
        $region93: #{esm2_forward.1} parent=11 // pred_check
          %p788 = pneg %p561
        $region94: #{esm2_forward.1} parent=11 // pred_check_branch
          %790 = sbr.rel (%p788) target = $region96
        $region95: #{esm2_forward.1} parent=11 // pred_region
          _
        $region96: #{esm2_forward.1} parent=11 // pred_fallthru
          _
        // Predicated region
        $region97: #{esm2_forward.1} parent=11 // pred_check
          %p791 = pneg %p582
        $region98: #{esm2_forward.1} parent=11 // pred_check_branch
          %793 = sbr.rel (%p791) target = $region100
        $region99: #{esm2_forward.1} parent=11 // pred_region
          _
        $region100: #{esm2_forward.1} parent=11 // pred_fallthru
          _
        // Predicated region
        $region101: #{esm2_forward.1} parent=11 // pred_check
          %p794 = pneg %p603
        $region102: #{esm2_forward.1} parent=11 // pred_check_branch
          %796 = sbr.rel (%p794) target = $region104
        $region103: #{esm2_forward.1} parent=11 // pred_region
          _
        $region104: #{esm2_forward.1} parent=11 // pred_fallthru
          _
        // Predicated region
        $region105: #{esm2_forward.1} parent=11 // pred_check
          %p797 = pneg %p624
        $region106: #{esm2_forward.1} parent=11 // pred_check_branch
          %799 = sbr.rel (%p797) target = $region108
        $region107: #{esm2_forward.1} parent=11 // pred_region
          _
        $region108: #{esm2_forward.1} parent=11 // pred_fallthru
          _
        // Predicated region
        $region109: #{esm2_forward.1} parent=11 // pred_check
          %p800 = pneg %p645
        $region110: #{esm2_forward.1} parent=11 // pred_check_branch
          %802 = sbr.rel (%p800) target = $region112
        $region111: #{esm2_forward.1} parent=11 // pred_region
          _
        $region112: #{esm2_forward.1} parent=11 // pred_fallthru
          _
        // Predicated region
        $region113: #{esm2_forward.1} parent=11 // pred_check
          %p803 = pneg %p666
        $region114: #{esm2_forward.1} parent=11 // pred_check_branch
          %805 = sbr.rel (%p803) target = $region116
        $region115: #{esm2_forward.1} parent=11 // pred_region
          _
        $region116: #{esm2_forward.1} parent=11 // pred_fallthru
          _
        // Predicated region
        $region117: #{esm2_forward.1} parent=11 // pred_check
          %p806 = pneg %p687
        $region118: #{esm2_forward.1} parent=11 // pred_check_branch
          %808 = sbr.rel (%p806) target = $region120
        $region119: #{esm2_forward.1} parent=11 // pred_region
          _
        $region120: #{esm2_forward.1} parent=11 // pred_fallthru
          _
      $region12: #{esm2_forward.1} parent=5 // pred_fallthru
        _
      %p809 = scmp.lt.s32.totalorder %s68, 2
      // Predicated region
      $region121: #{esm2_forward.1} parent=5 // pred_check
        %p810 = pneg %p809
      $region122: #{esm2_forward.1} parent=5 // pred_check_branch
        %812 = sbr.rel (%p810) target = $region124
      $region123: #{esm2_forward.1} parent=5 // pred_region
        // Predicated region
        $region125: #{esm2_forward.1} parent=123 // pred_check
          %p813 = pneg %p88
        $region126: #{esm2_forward.1} parent=123 // pred_check_branch
          %815 = sbr.rel (%p813) target = $region128
        $region127: #{esm2_forward.1} parent=123 // pred_region
          %p816 = scmp.lt.s32.totalorder %s68, 1
          %s817 = scalar_select %p816, %s68, 1
          %s818 = smul.addr %s817, 8
          %s819 = scalar_lea.vmem %s1, %s818
        $region128: #{esm2_forward.1} parent=123 // pred_fallthru
          _
        // Predicated region
        $region129: #{esm2_forward.1} parent=123 // pred_check
          %p820 = pneg %p114
        $region130: #{esm2_forward.1} parent=123 // pred_check_branch
          %822 = sbr.rel (%p820) target = $region132
        $region131: #{esm2_forward.1} parent=123 // pred_region
          %p823 = scmp.lt.s32.totalorder %s68, 1
          %s824 = scalar_select %p823, %s68, 1
          %s825 = scalar_lea.vmem %s3, %s824
        $region132: #{esm2_forward.1} parent=123 // pred_fallthru
          _
      $region124: #{esm2_forward.1} parent=5 // pred_fallthru
        _
      %p826 = scmp.le.s32.totalorder 1, %s68
      %p827 = scmp.lt.s32.totalorder %s68, 3
      %p828 = pnand %p826, %p827
      %p829 = pneg %p828
      // Predicated region
      $region133: #{esm2_forward.1} parent=5 // pred_check
        _
      $region134: #{esm2_forward.1} parent=5 // pred_check_branch
        %831 = sbr.rel (%p828) target = $region136
      $region135: #{esm2_forward.1} parent=5 // pred_region
        %s832 = ssub.s32 %s68, 1
        %p833 = scmp.lt.s32.totalorder %s73, 1
        %s834 = scalar_select %p833, %s73, 1
        %s835 = smul.addr %s834, 8
        %s836 = scalar_lea.vmem %s1, %s835
        %p837 = pneg %p94
        %p838 = pneg %p91
        %p839 = scmp.lt.s32.totalorder %s73, 1
        %s840 = scalar_select %p839, %s73, 1
        %s841 = scalar_lea.vmem %s3, %s840
        %p842 = pneg %p120
        %p843 = pneg %p117
        %p844 = pneg %p141
        %p845 = pneg %p138
        %p846 = pneg %p162
        %p847 = pneg %p159
        %p848 = pneg %p183
        %p849 = pneg %p180
        %p850 = pneg %p204
        %p851 = pneg %p201
        %p852 = pneg %p225
        %p853 = pneg %p222
        %p854 = pneg %p246
        %p855 = pneg %p243
        %p856 = pneg %p267
        %p857 = pneg %p264
        %p858 = pneg %p288
        %p859 = pneg %p285
        %p860 = pneg %p309
        %p861 = pneg %p306
        %p862 = pneg %p330
        %p863 = pneg %p327
        %p864 = pneg %p351
        %p865 = pneg %p348
        %p866 = pneg %p372
        %p867 = pneg %p369
        %p868 = pneg %p393
        %p869 = pneg %p390
        %p870 = pneg %p414
        %p871 = pneg %p411
        %p872 = pneg %p435
        %p873 = pneg %p432
        %p874 = pneg %p456
        %p875 = pneg %p453
        %p876 = pneg %p477
        %p877 = pneg %p474
        %p878 = pneg %p498
        %p879 = pneg %p495
        %p880 = pneg %p519
        %p881 = pneg %p516
        %p882 = pneg %p540
        %p883 = pneg %p537
        %p884 = pneg %p561
        %p885 = pneg %p558
        %p886 = pneg %p582
        %p887 = pneg %p579
        %p888 = pneg %p603
        %p889 = pneg %p600
        %p890 = pneg %p624
        %p891 = pneg %p621
        %p892 = pneg %p645
        %p893 = pneg %p642
        %p894 = pneg %p666
        %p895 = pneg %p663
        %p896 = pneg %p687
        %p897 = pneg %p684
        %p898 = pneg %p713
        %p899 = pneg %p710
        %s900 = sand.u32 %s700, 1
        %s901 = scalar_lea.sflag [#allocation3], %s900
        %s902 = sand.u32 %s700, 1
        %s903 = smul.addr %s902, 8
        %s904 = scalar_lea.vmem [#allocation2], %s903
        %p905 = scmp.lt.s32.totalorder %s73, 1
        %s906 = scalar_select %p905, %s73, 1
        %s907 = smul.addr %s906, 8
        %s908 = scalar_lea.vmem %s1, %s907
        %p909 = scmp.lt.s32.totalorder %s73, 1
        %s910 = scalar_select %p909, %s73, 1
        %s911 = scalar_lea.vmem %s3, %s910
        %v912 = vld [vmem:[%s908] sm:$0xff]
        %v913 = vld [vmem:[%s911] sm:$0x1]
        %v914 = vld [vmem:[%s5] sm:$0xff]
        %v915 = vld [vmem:[%s7] sm:$0xff]
        %v916 = vld [vmem:[%s9] sm:$0xff]
        %v917 = vld [vmem:[%s9 + $0x8] sm:$0xff]
        %v918 = vld [vmem:[%s9 + $0x10] sm:$0xff]
        %v919 = vld [vmem:[%s9 + $0x18] sm:$0xff]
        %v920 = vld [vmem:[%s11] sm:$0x1]
        %v921 = vld [vmem:[%s13] sm:$0x1]
        %vm922 = vcmask 261120
        %v923 = vsel %vm922, %v912, 0.0
        %924 = vadd.xlane.f32.xlu0 %v923
        %v925 = vpop.xlane.xlu0 %924
        %v926 = vrcp.pop 32.0
        %v927 = vmul.f32 %v925, %v926
        %v928 = vsub.f32 %v912, %v927
        %v929 = vmul.f32 %v928, %v928
        %v930 = vsel %vm922, %v929, 0.0
        %931 = vadd.xlane.f32.xlu0 %v930
        %v932 = vpop.xlane.xlu0 %931
        %v933 = vmul.f32 %v932, %v926
        %v934 = vadd.f32 %v933, 1e-05
        %v935 = vrsqrt.pop %v934
        %v936 = vmul.f32 %v928, %v935
        %v938 = vlaneseq
        %v939 = vshrl.u32 %v938, 7
        %v940 = vsub.s32 0, %v939
        %v941 = vrot.slane %v920, %v940
        %v943 = vmul.f32 %v936, %v941
        %v945 = vlaneseq
        %v946 = vshrl.u32 %v945, 7
        %v947 = vsub.s32 0, %v946
        %v948 = vrot.slane %v921, %v947
        %v950 = vadd.f32 %v943, %v948
        %v951 = vld [vmem:[%s15] sm:$0xff]
        %v952 = vld [vmem:[%s15 + $0x8] sm:$0xff]
        %v953 = vld [vmem:[%s15 + $0x10] sm:$0xff]
        %v954 = vld [vmem:[%s15 + $0x18] sm:$0xff]
        %v955 = vld [vmem:[%s17] sm:$0x1]
        %v957 = vlaneseq
        %v958 = vshrl.u32 %v957, 7
        %v959 = vsub.s32 0, %v958
        %v960 = vrot.slane %v955, %v959
        %v963 = vsel %vm922, %v950, 0
        %965 = vmatprep.subr.mxu0 0.0
        %966 = vmatpush1.msra.mxu0 0.0
        %967 = vmatprep.subr.mxu0 0.0
        %968 = vmatpush1.msra.mxu0 0.0
        %969 = vmatprep.subr.mxu0 0.0
        %970 = vmatpush1.msra.mxu0 0.0
        %971 = vmatprep.subr.mxu0 0.0
        %972 = vmatpush1.msra.mxu0 0.0
        %973 = vmatprep.subr.mxu0 0.0
        %974 = vmatpush1.msra.mxu0 0.0
        %975 = vmatprep.subr.mxu0 0.0
        %976 = vmatpush1.msra.mxu0 0.0
        %977 = vmatprep.subr.mxu0 0.0
        %978 = vmatpush1.msra.mxu0 0.0
        %979 = vmatprep.subr.mxu0 0.0
        %980 = vmatpush1.msra.mxu0 0.0
        %981 = vmatprep.subr.mxu0 0.0
        %982 = vmatpush1.msra.mxu0 0.0
        %983 = vmatprep.subr.mxu0 0.0
        %984 = vmatpush1.msra.mxu0 0.0
        %985 = vmatprep.subr.mxu0 0.0
        %986 = vmatpush1.msra.mxu0 0.0
        %987 = vmatprep.subr.mxu0 0.0
        %988 = vmatpush1.msra.mxu0 0.0
        %989 = vmatprep.subr.mxu0 0.0
        %990 = vmatpush1.msra.mxu0 %v954
        %991 = vmatprep.subr.mxu0 0.0
        %992 = vmatpush1.msra.mxu0 %v953
        %993 = vmatprep.subr.mxu0 0.0
        %994 = vmatpush1.msra.mxu0 %v952
        %995 = vmatprep.subr.mxu0 0.0
        %996 = vmatpush1.msra.mxu0 %v951
        %997 = vmatprep.subr.mxu0 0.0
        %998 = vmatpush2.msra.mxu0 0.0
        %999 = vmatprep.subr.mxu0 0.0
        %1000 = vmatpush2.msra.mxu0 0.0
        %1001 = vmatprep.subr.mxu0 0.0
        %1002 = vmatpush2.msra.mxu0 0.0
        %1003 = vmatprep.subr.mxu0 0.0
        %1004 = vmatpush2.msra.mxu0 0.0
        %1005 = vmatprep.subr.mxu0 0.0
        %1006 = vmatpush2.msra.mxu0 0.0
        %1007 = vmatprep.subr.mxu0 0.0
        %1008 = vmatpush2.msra.mxu0 0.0
        %1009 = vmatprep.subr.mxu0 0.0
        %1010 = vmatpush2.msra.mxu0 0.0
        %1011 = vmatprep.subr.mxu0 0.0
        %1012 = vmatpush2.msra.mxu0 0.0
        %1013 = vmatprep.subr.mxu0 0.0
        %1014 = vmatpush2.msra.mxu0 0.0
        %1015 = vmatprep.subr.mxu0 0.0
        %1016 = vmatpush2.msra.mxu0 0.0
        %1017 = vmatprep.subr.mxu0 0.0
        %1018 = vmatpush2.msra.mxu0 0.0
        %1019 = vmatprep.subr.mxu0 0.0
        %1020 = vmatpush2.msra.mxu0 0.0
        %1021 = vmatprep.subr.mxu0 0.0
        %1022 = vmatpush2.msra.mxu0 0.0
        %1023 = vmatprep.subr.mxu0 0.0
        %1024 = vmatpush2.msra.mxu0 0.0
        %1025 = vmatprep.subr.mxu0 0.0
        %1026 = vmatpush2.msra.mxu0 0.0
        %1027 = vmatprep.subr.mxu0 0.0
        %1028 = vmatpush2.msra.mxu0 0.0
        %1029 = vmatprep.mubr.f32.mxu0 0.0
        %1030 = vmatmul.mubr.f32.gmra.mxu0 %v963
        %v1031 = vpop.f32.mrf.mxu0
        %v1032 = vadd.f32 %v960, %v1031
        %v1033 = vpop.f32.mrf.mxu0
        %1034 = vdwg.mxu0
        %v1035 = vmul.f32 %v1032, 0.35355338
        %v1036 = vld [vmem:[%s19] sm:$0xff]
        %v1037 = vld [vmem:[%s19 + $0x8] sm:$0xff]
        %v1038 = vld [vmem:[%s19 + $0x10] sm:$0xff]
        %v1039 = vld [vmem:[%s19 + $0x18] sm:$0xff]
        %v1040 = vld [vmem:[%s21] sm:$0x1]
        %v1042 = vlaneseq
        %v1043 = vshrl.u32 %v1042, 7
        %v1044 = vsub.s32 0, %v1043
        %v1045 = vrot.slane %v1040, %v1044
        %1047 = vmatprep.subr.mxu0 0.0
        %1048 = vmatpush1.msra.mxu0 0.0
        %1049 = vmatprep.subr.mxu0 0.0
        %1050 = vmatpush1.msra.mxu0 0.0
        %1051 = vmatprep.subr.mxu0 0.0
        %1052 = vmatpush1.msra.mxu0 0.0
        %1053 = vmatprep.subr.mxu0 0.0
        %1054 = vmatpush1.msra.mxu0 0.0
        %1055 = vmatprep.subr.mxu0 0.0
        %1056 = vmatpush1.msra.mxu0 0.0
        %1057 = vmatprep.subr.mxu0 0.0
        %1058 = vmatpush1.msra.mxu0 0.0
        %1059 = vmatprep.subr.mxu0 0.0
        %1060 = vmatpush1.msra.mxu0 0.0
        %1061 = vmatprep.subr.mxu0 0.0
        %1062 = vmatpush1.msra.mxu0 0.0
        %1063 = vmatprep.subr.mxu0 0.0
        %1064 = vmatpush1.msra.mxu0 0.0
        %1065 = vmatprep.subr.mxu0 0.0
        %1066 = vmatpush1.msra.mxu0 0.0
        %1067 = vmatprep.subr.mxu0 0.0
        %1068 = vmatpush1.msra.mxu0 0.0
        %1069 = vmatprep.subr.mxu0 0.0
        %1070 = vmatpush1.msra.mxu0 0.0
        %1071 = vmatprep.subr.mxu0 0.0
        %1072 = vmatpush1.msra.mxu0 %v1039
        %1073 = vmatprep.subr.mxu0 0.0
        %1074 = vmatpush1.msra.mxu0 %v1038
        %1075 = vmatprep.subr.mxu0 0.0
        %1076 = vmatpush1.msra.mxu0 %v1037
        %1077 = vmatprep.subr.mxu0 0.0
        %1078 = vmatpush1.msra.mxu0 %v1036
        %1079 = vmatprep.subr.mxu0 0.0
        %1080 = vmatpush2.msra.mxu0 0.0
        %1081 = vmatprep.subr.mxu0 0.0
        %1082 = vmatpush2.msra.mxu0 0.0
        %1083 = vmatprep.subr.mxu0 0.0
        %1084 = vmatpush2.msra.mxu0 0.0
        %1085 = vmatprep.subr.mxu0 0.0
        %1086 = vmatpush2.msra.mxu0 0.0
        %1087 = vmatprep.subr.mxu0 0.0
        %1088 = vmatpush2.msra.mxu0 0.0
        %1089 = vmatprep.subr.mxu0 0.0
        %1090 = vmatpush2.msra.mxu0 0.0
        %1091 = vmatprep.subr.mxu0 0.0
        %1092 = vmatpush2.msra.mxu0 0.0
        %1093 = vmatprep.subr.mxu0 0.0
        %1094 = vmatpush2.msra.mxu0 0.0
        %1095 = vmatprep.subr.mxu0 0.0
        %1096 = vmatpush2.msra.mxu0 0.0
        %1097 = vmatprep.subr.mxu0 0.0
        %1098 = vmatpush2.msra.mxu0 0.0
        %1099 = vmatprep.subr.mxu0 0.0
        %1100 = vmatpush2.msra.mxu0 0.0
        %1101 = vmatprep.subr.mxu0 0.0
        %1102 = vmatpush2.msra.mxu0 0.0
        %1103 = vmatprep.subr.mxu0 0.0
        %1104 = vmatpush2.msra.mxu0 0.0
        %1105 = vmatprep.subr.mxu0 0.0
        %1106 = vmatpush2.msra.mxu0 0.0
        %1107 = vmatprep.subr.mxu0 0.0
        %1108 = vmatpush2.msra.mxu0 0.0
        %1109 = vmatprep.subr.mxu0 0.0
        %1110 = vmatpush2.msra.mxu0 0.0
        %1111 = vmatprep.mubr.f32.mxu0 0.0
        %1112 = vmatmul.mubr.f32.gmra.mxu0 %v963
        %v1113 = vpop.f32.mrf.mxu0
        %v1114 = vadd.f32 %v1045, %v1113
        %v1115 = vpop.f32.mrf.mxu0
        %1116 = vdwg.mxu0
        %v1117 = vld [vmem:[%s23] sm:$0xff]
        %v1118 = vld [vmem:[%s23 + $0x8] sm:$0xff]
        %v1119 = vld [vmem:[%s23 + $0x10] sm:$0xff]
        %v1120 = vld [vmem:[%s23 + $0x18] sm:$0xff]
        %v1121 = vld [vmem:[%s25] sm:$0x1]
        %v1123 = vlaneseq
        %v1124 = vshrl.u32 %v1123, 7
        %v1125 = vsub.s32 0, %v1124
        %v1126 = vrot.slane %v1121, %v1125
        %1128 = vmatprep.subr.mxu0 0.0
        %1129 = vmatpush1.msra.mxu0 0.0
        %1130 = vmatprep.subr.mxu0 0.0
        %1131 = vmatpush1.msra.mxu0 0.0
        %1132 = vmatprep.subr.mxu0 0.0
        %1133 = vmatpush1.msra.mxu0 0.0
        %1134 = vmatprep.subr.mxu0 0.0
        %1135 = vmatpush1.msra.mxu0 0.0
        %1136 = vmatprep.subr.mxu0 0.0
        %1137 = vmatpush1.msra.mxu0 0.0
        %1138 = vmatprep.subr.mxu0 0.0
        %1139 = vmatpush1.msra.mxu0 0.0
        %1140 = vmatprep.subr.mxu0 0.0
        %1141 = vmatpush1.msra.mxu0 0.0
        %1142 = vmatprep.subr.mxu0 0.0
        %1143 = vmatpush1.msra.mxu0 0.0
        %1144 = vmatprep.subr.mxu0 0.0
        %1145 = vmatpush1.msra.mxu0 0.0
        %1146 = vmatprep.subr.mxu0 0.0
        %1147 = vmatpush1.msra.mxu0 0.0
        %1148 = vmatprep.subr.mxu0 0.0
        %1149 = vmatpush1.msra.mxu0 0.0
        %1150 = vmatprep.subr.mxu0 0.0
        %1151 = vmatpush1.msra.mxu0 0.0
        %1152 = vmatprep.subr.mxu0 0.0
        %1153 = vmatpush1.msra.mxu0 %v1120
        %1154 = vmatprep.subr.mxu0 0.0
        %1155 = vmatpush1.msra.mxu0 %v1119
        %1156 = vmatprep.subr.mxu0 0.0
        %1157 = vmatpush1.msra.mxu0 %v1118
        %1158 = vmatprep.subr.mxu0 0.0
        %1159 = vmatpush1.msra.mxu0 %v1117
        %1160 = vmatprep.subr.mxu0 0.0
        %1161 = vmatpush2.msra.mxu0 0.0
        %1162 = vmatprep.subr.mxu0 0.0
        %1163 = vmatpush2.msra.mxu0 0.0
        %1164 = vmatprep.subr.mxu0 0.0
        %1165 = vmatpush2.msra.mxu0 0.0
        %1166 = vmatprep.subr.mxu0 0.0
        %1167 = vmatpush2.msra.mxu0 0.0
        %1168 = vmatprep.subr.mxu0 0.0
        %1169 = vmatpush2.msra.mxu0 0.0
        %1170 = vmatprep.subr.mxu0 0.0
        %1171 = vmatpush2.msra.mxu0 0.0
        %1172 = vmatprep.subr.mxu0 0.0
        %1173 = vmatpush2.msra.mxu0 0.0
        %1174 = vmatprep.subr.mxu0 0.0
        %1175 = vmatpush2.msra.mxu0 0.0
        %1176 = vmatprep.subr.mxu0 0.0
        %1177 = vmatpush2.msra.mxu0 0.0
        %1178 = vmatprep.subr.mxu0 0.0
        %1179 = vmatpush2.msra.mxu0 0.0
        %1180 = vmatprep.subr.mxu0 0.0
        %1181 = vmatpush2.msra.mxu0 0.0
        %1182 = vmatprep.subr.mxu0 0.0
        %1183 = vmatpush2.msra.mxu0 0.0
        %1184 = vmatprep.subr.mxu0 0.0
        %1185 = vmatpush2.msra.mxu0 0.0
        %1186 = vmatprep.subr.mxu0 0.0
        %1187 = vmatpush2.msra.mxu0 0.0
        %1188 = vmatprep.subr.mxu0 0.0
        %1189 = vmatpush2.msra.mxu0 0.0
        %1190 = vmatprep.subr.mxu0 0.0
        %1191 = vmatpush2.msra.mxu0 0.0
        %1192 = vmatprep.mubr.f32.mxu0 0.0
        %1193 = vmatmul.mubr.f32.gmra.mxu0 %v963
        %v1194 = vpop.f32.mrf.mxu0
        %v1195 = vadd.f32 %v1126, %v1194
        %v1196 = vpop.f32.mrf.mxu0
        %1197 = vdwg.mxu0
        %v1198 = vmul.f32 %v1035, %v914
        %v1200 = vsel %vm922, %v1035, 0
        %1202 = vmatprep.subr.mxu0 0.0
        %1203 = vmatpush1.msra.mxu0 0.0
        %1204 = vmatprep.subr.mxu0 0.0
        %1205 = vmatpush1.msra.mxu0 0.0
        %1206 = vmatprep.subr.mxu0 0.0
        %1207 = vmatpush1.msra.mxu0 0.0
        %1208 = vmatprep.subr.mxu0 0.0
        %1209 = vmatpush1.msra.mxu0 0.0
        %1210 = vmatprep.subr.mxu0 0.0
        %1211 = vmatpush1.msra.mxu0 0.0
        %1212 = vmatprep.subr.mxu0 0.0
        %1213 = vmatpush1.msra.mxu0 0.0
        %1214 = vmatprep.subr.mxu0 0.0
        %1215 = vmatpush1.msra.mxu0 0.0
        %1216 = vmatprep.subr.mxu0 0.0
        %1217 = vmatpush1.msra.mxu0 0.0
        %1218 = vmatprep.subr.mxu0 0.0
        %1219 = vmatpush1.msra.mxu0 0.0
        %1220 = vmatprep.subr.mxu0 0.0
        %1221 = vmatpush1.msra.mxu0 0.0
        %1222 = vmatprep.subr.mxu0 0.0
        %1223 = vmatpush1.msra.mxu0 0.0
        %1224 = vmatprep.subr.mxu0 0.0
        %1225 = vmatpush1.msra.mxu0 0.0
        %1226 = vmatprep.subr.mxu0 0.0
        %1227 = vmatpush1.msra.mxu0 %v919
        %1228 = vmatprep.subr.mxu0 0.0
        %1229 = vmatpush1.msra.mxu0 %v918
        %1230 = vmatprep.subr.mxu0 0.0
        %1231 = vmatpush1.msra.mxu0 %v917
        %1232 = vmatprep.subr.mxu0 0.0
        %1233 = vmatpush1.msra.mxu0 %v916
        %1234 = vmatprep.subr.mxu0 0.0
        %1235 = vmatpush2.msra.mxu0 0.0
        %1236 = vmatprep.subr.mxu0 0.0
        %1237 = vmatpush2.msra.mxu0 0.0
        %1238 = vmatprep.subr.mxu0 0.0
        %1239 = vmatpush2.msra.mxu0 0.0
        %1240 = vmatprep.subr.mxu0 0.0
        %1241 = vmatpush2.msra.mxu0 0.0
        %1242 = vmatprep.subr.mxu0 0.0
        %1243 = vmatpush2.msra.mxu0 0.0
        %1244 = vmatprep.subr.mxu0 0.0
        %1245 = vmatpush2.msra.mxu0 0.0
        %1246 = vmatprep.subr.mxu0 0.0
        %1247 = vmatpush2.msra.mxu0 0.0
        %1248 = vmatprep.subr.mxu0 0.0
        %1249 = vmatpush2.msra.mxu0 0.0
        %1250 = vmatprep.subr.mxu0 0.0
        %1251 = vmatpush2.msra.mxu0 0.0
        %1252 = vmatprep.subr.mxu0 0.0
        %1253 = vmatpush2.msra.mxu0 0.0
        %1254 = vmatprep.subr.mxu0 0.0
        %1255 = vmatpush2.msra.mxu0 0.0
        %1256 = vmatprep.subr.mxu0 0.0
        %1257 = vmatpush2.msra.mxu0 0.0
        %1258 = vmatprep.subr.mxu0 0.0
        %1259 = vmatpush2.msra.mxu0 0.0
        %1260 = vmatprep.subr.mxu0 0.0
        %1261 = vmatpush2.msra.mxu0 0.0
        %1262 = vmatprep.subr.mxu0 0.0
        %1263 = vmatpush2.msra.mxu0 0.0
        %1264 = vmatprep.subr.mxu0 0.0
        %1265 = vmatpush2.msra.mxu0 0.0
        %1266 = vmatprep.mubr.f32.mxu0 0.0
        %1267 = vmatmul.mubr.f32.gmra.mxu0 %v1200
        %v1268 = vpop.f32.mrf.mxu0
        %v1269 = vadd.f32 0.0, %v1268
        %v1270 = vpop.f32.mrf.mxu0
        %1271 = vdwg.mxu0
        %v1272 = vmul.f32 %v1269, %v915
        %v1273 = vadd.f32 %v1198, %v1272
        %v1274 = vmul.f32 %v1114, %v914
        %v1276 = vsel %vm922, %v1114, 0
        %1278 = vmatprep.subr.mxu0 0.0
        %1279 = vmatpush1.msra.mxu0 0.0
        %1280 = vmatprep.subr.mxu0 0.0
        %1281 = vmatpush1.msra.mxu0 0.0
        %1282 = vmatprep.subr.mxu0 0.0
        %1283 = vmatpush1.msra.mxu0 0.0
        %1284 = vmatprep.subr.mxu0 0.0
        %1285 = vmatpush1.msra.mxu0 0.0
        %1286 = vmatprep.subr.mxu0 0.0
        %1287 = vmatpush1.msra.mxu0 0.0
        %1288 = vmatprep.subr.mxu0 0.0
        %1289 = vmatpush1.msra.mxu0 0.0
        %1290 = vmatprep.subr.mxu0 0.0
        %1291 = vmatpush1.msra.mxu0 0.0
        %1292 = vmatprep.subr.mxu0 0.0
        %1293 = vmatpush1.msra.mxu0 0.0
        %1294 = vmatprep.subr.mxu0 0.0
        %1295 = vmatpush1.msra.mxu0 0.0
        %1296 = vmatprep.subr.mxu0 0.0
        %1297 = vmatpush1.msra.mxu0 0.0
        %1298 = vmatprep.subr.mxu0 0.0
        %1299 = vmatpush1.msra.mxu0 0.0
        %1300 = vmatprep.subr.mxu0 0.0
        %1301 = vmatpush1.msra.mxu0 0.0
        %1302 = vmatprep.subr.mxu0 0.0
        %1303 = vmatpush1.msra.mxu0 %v919
        %1304 = vmatprep.subr.mxu0 0.0
        %1305 = vmatpush1.msra.mxu0 %v918
        %1306 = vmatprep.subr.mxu0 0.0
        %1307 = vmatpush1.msra.mxu0 %v917
        %1308 = vmatprep.subr.mxu0 0.0
        %1309 = vmatpush1.msra.mxu0 %v916
        %1310 = vmatprep.subr.mxu0 0.0
        %1311 = vmatpush2.msra.mxu0 0.0
        %1312 = vmatprep.subr.mxu0 0.0
        %1313 = vmatpush2.msra.mxu0 0.0
        %1314 = vmatprep.subr.mxu0 0.0
        %1315 = vmatpush2.msra.mxu0 0.0
        %1316 = vmatprep.subr.mxu0 0.0
        %1317 = vmatpush2.msra.mxu0 0.0
        %1318 = vmatprep.subr.mxu0 0.0
        %1319 = vmatpush2.msra.mxu0 0.0
        %1320 = vmatprep.subr.mxu0 0.0
        %1321 = vmatpush2.msra.mxu0 0.0
        %1322 = vmatprep.subr.mxu0 0.0
        %1323 = vmatpush2.msra.mxu0 0.0
        %1324 = vmatprep.subr.mxu0 0.0
        %1325 = vmatpush2.msra.mxu0 0.0
        %1326 = vmatprep.subr.mxu0 0.0
        %1327 = vmatpush2.msra.mxu0 0.0
        %1328 = vmatprep.subr.mxu0 0.0
        %1329 = vmatpush2.msra.mxu0 0.0
        %1330 = vmatprep.subr.mxu0 0.0
        %1331 = vmatpush2.msra.mxu0 0.0
        %1332 = vmatprep.subr.mxu0 0.0
        %1333 = vmatpush2.msra.mxu0 0.0
        %1334 = vmatprep.subr.mxu0 0.0
        %1335 = vmatpush2.msra.mxu0 0.0
        %1336 = vmatprep.subr.mxu0 0.0
        %1337 = vmatpush2.msra.mxu0 0.0
        %1338 = vmatprep.subr.mxu0 0.0
        %1339 = vmatpush2.msra.mxu0 0.0
        %1340 = vmatprep.subr.mxu0 0.0
        %1341 = vmatpush2.msra.mxu0 0.0
        %1342 = vmatprep.mubr.f32.mxu0 0.0
        %1343 = vmatmul.mubr.f32.gmra.mxu0 %v1276
        %v1344 = vpop.f32.mrf.mxu0
        %v1345 = vadd.f32 0.0, %v1344
        %v1346 = vpop.f32.mrf.mxu0
        %1347 = vdwg.mxu0
        %v1348 = vmul.f32 %v1345, %v915
        %v1349 = vadd.f32 %v1274, %v1348
        %v1351 = vlaneseq
        %v1352 = vshrl.u32 %v1351, 7
        %v1353 = vsub.s32 0, %v1352
        %v1354 = vrot.slane %v913, %v1353
        %vm1356 = vcmask 64512
        %v1358 = vsel %vm1356, %v1273, 0
        %v1361 = vsel %vm1356, %v1349, 0
        %1363 = vmatprep.subr.mxu0 0.0
        %1364 = vmatpush1.xpose.msra.mxu0 0.0
        %1365 = vmatprep.subr.mxu0 0.0
        %1366 = vmatpush1.xpose.msra.mxu0 0.0
        %1367 = vmatprep.subr.mxu0 0.0
        %1368 = vmatpush1.xpose.msra.mxu0 0.0
        %1369 = vmatprep.subr.mxu0 0.0
        %1370 = vmatpush1.xpose.msra.mxu0 0.0
        %1371 = vmatprep.subr.mxu0 0.0
        %1372 = vmatpush1.xpose.msra.mxu0 0.0
        %1373 = vmatprep.subr.mxu0 0.0
        %1374 = vmatpush1.xpose.msra.mxu0 0.0
        %1375 = vmatprep.subr.mxu0 0.0
        %1376 = vmatpush1.xpose.msra.mxu0 0.0
        %1377 = vmatprep.subr.mxu0 0.0
        %1378 = vmatpush1.xpose.msra.mxu0 0.0
        %1379 = vmatprep.subr.mxu0 0.0
        %1380 = vmatpush1.xpose.msra.mxu0 0.0
        %1381 = vmatprep.subr.mxu0 0.0
        %1382 = vmatpush1.xpose.msra.mxu0 0.0
        %1383 = vmatprep.subr.mxu0 0.0
        %1384 = vmatpush1.xpose.msra.mxu0 0.0
        %1385 = vmatprep.subr.mxu0 0.0
        %1386 = vmatpush1.xpose.msra.mxu0 0.0
        %1387 = vmatprep.subr.mxu0 0.0
        %1388 = vmatpush1.xpose.msra.mxu0 0.0
        %1389 = vmatprep.subr.mxu0 0.0
        %1390 = vmatpush1.xpose.msra.mxu0 0.0
        %1391 = vmatprep.subr.mxu0 0.0
        %1392 = vmatpush1.xpose.msra.mxu0 0.0
        %1393 = vmatprep.subr.mxu0 0.0
        %1394 = vmatpush1.xpose.msra.mxu0 %v1361
        %1395 = vmatprep.subr.mxu0 0.0
        %1396 = vmatpush2.xpose.msra.mxu0 0.0
        %1397 = vmatprep.subr.mxu0 0.0
        %1398 = vmatpush2.xpose.msra.mxu0 0.0
        %1399 = vmatprep.subr.mxu0 0.0
        %1400 = vmatpush2.xpose.msra.mxu0 0.0
        %1401 = vmatprep.subr.mxu0 0.0
        %1402 = vmatpush2.xpose.msra.mxu0 0.0
        %1403 = vmatprep.subr.mxu0 0.0
        %1404 = vmatpush2.xpose.msra.mxu0 0.0
        %1405 = vmatprep.subr.mxu0 0.0
        %1406 = vmatpush2.xpose.msra.mxu0 0.0
        %1407 = vmatprep.subr.mxu0 0.0
        %1408 = vmatpush2.xpose.msra.mxu0 0.0
        %1409 = vmatprep.subr.mxu0 0.0
        %1410 = vmatpush2.xpose.msra.mxu0 0.0
        %1411 = vmatprep.subr.mxu0 0.0
        %1412 = vmatpush2.xpose.msra.mxu0 0.0
        %1413 = vmatprep.subr.mxu0 0.0
        %1414 = vmatpush2.xpose.msra.mxu0 0.0
        %1415 = vmatprep.subr.mxu0 0.0
        %1416 = vmatpush2.xpose.msra.mxu0 0.0
        %1417 = vmatprep.subr.mxu0 0.0
        %1418 = vmatpush2.xpose.msra.mxu0 0.0
        %1419 = vmatprep.subr.mxu0 0.0
        %1420 = vmatpush2.xpose.msra.mxu0 0.0
        %1421 = vmatprep.subr.mxu0 0.0
        %1422 = vmatpush2.xpose.msra.mxu0 0.0
        %1423 = vmatprep.subr.mxu0 0.0
        %1424 = vmatpush2.xpose.msra.mxu0 0.0
        %1425 = vmatprep.subr.mxu0 0.0
        %1426 = vmatpush2.xpose.msra.mxu0 0.0
        %1427 = vmatprep.mubr.f32.mxu0 0.0
        %1428 = vmatmul.mubr.f32.gmra.mxu0 %v1358
        %v1429 = vpop.f32.mrf.mxu0
        %v1430 = vadd.f32 %v1354, %v1429
        %v1431 = vpop.f32.mrf.mxu0
        %1432 = vdwg.mxu0
        %v1433 = vsel %vm1356, %v1430, -inf
        %1434 = vmax.xlane.f32.xlu0 %v1433
        %v1435 = vpop.xlane.xlu0 %1434
        %v1436 = vsub.f32 %v1430, %v1435
        %v1437 = vmul.f32 %v1436, 1.442695
        %v1438 = vpow.pop %v1437
        %v1439 = vsel %vm1356, %v1438, 0.0
        %1440 = vadd.xlane.f32.xlu0 %v1439
        %v1441 = vpop.xlane.xlu0 %1440
        %v1442 = vrcp.pop %v1441
        %v1443 = vmul.f32 %v1438, %v1442
        %v1445 = vsel %vm1356, %v1443, 0
        %1447 = vmatprep.subr.mxu0 0.0
        %1448 = vmatpush1.msra.mxu0 0.0
        %1449 = vmatprep.subr.mxu0 0.0
        %1450 = vmatpush1.msra.mxu0 0.0
        %1451 = vmatprep.subr.mxu0 0.0
        %1452 = vmatpush1.msra.mxu0 0.0
        %1453 = vmatprep.subr.mxu0 0.0
        %1454 = vmatpush1.msra.mxu0 0.0
        %1455 = vmatprep.subr.mxu0 0.0
        %1456 = vmatpush1.msra.mxu0 0.0
        %1457 = vmatprep.subr.mxu0 0.0
        %1458 = vmatpush1.msra.mxu0 0.0
        %1459 = vmatprep.subr.mxu0 0.0
        %1460 = vmatpush1.msra.mxu0 0.0
        %1461 = vmatprep.subr.mxu0 0.0
        %1462 = vmatpush1.msra.mxu0 0.0
        %1463 = vmatprep.subr.mxu0 0.0
        %1464 = vmatpush1.msra.mxu0 0.0
        %1465 = vmatprep.subr.mxu0 0.0
        %1466 = vmatpush1.msra.mxu0 0.0
        %1467 = vmatprep.subr.mxu0 0.0
        %1468 = vmatpush1.msra.mxu0 0.0
        %1469 = vmatprep.subr.mxu0 0.0
        %1470 = vmatpush1.msra.mxu0 0.0
        %1471 = vmatprep.subr.mxu0 0.0
        %1472 = vmatpush1.msra.mxu0 0.0
        %1473 = vmatprep.subr.mxu0 0.0
        %1474 = vmatpush1.msra.mxu0 0.0
        %1475 = vmatprep.subr.mxu0 0.0
        %1476 = vmatpush1.msra.mxu0 0.0
        %1477 = vmatprep.subr.mxu0 0.0
        %1478 = vmatpush1.msra.mxu0 %v1195
        %1479 = vmatprep.subr.mxu0 0.0
        %1480 = vmatpush2.msra.mxu0 0.0
        %1481 = vmatprep.subr.mxu0 0.0
        %1482 = vmatpush2.msra.mxu0 0.0
        %1483 = vmatprep.subr.mxu0 0.0
        %1484 = vmatpush2.msra.mxu0 0.0
        %1485 = vmatprep.subr.mxu0 0.0
        %1486 = vmatpush2.msra.mxu0 0.0
        %1487 = vmatprep.subr.mxu0 0.0
        %1488 = vmatpush2.msra.mxu0 0.0
        %1489 = vmatprep.subr.mxu0 0.0
        %1490 = vmatpush2.msra.mxu0 0.0
        %1491 = vmatprep.subr.mxu0 0.0
        %1492 = vmatpush2.msra.mxu0 0.0
        %1493 = vmatprep.subr.mxu0 0.0
        %1494 = vmatpush2.msra.mxu0 0.0
        %1495 = vmatprep.subr.mxu0 0.0
        %1496 = vmatpush2.msra.mxu0 0.0
        %1497 = vmatprep.subr.mxu0 0.0
        %1498 = vmatpush2.msra.mxu0 0.0
        %1499 = vmatprep.subr.mxu0 0.0
        %1500 = vmatpush2.msra.mxu0 0.0
        %1501 = vmatprep.subr.mxu0 0.0
        %1502 = vmatpush2.msra.mxu0 0.0
        %1503 = vmatprep.subr.mxu0 0.0
        %1504 = vmatpush2.msra.mxu0 0.0
        %1505 = vmatprep.subr.mxu0 0.0
        %1506 = vmatpush2.msra.mxu0 0.0
        %1507 = vmatprep.subr.mxu0 0.0
        %1508 = vmatpush2.msra.mxu0 0.0
        %1509 = vmatprep.subr.mxu0 0.0
        %1510 = vmatpush2.msra.mxu0 0.0
        %1511 = vmatprep.mubr.f32.mxu0 0.0
        %1512 = vmatmul.mubr.f32.gmra.mxu0 %v1445
        %v1513 = vpop.f32.mrf.mxu0
        %v1514 = vadd.f32 0.0, %v1513
        %v1515 = vpop.f32.mrf.mxu0
        %1516 = vdwg.mxu0
        %1517 = vrot.lane.b32.xlu0 %v1273, 120
        %v1518 = vpop.permute.xlu0 %1517
        %1519 = vrot.lane.b32.xlu0 %v1349, 120
        %v1520 = vpop.permute.xlu0 %1519
        %v1521 = vsel %vm1356, %v1518, 0
        %v1523 = vsel %vm1356, %v1520, 0
        %1525 = vmatprep.subr.mxu0 0.0
        %1526 = vmatpush1.xpose.msra.mxu0 0.0
        %1527 = vmatprep.subr.mxu0 0.0
        %1528 = vmatpush1.xpose.msra.mxu0 0.0
        %1529 = vmatprep.subr.mxu0 0.0
        %1530 = vmatpush1.xpose.msra.mxu0 0.0
        %1531 = vmatprep.subr.mxu0 0.0
        %1532 = vmatpush1.xpose.msra.mxu0 0.0
        %1533 = vmatprep.subr.mxu0 0.0
        %1534 = vmatpush1.xpose.msra.mxu0 0.0
        %1535 = vmatprep.subr.mxu0 0.0
        %1536 = vmatpush1.xpose.msra.mxu0 0.0
        %1537 = vmatprep.subr.mxu0 0.0
        %1538 = vmatpush1.xpose.msra.mxu0 0.0
        %1539 = vmatprep.subr.mxu0 0.0
        %1540 = vmatpush1.xpose.msra.mxu0 0.0
        %1541 = vmatprep.subr.mxu0 0.0
        %1542 = vmatpush1.xpose.msra.mxu0 0.0
        %1543 = vmatprep.subr.mxu0 0.0
        %1544 = vmatpush1.xpose.msra.mxu0 0.0
        %1545 = vmatprep.subr.mxu0 0.0
        %1546 = vmatpush1.xpose.msra.mxu0 0.0
        %1547 = vmatprep.subr.mxu0 0.0
        %1548 = vmatpush1.xpose.msra.mxu0 0.0
        %1549 = vmatprep.subr.mxu0 0.0
        %1550 = vmatpush1.xpose.msra.mxu0 0.0
        %1551 = vmatprep.subr.mxu0 0.0
        %1552 = vmatpush1.xpose.msra.mxu0 0.0
        %1553 = vmatprep.subr.mxu0 0.0
        %1554 = vmatpush1.xpose.msra.mxu0 0.0
        %1555 = vmatprep.subr.mxu0 0.0
        %1556 = vmatpush1.xpose.msra.mxu0 %v1523
        %1557 = vmatprep.subr.mxu0 0.0
        %1558 = vmatpush2.xpose.msra.mxu0 0.0
        %1559 = vmatprep.subr.mxu0 0.0
        %1560 = vmatpush2.xpose.msra.mxu0 0.0
        %1561 = vmatprep.subr.mxu0 0.0
        %1562 = vmatpush2.xpose.msra.mxu0 0.0
        %1563 = vmatprep.subr.mxu0 0.0
        %1564 = vmatpush2.xpose.msra.mxu0 0.0
        %1565 = vmatprep.subr.mxu0 0.0
        %1566 = vmatpush2.xpose.msra.mxu0 0.0
        %1567 = vmatprep.subr.mxu0 0.0
        %1568 = vmatpush2.xpose.msra.mxu0 0.0
        %1569 = vmatprep.subr.mxu0 0.0
        %1570 = vmatpush2.xpose.msra.mxu0 0.0
        %1571 = vmatprep.subr.mxu0 0.0
        %1572 = vmatpush2.xpose.msra.mxu0 0.0
        %1573 = vmatprep.subr.mxu0 0.0
        %1574 = vmatpush2.xpose.msra.mxu0 0.0
        %1575 = vmatprep.subr.mxu0 0.0
        %1576 = vmatpush2.xpose.msra.mxu0 0.0
        %1577 = vmatprep.subr.mxu0 0.0
        %1578 = vmatpush2.xpose.msra.mxu0 0.0
        %1579 = vmatprep.subr.mxu0 0.0
        %1580 = vmatpush2.xpose.msra.mxu0 0.0
        %1581 = vmatprep.subr.mxu0 0.0
        %1582 = vmatpush2.xpose.msra.mxu0 0.0
        %1583 = vmatprep.subr.mxu0 0.0
        %1584 = vmatpush2.xpose.msra.mxu0 0.0
        %1585 = vmatprep.subr.mxu0 0.0
        %1586 = vmatpush2.xpose.msra.mxu0 0.0
        %1587 = vmatprep.subr.mxu0 0.0
        %1588 = vmatpush2.xpose.msra.mxu0 0.0
        %1589 = vmatprep.mubr.f32.mxu0 0.0
        %1590 = vmatmul.mubr.f32.gmra.mxu0 %v1521
        %v1591 = vpop.f32.mrf.mxu0
        %v1592 = vadd.f32 %v1354, %v1591
        %v1593 = vpop.f32.mrf.mxu0
        %1594 = vdwg.mxu0
        %v1595 = vsel %vm1356, %v1592, -inf
        %1596 = vmax.xlane.f32.xlu0 %v1595
        %v1597 = vpop.xlane.xlu0 %1596
        %v1598 = vsub.f32 %v1592, %v1597
        %v1599 = vmul.f32 %v1598, 1.442695
        %v1600 = vpow.pop %v1599
        %v1601 = vsel %vm1356, %v1600, 0.0
        %1602 = vadd.xlane.f32.xlu0 %v1601
        %v1603 = vpop.xlane.xlu0 %1602
        %v1604 = vrcp.pop %v1603
        %v1605 = vmul.f32 %v1600, %v1604
        %1607 = vrot.lane.b32.xlu0 %v1195, 120
        %v1608 = vpop.permute.xlu0 %1607
        %v1611 = vsel %vm1356, %v1605, 0
        %1613 = vmatprep.subr.mxu0 0.0
        %1614 = vmatpush1.msra.mxu0 0.0
        %1615 = vmatprep.subr.mxu0 0.0
        %1616 = vmatpush1.msra.mxu0 0.0
        %1617 = vmatprep.subr.mxu0 0.0
        %1618 = vmatpush1.msra.mxu0 0.0
        %1619 = vmatprep.subr.mxu0 0.0
        %1620 = vmatpush1.msra.mxu0 0.0
        %1621 = vmatprep.subr.mxu0 0.0
        %1622 = vmatpush1.msra.mxu0 0.0
        %1623 = vmatprep.subr.mxu0 0.0
        %1624 = vmatpush1.msra.mxu0 0.0
        %1625 = vmatprep.subr.mxu0 0.0
        %1626 = vmatpush1.msra.mxu0 0.0
        %1627 = vmatprep.subr.mxu0 0.0
        %1628 = vmatpush1.msra.mxu0 0.0
        %1629 = vmatprep.subr.mxu0 0.0
        %1630 = vmatpush1.msra.mxu0 0.0
        %1631 = vmatprep.subr.mxu0 0.0
        %1632 = vmatpush1.msra.mxu0 0.0
        %1633 = vmatprep.subr.mxu0 0.0
        %1634 = vmatpush1.msra.mxu0 0.0
        %1635 = vmatprep.subr.mxu0 0.0
        %1636 = vmatpush1.msra.mxu0 0.0
        %1637 = vmatprep.subr.mxu0 0.0
        %1638 = vmatpush1.msra.mxu0 0.0
        %1639 = vmatprep.subr.mxu0 0.0
        %1640 = vmatpush1.msra.mxu0 0.0
        %1641 = vmatprep.subr.mxu0 0.0
        %1642 = vmatpush1.msra.mxu0 0.0
        %1643 = vmatprep.subr.mxu0 0.0
        %1644 = vmatpush1.msra.mxu0 %v1608
        %1645 = vmatprep.subr.mxu0 0.0
        %1646 = vmatpush2.msra.mxu0 0.0
        %1647 = vmatprep.subr.mxu0 0.0
        %1648 = vmatpush2.msra.mxu0 0.0
        %1649 = vmatprep.subr.mxu0 0.0
        %1650 = vmatpush2.msra.mxu0 0.0
        %1651 = vmatprep.subr.mxu0 0.0
        %1652 = vmatpush2.msra.mxu0 0.0
        %1653 = vmatprep.subr.mxu0 0.0
        %1654 = vmatpush2.msra.mxu0 0.0
        %1655 = vmatprep.subr.mxu0 0.0
        %1656 = vmatpush2.msra.mxu0 0.0
        %1657 = vmatprep.subr.mxu0 0.0
        %1658 = vmatpush2.msra.mxu0 0.0
        %1659 = vmatprep.subr.mxu0 0.0
        %1660 = vmatpush2.msra.mxu0 0.0
        %1661 = vmatprep.subr.mxu0 0.0
        %1662 = vmatpush2.msra.mxu0 0.0
        %1663 = vmatprep.subr.mxu0 0.0
        %1664 = vmatpush2.msra.mxu0 0.0
        %1665 = vmatprep.subr.mxu0 0.0
        %1666 = vmatpush2.msra.mxu0 0.0
        %1667 = vmatprep.subr.mxu0 0.0
        %1668 = vmatpush2.msra.mxu0 0.0
        %1669 = vmatprep.subr.mxu0 0.0
        %1670 = vmatpush2.msra.mxu0 0.0
        %1671 = vmatprep.subr.mxu0 0.0
        %1672 = vmatpush2.msra.mxu0 0.0
        %1673 = vmatprep.subr.mxu0 0.0
        %1674 = vmatpush2.msra.mxu0 0.0
        %1675 = vmatprep.subr.mxu0 0.0
        %1676 = vmatpush2.msra.mxu0 0.0
        %1677 = vmatprep.mubr.f32.mxu0 0.0
        %1678 = vmatmul.mubr.f32.gmra.mxu0 %v1611
        %v1679 = vpop.f32.mrf.mxu0
        %v1680 = vadd.f32 0.0, %v1679
        %v1681 = vpop.f32.mrf.mxu0
        %1682 = vdwg.mxu0
        %1683 = vrot.lane.b32.xlu0 %v1273, 112
        %v1684 = vpop.permute.xlu0 %1683
        %1685 = vrot.lane.b32.xlu0 %v1349, 112
        %v1686 = vpop.permute.xlu0 %1685
        %v1687 = vsel %vm1356, %v1684, 0
        %v1689 = vsel %vm1356, %v1686, 0
        %1691 = vmatprep.subr.mxu0 0.0
        %1692 = vmatpush1.xpose.msra.mxu0 0.0
        %1693 = vmatprep.subr.mxu0 0.0
        %1694 = vmatpush1.xpose.msra.mxu0 0.0
        %1695 = vmatprep.subr.mxu0 0.0
        %1696 = vmatpush1.xpose.msra.mxu0 0.0
        %1697 = vmatprep.subr.mxu0 0.0
        %1698 = vmatpush1.xpose.msra.mxu0 0.0
        %1699 = vmatprep.subr.mxu0 0.0
        %1700 = vmatpush1.xpose.msra.mxu0 0.0
        %1701 = vmatprep.subr.mxu0 0.0
        %1702 = vmatpush1.xpose.msra.mxu0 0.0
        %1703 = vmatprep.subr.mxu0 0.0
        %1704 = vmatpush1.xpose.msra.mxu0 0.0
        %1705 = vmatprep.subr.mxu0 0.0
        %1706 = vmatpush1.xpose.msra.mxu0 0.0
        %1707 = vmatprep.subr.mxu0 0.0
        %1708 = vmatpush1.xpose.msra.mxu0 0.0
        %1709 = vmatprep.subr.mxu0 0.0
        %1710 = vmatpush1.xpose.msra.mxu0 0.0
        %1711 = vmatprep.subr.mxu0 0.0
        %1712 = vmatpush1.xpose.msra.mxu0 0.0
        %1713 = vmatprep.subr.mxu0 0.0
        %1714 = vmatpush1.xpose.msra.mxu0 0.0
        %1715 = vmatprep.subr.mxu0 0.0
        %1716 = vmatpush1.xpose.msra.mxu0 0.0
        %1717 = vmatprep.subr.mxu0 0.0
        %1718 = vmatpush1.xpose.msra.mxu0 0.0
        %1719 = vmatprep.subr.mxu0 0.0
        %1720 = vmatpush1.xpose.msra.mxu0 0.0
        %1721 = vmatprep.subr.mxu0 0.0
        %1722 = vmatpush1.xpose.msra.mxu0 %v1689
        %1723 = vmatprep.subr.mxu0 0.0
        %1724 = vmatpush2.xpose.msra.mxu0 0.0
        %1725 = vmatprep.subr.mxu0 0.0
        %1726 = vmatpush2.xpose.msra.mxu0 0.0
        %1727 = vmatprep.subr.mxu0 0.0
        %1728 = vmatpush2.xpose.msra.mxu0 0.0
        %1729 = vmatprep.subr.mxu0 0.0
        %1730 = vmatpush2.xpose.msra.mxu0 0.0
        %1731 = vmatprep.subr.mxu0 0.0
        %1732 = vmatpush2.xpose.msra.mxu0 0.0
        %1733 = vmatprep.subr.mxu0 0.0
        %1734 = vmatpush2.xpose.msra.mxu0 0.0
        %1735 = vmatprep.subr.mxu0 0.0
        %1736 = vmatpush2.xpose.msra.mxu0 0.0
        %1737 = vmatprep.subr.mxu0 0.0
        %1738 = vmatpush2.xpose.msra.mxu0 0.0
        %1739 = vmatprep.subr.mxu0 0.0
        %1740 = vmatpush2.xpose.msra.mxu0 0.0
        %1741 = vmatprep.subr.mxu0 0.0
        %1742 = vmatpush2.xpose.msra.mxu0 0.0
        %1743 = vmatprep.subr.mxu0 0.0
        %1744 = vmatpush2.xpose.msra.mxu0 0.0
        %1745 = vmatprep.subr.mxu0 0.0
        %1746 = vmatpush2.xpose.msra.mxu0 0.0
        %1747 = vmatprep.subr.mxu0 0.0
        %1748 = vmatpush2.xpose.msra.mxu0 0.0
        %1749 = vmatprep.subr.mxu0 0.0
        %1750 = vmatpush2.xpose.msra.mxu0 0.0
        %1751 = vmatprep.subr.mxu0 0.0
        %1752 = vmatpush2.xpose.msra.mxu0 0.0
        %1753 = vmatprep.subr.mxu0 0.0
        %1754 = vmatpush2.xpose.msra.mxu0 0.0
        %1755 = vmatprep.mubr.f32.mxu0 0.0
        %1756 = vmatmul.mubr.f32.gmra.mxu0 %v1687
        %v1757 = vpop.f32.mrf.mxu0
        %v1758 = vadd.f32 %v1354, %v1757
        %v1759 = vpop.f32.mrf.mxu0
        %1760 = vdwg.mxu0
        %v1761 = vsel %vm1356, %v1758, -inf
        %1762 = vmax.xlane.f32.xlu0 %v1761
        %v1763 = vpop.xlane.xlu0 %1762
        %v1764 = vsub.f32 %v1758, %v1763
        %v1765 = vmul.f32 %v1764, 1.442695
        %v1766 = vpow.pop %v1765
        %v1767 = vsel %vm1356, %v1766, 0.0
        %1768 = vadd.xlane.f32.xlu0 %v1767
        %v1769 = vpop.xlane.xlu0 %1768
        %v1770 = vrcp.pop %v1769
        %v1771 = vmul.f32 %v1766, %v1770
        %1772 = vrot.lane.b32.xlu0 %v1195, 112
        %v1773 = vpop.permute.xlu0 %1772
        %v1776 = vsel %vm1356, %v1771, 0
        %1778 = vmatprep.subr.mxu0 0.0
        %1779 = vmatpush1.msra.mxu0 0.0
        %1780 = vmatprep.subr.mxu0 0.0
        %1781 = vmatpush1.msra.mxu0 0.0
        %1782 = vmatprep.subr.mxu0 0.0
        %1783 = vmatpush1.msra.mxu0 0.0
        %1784 = vmatprep.subr.mxu0 0.0
        %1785 = vmatpush1.msra.mxu0 0.0
        %1786 = vmatprep.subr.mxu0 0.0
        %1787 = vmatpush1.msra.mxu0 0.0
        %1788 = vmatprep.subr.mxu0 0.0
        %1789 = vmatpush1.msra.mxu0 0.0
        %1790 = vmatprep.subr.mxu0 0.0
        %1791 = vmatpush1.msra.mxu0 0.0
        %1792 = vmatprep.subr.mxu0 0.0
        %1793 = vmatpush1.msra.mxu0 0.0
        %1794 = vmatprep.subr.mxu0 0.0
        %1795 = vmatpush1.msra.mxu0 0.0
        %1796 = vmatprep.subr.mxu0 0.0
        %1797 = vmatpush1.msra.mxu0 0.0
        %1798 = vmatprep.subr.mxu0 0.0
        %1799 = vmatpush1.msra.mxu0 0.0
        %1800 = vmatprep.subr.mxu0 0.0
        %1801 = vmatpush1.msra.mxu0 0.0
        %1802 = vmatprep.subr.mxu0 0.0
        %1803 = vmatpush1.msra.mxu0 0.0
        %1804 = vmatprep.subr.mxu0 0.0
        %1805 = vmatpush1.msra.mxu0 0.0
        %1806 = vmatprep.subr.mxu0 0.0
        %1807 = vmatpush1.msra.mxu0 0.0
        %1808 = vmatprep.subr.mxu0 0.0
        %1809 = vmatpush1.msra.mxu0 %v1773
        %1810 = vmatprep.subr.mxu0 0.0
        %1811 = vmatpush2.msra.mxu0 0.0
        %1812 = vmatprep.subr.mxu0 0.0
        %1813 = vmatpush2.msra.mxu0 0.0
        %1814 = vmatprep.subr.mxu0 0.0
        %1815 = vmatpush2.msra.mxu0 0.0
        %1816 = vmatprep.subr.mxu0 0.0
        %1817 = vmatpush2.msra.mxu0 0.0
        %1818 = vmatprep.subr.mxu0 0.0
        %1819 = vmatpush2.msra.mxu0 0.0
        %1820 = vmatprep.subr.mxu0 0.0
        %1821 = vmatpush2.msra.mxu0 0.0
        %1822 = vmatprep.subr.mxu0 0.0
        %1823 = vmatpush2.msra.mxu0 0.0
        %1824 = vmatprep.subr.mxu0 0.0
        %1825 = vmatpush2.msra.mxu0 0.0
        %1826 = vmatprep.subr.mxu0 0.0
        %1827 = vmatpush2.msra.mxu0 0.0
        %1828 = vmatprep.subr.mxu0 0.0
        %1829 = vmatpush2.msra.mxu0 0.0
        %1830 = vmatprep.subr.mxu0 0.0
        %1831 = vmatpush2.msra.mxu0 0.0
        %1832 = vmatprep.subr.mxu0 0.0
        %1833 = vmatpush2.msra.mxu0 0.0
        %1834 = vmatprep.subr.mxu0 0.0
        %1835 = vmatpush2.msra.mxu0 0.0
        %1836 = vmatprep.subr.mxu0 0.0
        %1837 = vmatpush2.msra.mxu0 0.0
        %1838 = vmatprep.subr.mxu0 0.0
        %1839 = vmatpush2.msra.mxu0 0.0
        %1840 = vmatprep.subr.mxu0 0.0
        %1841 = vmatpush2.msra.mxu0 0.0
        %1842 = vmatprep.mubr.f32.mxu0 0.0
        %1843 = vmatmul.mubr.f32.gmra.mxu0 %v1776
        %v1844 = vpop.f32.mrf.mxu0
        %v1845 = vadd.f32 0.0, %v1844
        %v1846 = vpop.f32.mrf.mxu0
        %1847 = vdwg.mxu0
        %1848 = vrot.lane.b32.xlu0 %v1273, 104
        %v1849 = vpop.permute.xlu0 %1848
        %1850 = vrot.lane.b32.xlu0 %v1349, 104
        %v1851 = vpop.permute.xlu0 %1850
        %v1852 = vsel %vm1356, %v1849, 0
        %v1854 = vsel %vm1356, %v1851, 0
        %1856 = vmatprep.subr.mxu0 0.0
        %1857 = vmatpush1.xpose.msra.mxu0 0.0
        %1858 = vmatprep.subr.mxu0 0.0
        %1859 = vmatpush1.xpose.msra.mxu0 0.0
        %1860 = vmatprep.subr.mxu0 0.0
        %1861 = vmatpush1.xpose.msra.mxu0 0.0
        %1862 = vmatprep.subr.mxu0 0.0
        %1863 = vmatpush1.xpose.msra.mxu0 0.0
        %1864 = vmatprep.subr.mxu0 0.0
        %1865 = vmatpush1.xpose.msra.mxu0 0.0
        %1866 = vmatprep.subr.mxu0 0.0
        %1867 = vmatpush1.xpose.msra.mxu0 0.0
        %1868 = vmatprep.subr.mxu0 0.0
        %1869 = vmatpush1.xpose.msra.mxu0 0.0
        %1870 = vmatprep.subr.mxu0 0.0
        %1871 = vmatpush1.xpose.msra.mxu0 0.0
        %1872 = vmatprep.subr.mxu0 0.0
        %1873 = vmatpush1.xpose.msra.mxu0 0.0
        %1874 = vmatprep.subr.mxu0 0.0
        %1875 = vmatpush1.xpose.msra.mxu0 0.0
        %1876 = vmatprep.subr.mxu0 0.0
        %1877 = vmatpush1.xpose.msra.mxu0 0.0
        %1878 = vmatprep.subr.mxu0 0.0
        %1879 = vmatpush1.xpose.msra.mxu0 0.0
        %1880 = vmatprep.subr.mxu0 0.0
        %1881 = vmatpush1.xpose.msra.mxu0 0.0
        %1882 = vmatprep.subr.mxu0 0.0
        %1883 = vmatpush1.xpose.msra.mxu0 0.0
        %1884 = vmatprep.subr.mxu0 0.0
        %1885 = vmatpush1.xpose.msra.mxu0 0.0
        %1886 = vmatprep.subr.mxu0 0.0
        %1887 = vmatpush1.xpose.msra.mxu0 %v1854
        %1888 = vmatprep.subr.mxu0 0.0
        %1889 = vmatpush2.xpose.msra.mxu0 0.0
        %1890 = vmatprep.subr.mxu0 0.0
        %1891 = vmatpush2.xpose.msra.mxu0 0.0
        %1892 = vmatprep.subr.mxu0 0.0
        %1893 = vmatpush2.xpose.msra.mxu0 0.0
        %1894 = vmatprep.subr.mxu0 0.0
        %1895 = vmatpush2.xpose.msra.mxu0 0.0
        %1896 = vmatprep.subr.mxu0 0.0
        %1897 = vmatpush2.xpose.msra.mxu0 0.0
        %1898 = vmatprep.subr.mxu0 0.0
        %1899 = vmatpush2.xpose.msra.mxu0 0.0
        %1900 = vmatprep.subr.mxu0 0.0
        %1901 = vmatpush2.xpose.msra.mxu0 0.0
        %1902 = vmatprep.subr.mxu0 0.0
        %1903 = vmatpush2.xpose.msra.mxu0 0.0
        %1904 = vmatprep.subr.mxu0 0.0
        %1905 = vmatpush2.xpose.msra.mxu0 0.0
        %1906 = vmatprep.subr.mxu0 0.0
        %1907 = vmatpush2.xpose.msra.mxu0 0.0
        %1908 = vmatprep.subr.mxu0 0.0
        %1909 = vmatpush2.xpose.msra.mxu0 0.0
        %1910 = vmatprep.subr.mxu0 0.0
        %1911 = vmatpush2.xpose.msra.mxu0 0.0
        %1912 = vmatprep.subr.mxu0 0.0
        %1913 = vmatpush2.xpose.msra.mxu0 0.0
        %1914 = vmatprep.subr.mxu0 0.0
        %1915 = vmatpush2.xpose.msra.mxu0 0.0
        %1916 = vmatprep.subr.mxu0 0.0
        %1917 = vmatpush2.xpose.msra.mxu0 0.0
        %1918 = vmatprep.subr.mxu0 0.0
        %1919 = vmatpush2.xpose.msra.mxu0 0.0
        %1920 = vmatprep.mubr.f32.mxu0 0.0
        %1921 = vmatmul.mubr.f32.gmra.mxu0 %v1852
        %v1922 = vpop.f32.mrf.mxu0
        %v1923 = vadd.f32 %v1354, %v1922
        %v1924 = vpop.f32.mrf.mxu0
        %1925 = vdwg.mxu0
        %v1926 = vsel %vm1356, %v1923, -inf
        %1927 = vmax.xlane.f32.xlu0 %v1926
        %v1928 = vpop.xlane.xlu0 %1927
        %v1929 = vsub.f32 %v1923, %v1928
        %v1930 = vmul.f32 %v1929, 1.442695
        %v1931 = vpow.pop %v1930
        %v1932 = vsel %vm1356, %v1931, 0.0
        %1933 = vadd.xlane.f32.xlu0 %v1932
        %v1934 = vpop.xlane.xlu0 %1933
        %v1935 = vrcp.pop %v1934
        %v1936 = vmul.f32 %v1931, %v1935
        %1937 = vrot.lane.b32.xlu0 %v1195, 104
        %v1938 = vpop.permute.xlu0 %1937
        %v1941 = vsel %vm1356, %v1936, 0
        %1943 = vmatprep.subr.mxu0 0.0
        %1944 = vmatpush1.msra.mxu0 0.0
        %1945 = vmatprep.subr.mxu0 0.0
        %1946 = vmatpush1.msra.mxu0 0.0
        %1947 = vmatprep.subr.mxu0 0.0
        %1948 = vmatpush1.msra.mxu0 0.0
        %1949 = vmatprep.subr.mxu0 0.0
        %1950 = vmatpush1.msra.mxu0 0.0
        %1951 = vmatprep.subr.mxu0 0.0
        %1952 = vmatpush1.msra.mxu0 0.0
        %1953 = vmatprep.subr.mxu0 0.0
        %1954 = vmatpush1.msra.mxu0 0.0
        %1955 = vmatprep.subr.mxu0 0.0
        %1956 = vmatpush1.msra.mxu0 0.0
        %1957 = vmatprep.subr.mxu0 0.0
        %1958 = vmatpush1.msra.mxu0 0.0
        %1959 = vmatprep.subr.mxu0 0.0
        %1960 = vmatpush1.msra.mxu0 0.0
        %1961 = vmatprep.subr.mxu0 0.0
        %1962 = vmatpush1.msra.mxu0 0.0
        %1963 = vmatprep.subr.mxu0 0.0
        %1964 = vmatpush1.msra.mxu0 0.0
        %1965 = vmatprep.subr.mxu0 0.0
        %1966 = vmatpush1.msra.mxu0 0.0
        %1967 = vmatprep.subr.mxu0 0.0
        %1968 = vmatpush1.msra.mxu0 0.0
        %1969 = vmatprep.subr.mxu0 0.0
        %1970 = vmatpush1.msra.mxu0 0.0
        %1971 = vmatprep.subr.mxu0 0.0
        %1972 = vmatpush1.msra.mxu0 0.0
        %1973 = vmatprep.subr.mxu0 0.0
        %1974 = vmatpush1.msra.mxu0 %v1938
        %1975 = vmatprep.subr.mxu0 0.0
        %1976 = vmatpush2.msra.mxu0 0.0
        %1977 = vmatprep.subr.mxu0 0.0
        %1978 = vmatpush2.msra.mxu0 0.0
        %1979 = vmatprep.subr.mxu0 0.0
        %1980 = vmatpush2.msra.mxu0 0.0
        %1981 = vmatprep.subr.mxu0 0.0
        %1982 = vmatpush2.msra.mxu0 0.0
        %1983 = vmatprep.subr.mxu0 0.0
        %1984 = vmatpush2.msra.mxu0 0.0
        %1985 = vmatprep.subr.mxu0 0.0
        %1986 = vmatpush2.msra.mxu0 0.0
        %1987 = vmatprep.subr.mxu0 0.0
        %1988 = vmatpush2.msra.mxu0 0.0
        %1989 = vmatprep.subr.mxu0 0.0
        %1990 = vmatpush2.msra.mxu0 0.0
        %1991 = vmatprep.subr.mxu0 0.0
        %1992 = vmatpush2.msra.mxu0 0.0
        %1993 = vmatprep.subr.mxu0 0.0
        %1994 = vmatpush2.msra.mxu0 0.0
        %1995 = vmatprep.subr.mxu0 0.0
        %1996 = vmatpush2.msra.mxu0 0.0
        %1997 = vmatprep.subr.mxu0 0.0
        %1998 = vmatpush2.msra.mxu0 0.0
        %1999 = vmatprep.subr.mxu0 0.0
        %2000 = vmatpush2.msra.mxu0 0.0
        %2001 = vmatprep.subr.mxu0 0.0
        %2002 = vmatpush2.msra.mxu0 0.0
        %2003 = vmatprep.subr.mxu0 0.0
        %2004 = vmatpush2.msra.mxu0 0.0
        %2005 = vmatprep.subr.mxu0 0.0
        %2006 = vmatpush2.msra.mxu0 0.0
        %2007 = vmatprep.mubr.f32.mxu0 0.0
        %2008 = vmatmul.mubr.f32.gmra.mxu0 %v1941
        %v2009 = vpop.f32.mrf.mxu0
        %v2010 = vadd.f32 0.0, %v2009
        %v2011 = vpop.f32.mrf.mxu0
        %2012 = vdwg.mxu0
        %2014 = vrot.lane.b32.xlu0 %v1680, 8
        %v2015 = vpop.permute.xlu0 %2014
        %2018 = vrot.lane.b32.xlu0 %v1845, 16
        %v2019 = vpop.permute.xlu0 %2018
        %2022 = vrot.lane.b32.xlu0 %v2010, 24
        %v2023 = vpop.permute.xlu0 %2022
        %v2025 = vsel %vm1356, %v1514, %v2015
        %vm2026 = vcmask 130048
        %v2027 = vsel %vm2026, %v2025, %v2019
        %vm2028 = vcmask 195584
        %v2029 = vsel %vm2028, %v2027, %v2023
        %v2030 = vld [vmem:[%s27] sm:$0xff]
        %v2031 = vld [vmem:[%s27 + $0x8] sm:$0xff]
        %v2032 = vld [vmem:[%s27 + $0x10] sm:$0xff]
        %v2033 = vld [vmem:[%s27 + $0x18] sm:$0xff]
        %v2034 = vld [vmem:[%s29] sm:$0x1]
        %v2036 = vlaneseq
        %v2037 = vshrl.u32 %v2036, 7
        %v2038 = vsub.s32 0, %v2037
        %v2039 = vrot.slane %v2034, %v2038
        %v2042 = vsel %vm922, %v2029, 0
        %2044 = vmatprep.subr.mxu0 0.0
        %2045 = vmatpush1.msra.mxu0 0.0
        %2046 = vmatprep.subr.mxu0 0.0
        %2047 = vmatpush1.msra.mxu0 0.0
        %2048 = vmatprep.subr.mxu0 0.0
        %2049 = vmatpush1.msra.mxu0 0.0
        %2050 = vmatprep.subr.mxu0 0.0
        %2051 = vmatpush1.msra.mxu0 0.0
        %2052 = vmatprep.subr.mxu0 0.0
        %2053 = vmatpush1.msra.mxu0 0.0
        %2054 = vmatprep.subr.mxu0 0.0
        %2055 = vmatpush1.msra.mxu0 0.0
        %2056 = vmatprep.subr.mxu0 0.0
        %2057 = vmatpush1.msra.mxu0 0.0
        %2058 = vmatprep.subr.mxu0 0.0
        %2059 = vmatpush1.msra.mxu0 0.0
        %2060 = vmatprep.subr.mxu0 0.0
        %2061 = vmatpush1.msra.mxu0 0.0
        %2062 = vmatprep.subr.mxu0 0.0
        %2063 = vmatpush1.msra.mxu0 0.0
        %2064 = vmatprep.subr.mxu0 0.0
        %2065 = vmatpush1.msra.mxu0 0.0
        %2066 = vmatprep.subr.mxu0 0.0
        %2067 = vmatpush1.msra.mxu0 0.0
        %2068 = vmatprep.subr.mxu0 0.0
        %2069 = vmatpush1.msra.mxu0 %v2033
        %2070 = vmatprep.subr.mxu0 0.0
        %2071 = vmatpush1.msra.mxu0 %v2032
        %2072 = vmatprep.subr.mxu0 0.0
        %2073 = vmatpush1.msra.mxu0 %v2031
        %2074 = vmatprep.subr.mxu0 0.0
        %2075 = vmatpush1.msra.mxu0 %v2030
        %2076 = vmatprep.subr.mxu0 0.0
        %2077 = vmatpush2.msra.mxu0 0.0
        %2078 = vmatprep.subr.mxu0 0.0
        %2079 = vmatpush2.msra.mxu0 0.0
        %2080 = vmatprep.subr.mxu0 0.0
        %2081 = vmatpush2.msra.mxu0 0.0
        %2082 = vmatprep.subr.mxu0 0.0
        %2083 = vmatpush2.msra.mxu0 0.0
        %2084 = vmatprep.subr.mxu0 0.0
        %2085 = vmatpush2.msra.mxu0 0.0
        %2086 = vmatprep.subr.mxu0 0.0
        %2087 = vmatpush2.msra.mxu0 0.0
        %2088 = vmatprep.subr.mxu0 0.0
        %2089 = vmatpush2.msra.mxu0 0.0
        %2090 = vmatprep.subr.mxu0 0.0
        %2091 = vmatpush2.msra.mxu0 0.0
        %2092 = vmatprep.subr.mxu0 0.0
        %2093 = vmatpush2.msra.mxu0 0.0
        %2094 = vmatprep.subr.mxu0 0.0
        %2095 = vmatpush2.msra.mxu0 0.0
        %2096 = vmatprep.subr.mxu0 0.0
        %2097 = vmatpush2.msra.mxu0 0.0
        %2098 = vmatprep.subr.mxu0 0.0
        %2099 = vmatpush2.msra.mxu0 0.0
        %2100 = vmatprep.subr.mxu0 0.0
        %2101 = vmatpush2.msra.mxu0 0.0
        %2102 = vmatprep.subr.mxu0 0.0
        %2103 = vmatpush2.msra.mxu0 0.0
        %2104 = vmatprep.subr.mxu0 0.0
        %2105 = vmatpush2.msra.mxu0 0.0
        %2106 = vmatprep.subr.mxu0 0.0
        %2107 = vmatpush2.msra.mxu0 0.0
        %2108 = vmatprep.mubr.f32.mxu0 0.0
        %2109 = vmatmul.mubr.f32.gmra.mxu0 %v2042
        %v2110 = vpop.f32.mrf.mxu0
        %v2111 = vadd.f32 %v2039, %v2110
        %v2112 = vpop.f32.mrf.mxu0
        %2113 = vdwg.mxu0
        %v2114 = vadd.f32 %v912, %v2111
        %v2115 = vld [vmem:[%s31] sm:$0x1]
        %v2116 = vld [vmem:[%s33] sm:$0x1]
        %v2117 = vsel %vm922, %v2114, 0.0
        %2118 = vadd.xlane.f32.xlu0 %v2117
        %v2119 = vpop.xlane.xlu0 %2118
        %v2120 = vmul.f32 %v2119, %v926
        %v2121 = vsub.f32 %v2114, %v2120
        %v2122 = vmul.f32 %v2121, %v2121
        %v2123 = vsel %vm922, %v2122, 0.0
        %2124 = vadd.xlane.f32.xlu0 %v2123
        %v2125 = vpop.xlane.xlu0 %2124
        %v2126 = vmul.f32 %v2125, %v926
        %v2127 = vadd.f32 %v2126, 1e-05
        %v2128 = vrsqrt.pop %v2127
        %v2129 = vmul.f32 %v2121, %v2128
        %v2131 = vlaneseq
        %v2132 = vshrl.u32 %v2131, 7
        %v2133 = vsub.s32 0, %v2132
        %v2134 = vrot.slane %v2115, %v2133
        %v2136 = vmul.f32 %v2129, %v2134
        %v2138 = vlaneseq
        %v2139 = vshrl.u32 %v2138, 7
        %v2140 = vsub.s32 0, %v2139
        %v2141 = vrot.slane %v2116, %v2140
        %v2143 = vadd.f32 %v2136, %v2141
        %v2144 = vld [vmem:[%s35] sm:$0xff]
        %v2145 = vld [vmem:[%s35 + $0x8] sm:$0xff]
        %v2146 = vld [vmem:[%s35 + $0x10] sm:$0xff]
        %v2147 = vld [vmem:[%s35 + $0x18] sm:$0xff]
        %v2148 = vld [vmem:[%s37] sm:$0x1]
        %v2150 = vlaneseq
        %v2151 = vshrl.u32 %v2150, 7
        %v2152 = vsub.s32 0, %v2151
        %v2153 = vrot.slane %v2148, %v2152
        %v2156 = vsel %vm922, %v2143, 0
        %2158 = vmatprep.subr.mxu0 0.0
        %2159 = vmatpush1.msra.mxu0 0.0
        %2160 = vmatprep.subr.mxu0 0.0
        %2161 = vmatpush1.msra.mxu0 0.0
        %2162 = vmatprep.subr.mxu0 0.0
        %2163 = vmatpush1.msra.mxu0 0.0
        %2164 = vmatprep.subr.mxu0 0.0
        %2165 = vmatpush1.msra.mxu0 0.0
        %2166 = vmatprep.subr.mxu0 0.0
        %2167 = vmatpush1.msra.mxu0 0.0
        %2168 = vmatprep.subr.mxu0 0.0
        %2169 = vmatpush1.msra.mxu0 0.0
        %2170 = vmatprep.subr.mxu0 0.0
        %2171 = vmatpush1.msra.mxu0 0.0
        %2172 = vmatprep.subr.mxu0 0.0
        %2173 = vmatpush1.msra.mxu0 0.0
        %2174 = vmatprep.subr.mxu0 0.0
        %2175 = vmatpush1.msra.mxu0 0.0
        %2176 = vmatprep.subr.mxu0 0.0
        %2177 = vmatpush1.msra.mxu0 0.0
        %2178 = vmatprep.subr.mxu0 0.0
        %2179 = vmatpush1.msra.mxu0 0.0
        %2180 = vmatprep.subr.mxu0 0.0
        %2181 = vmatpush1.msra.mxu0 0.0
        %2182 = vmatprep.subr.mxu0 0.0
        %2183 = vmatpush1.msra.mxu0 %v2147
        %2184 = vmatprep.subr.mxu0 0.0
        %2185 = vmatpush1.msra.mxu0 %v2146
        %2186 = vmatprep.subr.mxu0 0.0
        %2187 = vmatpush1.msra.mxu0 %v2145
        %2188 = vmatprep.subr.mxu0 0.0
        %2189 = vmatpush1.msra.mxu0 %v2144
        %2190 = vmatprep.subr.mxu0 0.0
        %2191 = vmatpush2.msra.mxu0 0.0
        %2192 = vmatprep.subr.mxu0 0.0
        %2193 = vmatpush2.msra.mxu0 0.0
        %2194 = vmatprep.subr.mxu0 0.0
        %2195 = vmatpush2.msra.mxu0 0.0
        %2196 = vmatprep.subr.mxu0 0.0
        %2197 = vmatpush2.msra.mxu0 0.0
        %2198 = vmatprep.subr.mxu0 0.0
        %2199 = vmatpush2.msra.mxu0 0.0
        %2200 = vmatprep.subr.mxu0 0.0
        %2201 = vmatpush2.msra.mxu0 0.0
        %2202 = vmatprep.subr.mxu0 0.0
        %2203 = vmatpush2.msra.mxu0 0.0
        %2204 = vmatprep.subr.mxu0 0.0
        %2205 = vmatpush2.msra.mxu0 0.0
        %2206 = vmatprep.subr.mxu0 0.0
        %2207 = vmatpush2.msra.mxu0 0.0
        %2208 = vmatprep.subr.mxu0 0.0
        %2209 = vmatpush2.msra.mxu0 0.0
        %2210 = vmatprep.subr.mxu0 0.0
        %2211 = vmatpush2.msra.mxu0 0.0
        %2212 = vmatprep.subr.mxu0 0.0
        %2213 = vmatpush2.msra.mxu0 0.0
        %2214 = vmatprep.subr.mxu0 0.0
        %2215 = vmatpush2.msra.mxu0 0.0
        %2216 = vmatprep.subr.mxu0 0.0
        %2217 = vmatpush2.msra.mxu0 0.0
        %2218 = vmatprep.subr.mxu0 0.0
        %2219 = vmatpush2.msra.mxu0 0.0
        %2220 = vmatprep.subr.mxu0 0.0
        %2221 = vmatpush2.msra.mxu0 0.0
        %2222 = vmatprep.mubr.f32.mxu0 0.0
        %2223 = vmatmul.mubr.f32.gmra.mxu0 %v2156
        %v2224 = vpop.f32.mrf.mxu0
        %v2225 = vadd.f32 %v2153, %v2224
        %v2226 = vpop.f32.mrf.mxu0
        %2227 = vdwg.mxu0
        %v2228 = vmul.f32 %v2225, 0.5
        %v2229 = vmul.f32 %v2225, 0.70710677
        %v2230 = vand.u32 2147483647, %v2229
        %v2231 = vmul.f32 %v2230, 0.3275911
        %v2232 = vadd.f32 %v2231, 1.0
        %v2233 = vrcp.pop %v2232
        %v2234 = vmul.f32 1.0, %v2233
        %v2235 = vmul.f32 %v2234, 1.0614054
        %v2236 = vadd.f32 %v2235, -1.4531521
        %v2237 = vmul.f32 %v2236, %v2234
        %v2238 = vadd.f32 %v2237, 1.4214138
        %v2239 = vmul.f32 %v2238, %v2234
        %v2240 = vadd.f32 %v2239, -0.28449672
        %v2241 = vmul.f32 %v2240, %v2234
        %v2242 = vadd.f32 %v2241, 0.2548296
        %v2243 = vmul.f32 %v2242, %v2234
        %v2244 = vsub.f32 0.0, %v2230
        %v2245 = vmul.f32 %v2244, %v2230
        %v2246 = vmul.f32 %v2245, 1.442695
        %v2247 = vpow.pop %v2246
        %v2248 = vmul.f32 %v2243, %v2247
        %v2249 = vsub.f32 1.0, %v2248
        %vm2250 = vcmp.lt.f32.partialorder %v2229, 0.0
        %v2251 = vsub.f32 0.0, %v2249
        %v2252 = vsel %vm2250, %v2251, %v2249
        %v2253 = vadd.f32 %v2252, 1.0
        %v2254 = vmul.f32 %v2228, %v2253
        %v2255 = vld [vmem:[%s39] sm:$0xff]
        %v2256 = vld [vmem:[%s39 + $0x8] sm:$0xff]
        %v2257 = vld [vmem:[%s39 + $0x10] sm:$0xff]
        %v2258 = vld [vmem:[%s39 + $0x18] sm:$0xff]
        %v2259 = vld [vmem:[%s39 + $0x20] sm:$0xff]
        %v2260 = vld [vmem:[%s39 + $0x28] sm:$0xff]
        %v2261 = vld [vmem:[%s39 + $0x30] sm:$0xff]
        %v2262 = vld [vmem:[%s39 + $0x38] sm:$0xff]
        %v2263 = vld [vmem:[%s39 + $0x40] sm:$0xff]
        %v2264 = vld [vmem:[%s39 + $0x48] sm:$0xff]
        %v2265 = vld [vmem:[%s39 + $0x50] sm:$0xff]
        %v2266 = vld [vmem:[%s39 + $0x58] sm:$0xff]
        %v2267 = vld [vmem:[%s39 + $0x60] sm:$0xff]
        %v2268 = vld [vmem:[%s39 + $0x68] sm:$0xff]
        %v2269 = vld [vmem:[%s39 + $0x70] sm:$0xff]
        %v2270 = vld [vmem:[%s39 + $0x78] sm:$0xff]
        %2271 = vmatprep.subr.mxu0 0.0
        %2272 = vmatpush1.msra.mxu0 %v2270
        %2273 = vmatprep.subr.mxu0 0.0
        %2274 = vmatpush1.msra.mxu0 %v2269
        %2275 = vmatprep.subr.mxu0 0.0
        %2276 = vmatpush1.msra.mxu0 %v2268
        %2277 = vmatprep.subr.mxu0 0.0
        %2278 = vmatpush1.msra.mxu0 %v2267
        %2279 = vmatprep.subr.mxu0 0.0
        %2280 = vmatpush1.msra.mxu0 %v2266
        %2281 = vmatprep.subr.mxu0 0.0
        %2282 = vmatpush1.msra.mxu0 %v2265
        %2283 = vmatprep.subr.mxu0 0.0
        %2284 = vmatpush1.msra.mxu0 %v2264
        %2285 = vmatprep.subr.mxu0 0.0
        %2286 = vmatpush1.msra.mxu0 %v2263
        %2287 = vmatprep.subr.mxu0 0.0
        %2288 = vmatpush1.msra.mxu0 %v2262
        %2289 = vmatprep.subr.mxu0 0.0
        %2290 = vmatpush1.msra.mxu0 %v2261
        %2291 = vmatprep.subr.mxu0 0.0
        %2292 = vmatpush1.msra.mxu0 %v2260
        %2293 = vmatprep.subr.mxu0 0.0
        %2294 = vmatpush1.msra.mxu0 %v2259
        %2295 = vmatprep.subr.mxu0 0.0
        %2296 = vmatpush1.msra.mxu0 %v2258
        %2297 = vmatprep.subr.mxu0 0.0
        %2298 = vmatpush1.msra.mxu0 %v2257
        %2299 = vmatprep.subr.mxu0 0.0
        %2300 = vmatpush1.msra.mxu0 %v2256
        %2301 = vmatprep.subr.mxu0 0.0
        %2302 = vmatpush1.msra.mxu0 %v2255
        %2303 = vmatprep.subr.mxu0 0.0
        %2304 = vmatpush2.msra.mxu0 0.0
        %2305 = vmatprep.subr.mxu0 0.0
        %2306 = vmatpush2.msra.mxu0 0.0
        %2307 = vmatprep.subr.mxu0 0.0
        %2308 = vmatpush2.msra.mxu0 0.0
        %2309 = vmatprep.subr.mxu0 0.0
        %2310 = vmatpush2.msra.mxu0 0.0
        %2311 = vmatprep.subr.mxu0 0.0
        %2312 = vmatpush2.msra.mxu0 0.0
        %2313 = vmatprep.subr.mxu0 0.0
        %2314 = vmatpush2.msra.mxu0 0.0
        %2315 = vmatprep.subr.mxu0 0.0
        %2316 = vmatpush2.msra.mxu0 0.0
        %2317 = vmatprep.subr.mxu0 0.0
        %2318 = vmatpush2.msra.mxu0 0.0
        %2319 = vmatprep.subr.mxu0 0.0
        %2320 = vmatpush2.msra.mxu0 0.0
        %2321 = vmatprep.subr.mxu0 0.0
        %2322 = vmatpush2.msra.mxu0 0.0
        %2323 = vmatprep.subr.mxu0 0.0
        %2324 = vmatpush2.msra.mxu0 0.0
        %2325 = vmatprep.subr.mxu0 0.0
        %2326 = vmatpush2.msra.mxu0 0.0
        %2327 = vmatprep.subr.mxu0 0.0
        %2328 = vmatpush2.msra.mxu0 0.0
        %2329 = vmatprep.subr.mxu0 0.0
        %2330 = vmatpush2.msra.mxu0 0.0
        %2331 = vmatprep.subr.mxu0 0.0
        %2332 = vmatpush2.msra.mxu0 0.0
        %2333 = vmatprep.subr.mxu0 0.0
        %2334 = vmatpush2.msra.mxu0 0.0
        %2335 = vmatprep.mubr.f32.mxu0 0.0
        %2336 = vmatmul.mubr.f32.gmra.mxu0 %v2254
        %v2337 = vpop.f32.mrf.mxu0
        %v2338 = vadd.f32 0.0, %v2337
        %v2339 = vpop.f32.mrf.mxu0
        %2340 = vdwg.mxu0
        %v2341 = vadd.f32 %v2114, %v2338
        %v2342 = vld [vmem:[%s41] sm:$0x1]
        %v2344 = vlaneseq
        %v2345 = vshrl.u32 %v2344, 7
        %v2346 = vsub.s32 0, %v2345
        %v2347 = vrot.slane %v2342, %v2346
        %v2349 = vadd.f32 %v2341, %v2347
        %s2350 = scalar_lea.vmem %s11, 1
        %v2351 = vld [vmem:[%s2350] sm:$0x1]
        %s2352 = scalar_lea.vmem %s13, 1
        %v2353 = vld [vmem:[%s2352] sm:$0x1]
        %v2354 = vsel %vm922, %v2349, 0.0
        %2355 = vadd.xlane.f32.xlu0 %v2354
        %v2356 = vpop.xlane.xlu0 %2355
        %v2357 = vmul.f32 %v2356, %v926
        %v2358 = vsub.f32 %v2349, %v2357
        %v2359 = vmul.f32 %v2358, %v2358
        %v2360 = vsel %vm922, %v2359, 0.0
        %2361 = vadd.xlane.f32.xlu0 %v2360
        %v2362 = vpop.xlane.xlu0 %2361
        %v2363 = vmul.f32 %v2362, %v926
        %v2364 = vadd.f32 %v2363, 1e-05
        %v2365 = vrsqrt.pop %v2364
        %v2366 = vmul.f32 %v2358, %v2365
        %v2368 = vlaneseq
        %v2369 = vshrl.u32 %v2368, 7
        %v2370 = vsub.s32 0, %v2369
        %v2371 = vrot.slane %v2351, %v2370
        %v2373 = vmul.f32 %v2366, %v2371
        %v2375 = vlaneseq
        %v2376 = vshrl.u32 %v2375, 7
        %v2377 = vsub.s32 0, %v2376
        %v2378 = vrot.slane %v2353, %v2377
        %v2380 = vadd.f32 %v2373, %v2378
        %s2381 = scalar_lea.vmem %s15, 32
        %v2382 = vld [vmem:[%s2381] sm:$0xff]
        %v2383 = vld [vmem:[%s2381 + $0x8] sm:$0xff]
        %v2384 = vld [vmem:[%s2381 + $0x10] sm:$0xff]
        %v2385 = vld [vmem:[%s2381 + $0x18] sm:$0xff]
        %s2386 = scalar_lea.vmem %s17, 1
        %v2387 = vld [vmem:[%s2386] sm:$0x1]
        %v2389 = vlaneseq
        %v2390 = vshrl.u32 %v2389, 7
        %v2391 = vsub.s32 0, %v2390
        %v2392 = vrot.slane %v2387, %v2391
        %v2395 = vsel %vm922, %v2380, 0
        %2397 = vmatprep.subr.mxu0 0.0
        %2398 = vmatpush1.msra.mxu0 0.0
        %2399 = vmatprep.subr.mxu0 0.0
        %2400 = vmatpush1.msra.mxu0 0.0
        %2401 = vmatprep.subr.mxu0 0.0
        %2402 = vmatpush1.msra.mxu0 0.0
        %2403 = vmatprep.subr.mxu0 0.0
        %2404 = vmatpush1.msra.mxu0 0.0
        %2405 = vmatprep.subr.mxu0 0.0
        %2406 = vmatpush1.msra.mxu0 0.0
        %2407 = vmatprep.subr.mxu0 0.0
        %2408 = vmatpush1.msra.mxu0 0.0
        %2409 = vmatprep.subr.mxu0 0.0
        %2410 = vmatpush1.msra.mxu0 0.0
        %2411 = vmatprep.subr.mxu0 0.0
        %2412 = vmatpush1.msra.mxu0 0.0
        %2413 = vmatprep.subr.mxu0 0.0
        %2414 = vmatpush1.msra.mxu0 0.0
        %2415 = vmatprep.subr.mxu0 0.0
        %2416 = vmatpush1.msra.mxu0 0.0
        %2417 = vmatprep.subr.mxu0 0.0
        %2418 = vmatpush1.msra.mxu0 0.0
        %2419 = vmatprep.subr.mxu0 0.0
        %2420 = vmatpush1.msra.mxu0 0.0
        %2421 = vmatprep.subr.mxu0 0.0
        %2422 = vmatpush1.msra.mxu0 %v2385
        %2423 = vmatprep.subr.mxu0 0.0
        %2424 = vmatpush1.msra.mxu0 %v2384
        %2425 = vmatprep.subr.mxu0 0.0
        %2426 = vmatpush1.msra.mxu0 %v2383
        %2427 = vmatprep.subr.mxu0 0.0
        %2428 = vmatpush1.msra.mxu0 %v2382
        %2429 = vmatprep.subr.mxu0 0.0
        %2430 = vmatpush2.msra.mxu0 0.0
        %2431 = vmatprep.subr.mxu0 0.0
        %2432 = vmatpush2.msra.mxu0 0.0
        %2433 = vmatprep.subr.mxu0 0.0
        %2434 = vmatpush2.msra.mxu0 0.0
        %2435 = vmatprep.subr.mxu0 0.0
        %2436 = vmatpush2.msra.mxu0 0.0
        %2437 = vmatprep.subr.mxu0 0.0
        %2438 = vmatpush2.msra.mxu0 0.0
        %2439 = vmatprep.subr.mxu0 0.0
        %2440 = vmatpush2.msra.mxu0 0.0
        %2441 = vmatprep.subr.mxu0 0.0
        %2442 = vmatpush2.msra.mxu0 0.0
        %2443 = vmatprep.subr.mxu0 0.0
        %2444 = vmatpush2.msra.mxu0 0.0
        %2445 = vmatprep.subr.mxu0 0.0
        %2446 = vmatpush2.msra.mxu0 0.0
        %2447 = vmatprep.subr.mxu0 0.0
        %2448 = vmatpush2.msra.mxu0 0.0
        %2449 = vmatprep.subr.mxu0 0.0
        %2450 = vmatpush2.msra.mxu0 0.0
        %2451 = vmatprep.subr.mxu0 0.0
        %2452 = vmatpush2.msra.mxu0 0.0
        %2453 = vmatprep.subr.mxu0 0.0
        %2454 = vmatpush2.msra.mxu0 0.0
        %2455 = vmatprep.subr.mxu0 0.0
        %2456 = vmatpush2.msra.mxu0 0.0
        %2457 = vmatprep.subr.mxu0 0.0
        %2458 = vmatpush2.msra.mxu0 0.0
        %2459 = vmatprep.subr.mxu0 0.0
        %2460 = vmatpush2.msra.mxu0 0.0
        %2461 = vmatprep.mubr.f32.mxu0 0.0
        %2462 = vmatmul.mubr.f32.gmra.mxu0 %v2395
        %v2463 = vpop.f32.mrf.mxu0
        %v2464 = vadd.f32 %v2392, %v2463
        %v2465 = vpop.f32.mrf.mxu0
        %2466 = vdwg.mxu0
        %v2467 = vmul.f32 %v2464, 0.35355338
        %s2468 = scalar_lea.vmem %s19, 32
        %v2469 = vld [vmem:[%s2468] sm:$0xff]
        %v2470 = vld [vmem:[%s2468 + $0x8] sm:$0xff]
        %v2471 = vld [vmem:[%s2468 + $0x10] sm:$0xff]
        %v2472 = vld [vmem:[%s2468 + $0x18] sm:$0xff]
        %s2473 = scalar_lea.vmem %s21, 1
        %v2474 = vld [vmem:[%s2473] sm:$0x1]
        %v2476 = vlaneseq
        %v2477 = vshrl.u32 %v2476, 7
        %v2478 = vsub.s32 0, %v2477
        %v2479 = vrot.slane %v2474, %v2478
        %2481 = vmatprep.subr.mxu0 0.0
        %2482 = vmatpush1.msra.mxu0 0.0
        %2483 = vmatprep.subr.mxu0 0.0
        %2484 = vmatpush1.msra.mxu0 0.0
        %2485 = vmatprep.subr.mxu0 0.0
        %2486 = vmatpush1.msra.mxu0 0.0
        %2487 = vmatprep.subr.mxu0 0.0
        %2488 = vmatpush1.msra.mxu0 0.0
        %2489 = vmatprep.subr.mxu0 0.0
        %2490 = vmatpush1.msra.mxu0 0.0
        %2491 = vmatprep.subr.mxu0 0.0
        %2492 = vmatpush1.msra.mxu0 0.0
        %2493 = vmatprep.subr.mxu0 0.0
        %2494 = vmatpush1.msra.mxu0 0.0
        %2495 = vmatprep.subr.mxu0 0.0
        %2496 = vmatpush1.msra.mxu0 0.0
        %2497 = vmatprep.subr.mxu0 0.0
        %2498 = vmatpush1.msra.mxu0 0.0
        %2499 = vmatprep.subr.mxu0 0.0
        %2500 = vmatpush1.msra.mxu0 0.0
        %2501 = vmatprep.subr.mxu0 0.0
        %2502 = vmatpush1.msra.mxu0 0.0
        %2503 = vmatprep.subr.mxu0 0.0
        %2504 = vmatpush1.msra.mxu0 0.0
        %2505 = vmatprep.subr.mxu0 0.0
        %2506 = vmatpush1.msra.mxu0 %v2472
        %2507 = vmatprep.subr.mxu0 0.0
        %2508 = vmatpush1.msra.mxu0 %v2471
        %2509 = vmatprep.subr.mxu0 0.0
        %2510 = vmatpush1.msra.mxu0 %v2470
        %2511 = vmatprep.subr.mxu0 0.0
        %2512 = vmatpush1.msra.mxu0 %v2469
        %2513 = vmatprep.subr.mxu0 0.0
        %2514 = vmatpush2.msra.mxu0 0.0
        %2515 = vmatprep.subr.mxu0 0.0
        %2516 = vmatpush2.msra.mxu0 0.0
        %2517 = vmatprep.subr.mxu0 0.0
        %2518 = vmatpush2.msra.mxu0 0.0
        %2519 = vmatprep.subr.mxu0 0.0
        %2520 = vmatpush2.msra.mxu0 0.0
        %2521 = vmatprep.subr.mxu0 0.0
        %2522 = vmatpush2.msra.mxu0 0.0
        %2523 = vmatprep.subr.mxu0 0.0
        %2524 = vmatpush2.msra.mxu0 0.0
        %2525 = vmatprep.subr.mxu0 0.0
        %2526 = vmatpush2.msra.mxu0 0.0
        %2527 = vmatprep.subr.mxu0 0.0
        %2528 = vmatpush2.msra.mxu0 0.0
        %2529 = vmatprep.subr.mxu0 0.0
        %2530 = vmatpush2.msra.mxu0 0.0
        %2531 = vmatprep.subr.mxu0 0.0
        %2532 = vmatpush2.msra.mxu0 0.0
        %2533 = vmatprep.subr.mxu0 0.0
        %2534 = vmatpush2.msra.mxu0 0.0
        %2535 = vmatprep.subr.mxu0 0.0
        %2536 = vmatpush2.msra.mxu0 0.0
        %2537 = vmatprep.subr.mxu0 0.0
        %2538 = vmatpush2.msra.mxu0 0.0
        %2539 = vmatprep.subr.mxu0 0.0
        %2540 = vmatpush2.msra.mxu0 0.0
        %2541 = vmatprep.subr.mxu0 0.0
        %2542 = vmatpush2.msra.mxu0 0.0
        %2543 = vmatprep.subr.mxu0 0.0
        %2544 = vmatpush2.msra.mxu0 0.0
        %2545 = vmatprep.mubr.f32.mxu0 0.0
        %2546 = vmatmul.mubr.f32.gmra.mxu0 %v2395
        %v2547 = vpop.f32.mrf.mxu0
        %v2548 = vadd.f32 %v2479, %v2547
        %v2549 = vpop.f32.mrf.mxu0
        %2550 = vdwg.mxu0
        %s2551 = scalar_lea.vmem %s23, 32
        %v2552 = vld [vmem:[%s2551] sm:$0xff]
        %v2553 = vld [vmem:[%s2551 + $0x8] sm:$0xff]
        %v2554 = vld [vmem:[%s2551 + $0x10] sm:$0xff]
        %v2555 = vld [vmem:[%s2551 + $0x18] sm:$0xff]
        %s2556 = scalar_lea.vmem %s25, 1
        %v2557 = vld [vmem:[%s2556] sm:$0x1]
        %v2559 = vlaneseq
        %v2560 = vshrl.u32 %v2559, 7
        %v2561 = vsub.s32 0, %v2560
        %v2562 = vrot.slane %v2557, %v2561
        %2564 = vmatprep.subr.mxu0 0.0
        %2565 = vmatpush1.msra.mxu0 0.0
        %2566 = vmatprep.subr.mxu0 0.0
        %2567 = vmatpush1.msra.mxu0 0.0
        %2568 = vmatprep.subr.mxu0 0.0
        %2569 = vmatpush1.msra.mxu0 0.0
        %2570 = vmatprep.subr.mxu0 0.0
        %2571 = vmatpush1.msra.mxu0 0.0
        %2572 = vmatprep.subr.mxu0 0.0
        %2573 = vmatpush1.msra.mxu0 0.0
        %2574 = vmatprep.subr.mxu0 0.0
        %2575 = vmatpush1.msra.mxu0 0.0
        %2576 = vmatprep.subr.mxu0 0.0
        %2577 = vmatpush1.msra.mxu0 0.0
        %2578 = vmatprep.subr.mxu0 0.0
        %2579 = vmatpush1.msra.mxu0 0.0
        %2580 = vmatprep.subr.mxu0 0.0
        %2581 = vmatpush1.msra.mxu0 0.0
        %2582 = vmatprep.subr.mxu0 0.0
        %2583 = vmatpush1.msra.mxu0 0.0
        %2584 = vmatprep.subr.mxu0 0.0
        %2585 = vmatpush1.msra.mxu0 0.0
        %2586 = vmatprep.subr.mxu0 0.0
        %2587 = vmatpush1.msra.mxu0 0.0
        %2588 = vmatprep.subr.mxu0 0.0
        %2589 = vmatpush1.msra.mxu0 %v2555
        %2590 = vmatprep.subr.mxu0 0.0
        %2591 = vmatpush1.msra.mxu0 %v2554
        %2592 = vmatprep.subr.mxu0 0.0
        %2593 = vmatpush1.msra.mxu0 %v2553
        %2594 = vmatprep.subr.mxu0 0.0
        %2595 = vmatpush1.msra.mxu0 %v2552
        %2596 = vmatprep.subr.mxu0 0.0
        %2597 = vmatpush2.msra.mxu0 0.0
        %2598 = vmatprep.subr.mxu0 0.0
        %2599 = vmatpush2.msra.mxu0 0.0
        %2600 = vmatprep.subr.mxu0 0.0
        %2601 = vmatpush2.msra.mxu0 0.0
        %2602 = vmatprep.subr.mxu0 0.0
        %2603 = vmatpush2.msra.mxu0 0.0
        %2604 = vmatprep.subr.mxu0 0.0
        %2605 = vmatpush2.msra.mxu0 0.0
        %2606 = vmatprep.subr.mxu0 0.0
        %2607 = vmatpush2.msra.mxu0 0.0
        %2608 = vmatprep.subr.mxu0 0.0
        %2609 = vmatpush2.msra.mxu0 0.0
        %2610 = vmatprep.subr.mxu0 0.0
        %2611 = vmatpush2.msra.mxu0 0.0
        %2612 = vmatprep.subr.mxu0 0.0
        %2613 = vmatpush2.msra.mxu0 0.0
        %2614 = vmatprep.subr.mxu0 0.0
        %2615 = vmatpush2.msra.mxu0 0.0
        %2616 = vmatprep.subr.mxu0 0.0
        %2617 = vmatpush2.msra.mxu0 0.0
        %2618 = vmatprep.subr.mxu0 0.0
        %2619 = vmatpush2.msra.mxu0 0.0
        %2620 = vmatprep.subr.mxu0 0.0
        %2621 = vmatpush2.msra.mxu0 0.0
        %2622 = vmatprep.subr.mxu0 0.0
        %2623 = vmatpush2.msra.mxu0 0.0
        %2624 = vmatprep.subr.mxu0 0.0
        %2625 = vmatpush2.msra.mxu0 0.0
        %2626 = vmatprep.subr.mxu0 0.0
        %2627 = vmatpush2.msra.mxu0 0.0
        %2628 = vmatprep.mubr.f32.mxu0 0.0
        %2629 = vmatmul.mubr.f32.gmra.mxu0 %v2395
        %v2630 = vpop.f32.mrf.mxu0
        %v2631 = vadd.f32 %v2562, %v2630
        %v2632 = vpop.f32.mrf.mxu0
        %2633 = vdwg.mxu0
        %v2634 = vmul.f32 %v2467, %v914
        %v2636 = vsel %vm922, %v2467, 0
        %2638 = vmatprep.subr.mxu0 0.0
        %2639 = vmatpush1.msra.mxu0 0.0
        %2640 = vmatprep.subr.mxu0 0.0
        %2641 = vmatpush1.msra.mxu0 0.0
        %2642 = vmatprep.subr.mxu0 0.0
        %2643 = vmatpush1.msra.mxu0 0.0
        %2644 = vmatprep.subr.mxu0 0.0
        %2645 = vmatpush1.msra.mxu0 0.0
        %2646 = vmatprep.subr.mxu0 0.0
        %2647 = vmatpush1.msra.mxu0 0.0
        %2648 = vmatprep.subr.mxu0 0.0
        %2649 = vmatpush1.msra.mxu0 0.0
        %2650 = vmatprep.subr.mxu0 0.0
        %2651 = vmatpush1.msra.mxu0 0.0
        %2652 = vmatprep.subr.mxu0 0.0
        %2653 = vmatpush1.msra.mxu0 0.0
        %2654 = vmatprep.subr.mxu0 0.0
        %2655 = vmatpush1.msra.mxu0 0.0
        %2656 = vmatprep.subr.mxu0 0.0
        %2657 = vmatpush1.msra.mxu0 0.0
        %2658 = vmatprep.subr.mxu0 0.0
        %2659 = vmatpush1.msra.mxu0 0.0
        %2660 = vmatprep.subr.mxu0 0.0
        %2661 = vmatpush1.msra.mxu0 0.0
        %2662 = vmatprep.subr.mxu0 0.0
        %2663 = vmatpush1.msra.mxu0 %v919
        %2664 = vmatprep.subr.mxu0 0.0
        %2665 = vmatpush1.msra.mxu0 %v918
        %2666 = vmatprep.subr.mxu0 0.0
        %2667 = vmatpush1.msra.mxu0 %v917
        %2668 = vmatprep.subr.mxu0 0.0
        %2669 = vmatpush1.msra.mxu0 %v916
        %2670 = vmatprep.subr.mxu0 0.0
        %2671 = vmatpush2.msra.mxu0 0.0
        %2672 = vmatprep.subr.mxu0 0.0
        %2673 = vmatpush2.msra.mxu0 0.0
        %2674 = vmatprep.subr.mxu0 0.0
        %2675 = vmatpush2.msra.mxu0 0.0
        %2676 = vmatprep.subr.mxu0 0.0
        %2677 = vmatpush2.msra.mxu0 0.0
        %2678 = vmatprep.subr.mxu0 0.0
        %2679 = vmatpush2.msra.mxu0 0.0
        %2680 = vmatprep.subr.mxu0 0.0
        %2681 = vmatpush2.msra.mxu0 0.0
        %2682 = vmatprep.subr.mxu0 0.0
        %2683 = vmatpush2.msra.mxu0 0.0
        %2684 = vmatprep.subr.mxu0 0.0
        %2685 = vmatpush2.msra.mxu0 0.0
        %2686 = vmatprep.subr.mxu0 0.0
        %2687 = vmatpush2.msra.mxu0 0.0
        %2688 = vmatprep.subr.mxu0 0.0
        %2689 = vmatpush2.msra.mxu0 0.0
        %2690 = vmatprep.subr.mxu0 0.0
        %2691 = vmatpush2.msra.mxu0 0.0
        %2692 = vmatprep.subr.mxu0 0.0
        %2693 = vmatpush2.msra.mxu0 0.0
        %2694 = vmatprep.subr.mxu0 0.0
        %2695 = vmatpush2.msra.mxu0 0.0
        %2696 = vmatprep.subr.mxu0 0.0
        %2697 = vmatpush2.msra.mxu0 0.0
        %2698 = vmatprep.subr.mxu0 0.0
        %2699 = vmatpush2.msra.mxu0 0.0
        %2700 = vmatprep.subr.mxu0 0.0
        %2701 = vmatpush2.msra.mxu0 0.0
        %2702 = vmatprep.mubr.f32.mxu0 0.0
        %2703 = vmatmul.mubr.f32.gmra.mxu0 %v2636
        %v2704 = vpop.f32.mrf.mxu0
        %v2705 = vadd.f32 0.0, %v2704
        %v2706 = vpop.f32.mrf.mxu0
        %2707 = vdwg.mxu0
        %v2708 = vmul.f32 %v2705, %v915
        %v2709 = vadd.f32 %v2634, %v2708
        %v2710 = vmul.f32 %v2548, %v914
        %v2712 = vsel %vm922, %v2548, 0
        %2714 = vmatprep.subr.mxu0 0.0
        %2715 = vmatpush1.msra.mxu0 0.0
        %2716 = vmatprep.subr.mxu0 0.0
        %2717 = vmatpush1.msra.mxu0 0.0
        %2718 = vmatprep.subr.mxu0 0.0
        %2719 = vmatpush1.msra.mxu0 0.0
        %2720 = vmatprep.subr.mxu0 0.0
        %2721 = vmatpush1.msra.mxu0 0.0
        %2722 = vmatprep.subr.mxu0 0.0
        %2723 = vmatpush1.msra.mxu0 0.0
        %2724 = vmatprep.subr.mxu0 0.0
        %2725 = vmatpush1.msra.mxu0 0.0
        %2726 = vmatprep.subr.mxu0 0.0
        %2727 = vmatpush1.msra.mxu0 0.0
        %2728 = vmatprep.subr.mxu0 0.0
        %2729 = vmatpush1.msra.mxu0 0.0
        %2730 = vmatprep.subr.mxu0 0.0
        %2731 = vmatpush1.msra.mxu0 0.0
        %2732 = vmatprep.subr.mxu0 0.0
        %2733 = vmatpush1.msra.mxu0 0.0
        %2734 = vmatprep.subr.mxu0 0.0
        %2735 = vmatpush1.msra.mxu0 0.0
        %2736 = vmatprep.subr.mxu0 0.0
        %2737 = vmatpush1.msra.mxu0 0.0
        %2738 = vmatprep.subr.mxu0 0.0
        %2739 = vmatpush1.msra.mxu0 %v919
        %2740 = vmatprep.subr.mxu0 0.0
        %2741 = vmatpush1.msra.mxu0 %v918
        %2742 = vmatprep.subr.mxu0 0.0
        %2743 = vmatpush1.msra.mxu0 %v917
        %2744 = vmatprep.subr.mxu0 0.0
        %2745 = vmatpush1.msra.mxu0 %v916
        %2746 = vmatprep.subr.mxu0 0.0
        %2747 = vmatpush2.msra.mxu0 0.0
        %2748 = vmatprep.subr.mxu0 0.0
        %2749 = vmatpush2.msra.mxu0 0.0
        %2750 = vmatprep.subr.mxu0 0.0
        %2751 = vmatpush2.msra.mxu0 0.0
        %2752 = vmatprep.subr.mxu0 0.0
        %2753 = vmatpush2.msra.mxu0 0.0
        %2754 = vmatprep.subr.mxu0 0.0
        %2755 = vmatpush2.msra.mxu0 0.0
        %2756 = vmatprep.subr.mxu0 0.0
        %2757 = vmatpush2.msra.mxu0 0.0
        %2758 = vmatprep.subr.mxu0 0.0
        %2759 = vmatpush2.msra.mxu0 0.0
        %2760 = vmatprep.subr.mxu0 0.0
        %2761 = vmatpush2.msra.mxu0 0.0
        %2762 = vmatprep.subr.mxu0 0.0
        %2763 = vmatpush2.msra.mxu0 0.0
        %2764 = vmatprep.subr.mxu0 0.0
        %2765 = vmatpush2.msra.mxu0 0.0
        %2766 = vmatprep.subr.mxu0 0.0
        %2767 = vmatpush2.msra.mxu0 0.0
        %2768 = vmatprep.subr.mxu0 0.0
        %2769 = vmatpush2.msra.mxu0 0.0
        %2770 = vmatprep.subr.mxu0 0.0
        %2771 = vmatpush2.msra.mxu0 0.0
        %2772 = vmatprep.subr.mxu0 0.0
        %2773 = vmatpush2.msra.mxu0 0.0
        %2774 = vmatprep.subr.mxu0 0.0
        %2775 = vmatpush2.msra.mxu0 0.0
        %2776 = vmatprep.subr.mxu0 0.0
        %2777 = vmatpush2.msra.mxu0 0.0
        %2778 = vmatprep.mubr.f32.mxu0 0.0
        %2779 = vmatmul.mubr.f32.gmra.mxu0 %v2712
        %v2780 = vpop.f32.mrf.mxu0
        %v2781 = vadd.f32 0.0, %v2780
        %v2782 = vpop.f32.mrf.mxu0
        %2783 = vdwg.mxu0
        %v2784 = vmul.f32 %v2781, %v915
        %v2785 = vadd.f32 %v2710, %v2784
        %v2787 = vsel %vm1356, %v2709, 0
        %v2790 = vsel %vm1356, %v2785, 0
        %2792 = vmatprep.subr.mxu0 0.0
        %2793 = vmatpush1.xpose.msra.mxu0 0.0
        %2794 = vmatprep.subr.mxu0 0.0
        %2795 = vmatpush1.xpose.msra.mxu0 0.0
        %2796 = vmatprep.subr.mxu0 0.0
        %2797 = vmatpush1.xpose.msra.mxu0 0.0
        %2798 = vmatprep.subr.mxu0 0.0
        %2799 = vmatpush1.xpose.msra.mxu0 0.0
        %2800 = vmatprep.subr.mxu0 0.0
        %2801 = vmatpush1.xpose.msra.mxu0 0.0
        %2802 = vmatprep.subr.mxu0 0.0
        %2803 = vmatpush1.xpose.msra.mxu0 0.0
        %2804 = vmatprep.subr.mxu0 0.0
        %2805 = vmatpush1.xpose.msra.mxu0 0.0
        %2806 = vmatprep.subr.mxu0 0.0
        %2807 = vmatpush1.xpose.msra.mxu0 0.0
        %2808 = vmatprep.subr.mxu0 0.0
        %2809 = vmatpush1.xpose.msra.mxu0 0.0
        %2810 = vmatprep.subr.mxu0 0.0
        %2811 = vmatpush1.xpose.msra.mxu0 0.0
        %2812 = vmatprep.subr.mxu0 0.0
        %2813 = vmatpush1.xpose.msra.mxu0 0.0
        %2814 = vmatprep.subr.mxu0 0.0
        %2815 = vmatpush1.xpose.msra.mxu0 0.0
        %2816 = vmatprep.subr.mxu0 0.0
        %2817 = vmatpush1.xpose.msra.mxu0 0.0
        %2818 = vmatprep.subr.mxu0 0.0
        %2819 = vmatpush1.xpose.msra.mxu0 0.0
        %2820 = vmatprep.subr.mxu0 0.0
        %2821 = vmatpush1.xpose.msra.mxu0 0.0
        %2822 = vmatprep.subr.mxu0 0.0
        %2823 = vmatpush1.xpose.msra.mxu0 %v2790
        %2824 = vmatprep.subr.mxu0 0.0
        %2825 = vmatpush2.xpose.msra.mxu0 0.0
        %2826 = vmatprep.subr.mxu0 0.0
        %2827 = vmatpush2.xpose.msra.mxu0 0.0
        %2828 = vmatprep.subr.mxu0 0.0
        %2829 = vmatpush2.xpose.msra.mxu0 0.0
        %2830 = vmatprep.subr.mxu0 0.0
        %2831 = vmatpush2.xpose.msra.mxu0 0.0
        %2832 = vmatprep.subr.mxu0 0.0
        %2833 = vmatpush2.xpose.msra.mxu0 0.0
        %2834 = vmatprep.subr.mxu0 0.0
        %2835 = vmatpush2.xpose.msra.mxu0 0.0
        %2836 = vmatprep.subr.mxu0 0.0
        %2837 = vmatpush2.xpose.msra.mxu0 0.0
        %2838 = vmatprep.subr.mxu0 0.0
        %2839 = vmatpush2.xpose.msra.mxu0 0.0
        %2840 = vmatprep.subr.mxu0 0.0
        %2841 = vmatpush2.xpose.msra.mxu0 0.0
        %2842 = vmatprep.subr.mxu0 0.0
        %2843 = vmatpush2.xpose.msra.mxu0 0.0
        %2844 = vmatprep.subr.mxu0 0.0
        %2845 = vmatpush2.xpose.msra.mxu0 0.0
        %2846 = vmatprep.subr.mxu0 0.0
        %2847 = vmatpush2.xpose.msra.mxu0 0.0
        %2848 = vmatprep.subr.mxu0 0.0
        %2849 = vmatpush2.xpose.msra.mxu0 0.0
        %2850 = vmatprep.subr.mxu0 0.0
        %2851 = vmatpush2.xpose.msra.mxu0 0.0
        %2852 = vmatprep.subr.mxu0 0.0
        %2853 = vmatpush2.xpose.msra.mxu0 0.0
        %2854 = vmatprep.subr.mxu0 0.0
        %2855 = vmatpush2.xpose.msra.mxu0 0.0
        %2856 = vmatprep.mubr.f32.mxu0 0.0
        %2857 = vmatmul.mubr.f32.gmra.mxu0 %v2787
        %v2858 = vpop.f32.mrf.mxu0
        %v2859 = vadd.f32 %v1354, %v2858
        %v2860 = vpop.f32.mrf.mxu0
        %2861 = vdwg.mxu0
        %v2862 = vsel %vm1356, %v2859, -inf
        %2863 = vmax.xlane.f32.xlu0 %v2862
        %v2864 = vpop.xlane.xlu0 %2863
        %v2865 = vsub.f32 %v2859, %v2864
        %v2866 = vmul.f32 %v2865, 1.442695
        %v2867 = vpow.pop %v2866
        %v2868 = vsel %vm1356, %v2867, 0.0
        %2869 = vadd.xlane.f32.xlu0 %v2868
        %v2870 = vpop.xlane.xlu0 %2869
        %v2871 = vrcp.pop %v2870
        %v2872 = vmul.f32 %v2867, %v2871
        %v2874 = vsel %vm1356, %v2872, 0
        %2876 = vmatprep.subr.mxu0 0.0
        %2877 = vmatpush1.msra.mxu0 0.0
        %2878 = vmatprep.subr.mxu0 0.0
        %2879 = vmatpush1.msra.mxu0 0.0
        %2880 = vmatprep.subr.mxu0 0.0
        %2881 = vmatpush1.msra.mxu0 0.0
        %2882 = vmatprep.subr.mxu0 0.0
        %2883 = vmatpush1.msra.mxu0 0.0
        %2884 = vmatprep.subr.mxu0 0.0
        %2885 = vmatpush1.msra.mxu0 0.0
        %2886 = vmatprep.subr.mxu0 0.0
        %2887 = vmatpush1.msra.mxu0 0.0
        %2888 = vmatprep.subr.mxu0 0.0
        %2889 = vmatpush1.msra.mxu0 0.0
        %2890 = vmatprep.subr.mxu0 0.0
        %2891 = vmatpush1.msra.mxu0 0.0
        %2892 = vmatprep.subr.mxu0 0.0
        %2893 = vmatpush1.msra.mxu0 0.0
        %2894 = vmatprep.subr.mxu0 0.0
        %2895 = vmatpush1.msra.mxu0 0.0
        %2896 = vmatprep.subr.mxu0 0.0
        %2897 = vmatpush1.msra.mxu0 0.0
        %2898 = vmatprep.subr.mxu0 0.0
        %2899 = vmatpush1.msra.mxu0 0.0
        %2900 = vmatprep.subr.mxu0 0.0
        %2901 = vmatpush1.msra.mxu0 0.0
        %2902 = vmatprep.subr.mxu0 0.0
        %2903 = vmatpush1.msra.mxu0 0.0
        %2904 = vmatprep.subr.mxu0 0.0
        %2905 = vmatpush1.msra.mxu0 0.0
        %2906 = vmatprep.subr.mxu0 0.0
        %2907 = vmatpush1.msra.mxu0 %v2631
        %2908 = vmatprep.subr.mxu0 0.0
        %2909 = vmatpush2.msra.mxu0 0.0
        %2910 = vmatprep.subr.mxu0 0.0
        %2911 = vmatpush2.msra.mxu0 0.0
        %2912 = vmatprep.subr.mxu0 0.0
        %2913 = vmatpush2.msra.mxu0 0.0
        %2914 = vmatprep.subr.mxu0 0.0
        %2915 = vmatpush2.msra.mxu0 0.0
        %2916 = vmatprep.subr.mxu0 0.0
        %2917 = vmatpush2.msra.mxu0 0.0
        %2918 = vmatprep.subr.mxu0 0.0
        %2919 = vmatpush2.msra.mxu0 0.0
        %2920 = vmatprep.subr.mxu0 0.0
        %2921 = vmatpush2.msra.mxu0 0.0
        %2922 = vmatprep.subr.mxu0 0.0
        %2923 = vmatpush2.msra.mxu0 0.0
        %2924 = vmatprep.subr.mxu0 0.0
        %2925 = vmatpush2.msra.mxu0 0.0
        %2926 = vmatprep.subr.mxu0 0.0
        %2927 = vmatpush2.msra.mxu0 0.0
        %2928 = vmatprep.subr.mxu0 0.0
        %2929 = vmatpush2.msra.mxu0 0.0
        %2930 = vmatprep.subr.mxu0 0.0
        %2931 = vmatpush2.msra.mxu0 0.0
        %2932 = vmatprep.subr.mxu0 0.0
        %2933 = vmatpush2.msra.mxu0 0.0
        %2934 = vmatprep.subr.mxu0 0.0
        %2935 = vmatpush2.msra.mxu0 0.0
        %2936 = vmatprep.subr.mxu0 0.0
        %2937 = vmatpush2.msra.mxu0 0.0
        %2938 = vmatprep.subr.mxu0 0.0
        %2939 = vmatpush2.msra.mxu0 0.0
        %2940 = vmatprep.mubr.f32.mxu0 0.0
        %2941 = vmatmul.mubr.f32.gmra.mxu0 %v2874
        %v2942 = vpop.f32.mrf.mxu0
        %v2943 = vadd.f32 0.0, %v2942
        %v2944 = vpop.f32.mrf.mxu0
        %2945 = vdwg.mxu0
        %2946 = vrot.lane.b32.xlu0 %v2709, 120
        %v2947 = vpop.permute.xlu0 %2946
        %2948 = vrot.lane.b32.xlu0 %v2785, 120
        %v2949 = vpop.permute.xlu0 %2948
        %v2950 = vsel %vm1356, %v2947, 0
        %v2952 = vsel %vm1356, %v2949, 0
        %2954 = vmatprep.subr.mxu0 0.0
        %2955 = vmatpush1.xpose.msra.mxu0 0.0
        %2956 = vmatprep.subr.mxu0 0.0
        %2957 = vmatpush1.xpose.msra.mxu0 0.0
        %2958 = vmatprep.subr.mxu0 0.0
        %2959 = vmatpush1.xpose.msra.mxu0 0.0
        %2960 = vmatprep.subr.mxu0 0.0
        %2961 = vmatpush1.xpose.msra.mxu0 0.0
        %2962 = vmatprep.subr.mxu0 0.0
        %2963 = vmatpush1.xpose.msra.mxu0 0.0
        %2964 = vmatprep.subr.mxu0 0.0
        %2965 = vmatpush1.xpose.msra.mxu0 0.0
        %2966 = vmatprep.subr.mxu0 0.0
        %2967 = vmatpush1.xpose.msra.mxu0 0.0
        %2968 = vmatprep.subr.mxu0 0.0
        %2969 = vmatpush1.xpose.msra.mxu0 0.0
        %2970 = vmatprep.subr.mxu0 0.0
        %2971 = vmatpush1.xpose.msra.mxu0 0.0
        %2972 = vmatprep.subr.mxu0 0.0
        %2973 = vmatpush1.xpose.msra.mxu0 0.0
        %2974 = vmatprep.subr.mxu0 0.0
        %2975 = vmatpush1.xpose.msra.mxu0 0.0
        %2976 = vmatprep.subr.mxu0 0.0
        %2977 = vmatpush1.xpose.msra.mxu0 0.0
        %2978 = vmatprep.subr.mxu0 0.0
        %2979 = vmatpush1.xpose.msra.mxu0 0.0
        %2980 = vmatprep.subr.mxu0 0.0
        %2981 = vmatpush1.xpose.msra.mxu0 0.0
        %2982 = vmatprep.subr.mxu0 0.0
        %2983 = vmatpush1.xpose.msra.mxu0 0.0
        %2984 = vmatprep.subr.mxu0 0.0
        %2985 = vmatpush1.xpose.msra.mxu0 %v2952
        %2986 = vmatprep.subr.mxu0 0.0
        %2987 = vmatpush2.xpose.msra.mxu0 0.0
        %2988 = vmatprep.subr.mxu0 0.0
        %2989 = vmatpush2.xpose.msra.mxu0 0.0
        %2990 = vmatprep.subr.mxu0 0.0
        %2991 = vmatpush2.xpose.msra.mxu0 0.0
        %2992 = vmatprep.subr.mxu0 0.0
        %2993 = vmatpush2.xpose.msra.mxu0 0.0
        %2994 = vmatprep.subr.mxu0 0.0
        %2995 = vmatpush2.xpose.msra.mxu0 0.0
        %2996 = vmatprep.subr.mxu0 0.0
        %2997 = vmatpush2.xpose.msra.mxu0 0.0
        %2998 = vmatprep.subr.mxu0 0.0
        %2999 = vmatpush2.xpose.msra.mxu0 0.0
        %3000 = vmatprep.subr.mxu0 0.0
        %3001 = vmatpush2.xpose.msra.mxu0 0.0
        %3002 = vmatprep.subr.mxu0 0.0
        %3003 = vmatpush2.xpose.msra.mxu0 0.0
        %3004 = vmatprep.subr.mxu0 0.0
        %3005 = vmatpush2.xpose.msra.mxu0 0.0
        %3006 = vmatprep.subr.mxu0 0.0
        %3007 = vmatpush2.xpose.msra.mxu0 0.0
        %3008 = vmatprep.subr.mxu0 0.0
        %3009 = vmatpush2.xpose.msra.mxu0 0.0
        %3010 = vmatprep.subr.mxu0 0.0
        %3011 = vmatpush2.xpose.msra.mxu0 0.0
        %3012 = vmatprep.subr.mxu0 0.0
        %3013 = vmatpush2.xpose.msra.mxu0 0.0
        %3014 = vmatprep.subr.mxu0 0.0
        %3015 = vmatpush2.xpose.msra.mxu0 0.0
        %3016 = vmatprep.subr.mxu0 0.0
        %3017 = vmatpush2.xpose.msra.mxu0 0.0
        %3018 = vmatprep.mubr.f32.mxu0 0.0
        %3019 = vmatmul.mubr.f32.gmra.mxu0 %v2950
        %v3020 = vpop.f32.mrf.mxu0
        %v3021 = vadd.f32 %v1354, %v3020
        %v3022 = vpop.f32.mrf.mxu0
        %3023 = vdwg.mxu0
        %v3024 = vsel %vm1356, %v3021, -inf
        %3025 = vmax.xlane.f32.xlu0 %v3024
        %v3026 = vpop.xlane.xlu0 %3025
        %v3027 = vsub.f32 %v3021, %v3026
        %v3028 = vmul.f32 %v3027, 1.442695
        %v3029 = vpow.pop %v3028
        %v3030 = vsel %vm1356, %v3029, 0.0
        %3031 = vadd.xlane.f32.xlu0 %v3030
        %v3032 = vpop.xlane.xlu0 %3031
        %v3033 = vrcp.pop %v3032
        %v3034 = vmul.f32 %v3029, %v3033
        %3036 = vrot.lane.b32.xlu0 %v2631, 120
        %v3037 = vpop.permute.xlu0 %3036
        %v3040 = vsel %vm1356, %v3034, 0
        %3042 = vmatprep.subr.mxu0 0.0
        %3043 = vmatpush1.msra.mxu0 0.0
        %3044 = vmatprep.subr.mxu0 0.0
        %3045 = vmatpush1.msra.mxu0 0.0
        %3046 = vmatprep.subr.mxu0 0.0
        %3047 = vmatpush1.msra.mxu0 0.0
        %3048 = vmatprep.subr.mxu0 0.0
        %3049 = vmatpush1.msra.mxu0 0.0
        %3050 = vmatprep.subr.mxu0 0.0
        %3051 = vmatpush1.msra.mxu0 0.0
        %3052 = vmatprep.subr.mxu0 0.0
        %3053 = vmatpush1.msra.mxu0 0.0
        %3054 = vmatprep.subr.mxu0 0.0
        %3055 = vmatpush1.msra.mxu0 0.0
        %3056 = vmatprep.subr.mxu0 0.0
        %3057 = vmatpush1.msra.mxu0 0.0
        %3058 = vmatprep.subr.mxu0 0.0
        %3059 = vmatpush1.msra.mxu0 0.0
        %3060 = vmatprep.subr.mxu0 0.0
        %3061 = vmatpush1.msra.mxu0 0.0
        %3062 = vmatprep.subr.mxu0 0.0
        %3063 = vmatpush1.msra.mxu0 0.0
        %3064 = vmatprep.subr.mxu0 0.0
        %3065 = vmatpush1.msra.mxu0 0.0
        %3066 = vmatprep.subr.mxu0 0.0
        %3067 = vmatpush1.msra.mxu0 0.0
        %3068 = vmatprep.subr.mxu0 0.0
        %3069 = vmatpush1.msra.mxu0 0.0
        %3070 = vmatprep.subr.mxu0 0.0
        %3071 = vmatpush1.msra.mxu0 0.0
        %3072 = vmatprep.subr.mxu0 0.0
        %3073 = vmatpush1.msra.mxu0 %v3037
        %3074 = vmatprep.subr.mxu0 0.0
        %3075 = vmatpush2.msra.mxu0 0.0
        %3076 = vmatprep.subr.mxu0 0.0
        %3077 = vmatpush2.msra.mxu0 0.0
        %3078 = vmatprep.subr.mxu0 0.0
        %3079 = vmatpush2.msra.mxu0 0.0
        %3080 = vmatprep.subr.mxu0 0.0
        %3081 = vmatpush2.msra.mxu0 0.0
        %3082 = vmatprep.subr.mxu0 0.0
        %3083 = vmatpush2.msra.mxu0 0.0
        %3084 = vmatprep.subr.mxu0 0.0
        %3085 = vmatpush2.msra.mxu0 0.0
        %3086 = vmatprep.subr.mxu0 0.0
        %3087 = vmatpush2.msra.mxu0 0.0
        %3088 = vmatprep.subr.mxu0 0.0
        %3089 = vmatpush2.msra.mxu0 0.0
        %3090 = vmatprep.subr.mxu0 0.0
        %3091 = vmatpush2.msra.mxu0 0.0
        %3092 = vmatprep.subr.mxu0 0.0
        %3093 = vmatpush2.msra.mxu0 0.0
        %3094 = vmatprep.subr.mxu0 0.0
        %3095 = vmatpush2.msra.mxu0 0.0
        %3096 = vmatprep.subr.mxu0 0.0
        %3097 = vmatpush2.msra.mxu0 0.0
        %3098 = vmatprep.subr.mxu0 0.0
        %3099 = vmatpush2.msra.mxu0 0.0
        %3100 = vmatprep.subr.mxu0 0.0
        %3101 = vmatpush2.msra.mxu0 0.0
        %3102 = vmatprep.subr.mxu0 0.0
        %3103 = vmatpush2.msra.mxu0 0.0
        %3104 = vmatprep.subr.mxu0 0.0
        %3105 = vmatpush2.msra.mxu0 0.0
        %3106 = vmatprep.mubr.f32.mxu0 0.0
        %3107 = vmatmul.mubr.f32.gmra.mxu0 %v3040
        %v3108 = vpop.f32.mrf.mxu0
        %v3109 = vadd.f32 0.0, %v3108
        %v3110 = vpop.f32.mrf.mxu0
        %3111 = vdwg.mxu0
        %3112 = vrot.lane.b32.xlu0 %v2709, 112
        %v3113 = vpop.permute.xlu0 %3112
        %3114 = vrot.lane.b32.xlu0 %v2785, 112
        %v3115 = vpop.permute.xlu0 %3114
        %v3116 = vsel %vm1356, %v3113, 0
        %v3118 = vsel %vm1356, %v3115, 0
        %3120 = vmatprep.subr.mxu0 0.0
        %3121 = vmatpush1.xpose.msra.mxu0 0.0
        %3122 = vmatprep.subr.mxu0 0.0
        %3123 = vmatpush1.xpose.msra.mxu0 0.0
        %3124 = vmatprep.subr.mxu0 0.0
        %3125 = vmatpush1.xpose.msra.mxu0 0.0
        %3126 = vmatprep.subr.mxu0 0.0
        %3127 = vmatpush1.xpose.msra.mxu0 0.0
        %3128 = vmatprep.subr.mxu0 0.0
        %3129 = vmatpush1.xpose.msra.mxu0 0.0
        %3130 = vmatprep.subr.mxu0 0.0
        %3131 = vmatpush1.xpose.msra.mxu0 0.0
        %3132 = vmatprep.subr.mxu0 0.0
        %3133 = vmatpush1.xpose.msra.mxu0 0.0
        %3134 = vmatprep.subr.mxu0 0.0
        %3135 = vmatpush1.xpose.msra.mxu0 0.0
        %3136 = vmatprep.subr.mxu0 0.0
        %3137 = vmatpush1.xpose.msra.mxu0 0.0
        %3138 = vmatprep.subr.mxu0 0.0
        %3139 = vmatpush1.xpose.msra.mxu0 0.0
        %3140 = vmatprep.subr.mxu0 0.0
        %3141 = vmatpush1.xpose.msra.mxu0 0.0
        %3142 = vmatprep.subr.mxu0 0.0
        %3143 = vmatpush1.xpose.msra.mxu0 0.0
        %3144 = vmatprep.subr.mxu0 0.0
        %3145 = vmatpush1.xpose.msra.mxu0 0.0
        %3146 = vmatprep.subr.mxu0 0.0
        %3147 = vmatpush1.xpose.msra.mxu0 0.0
        %3148 = vmatprep.subr.mxu0 0.0
        %3149 = vmatpush1.xpose.msra.mxu0 0.0
        %3150 = vmatprep.subr.mxu0 0.0
        %3151 = vmatpush1.xpose.msra.mxu0 %v3118
        %3152 = vmatprep.subr.mxu0 0.0
        %3153 = vmatpush2.xpose.msra.mxu0 0.0
        %3154 = vmatprep.subr.mxu0 0.0
        %3155 = vmatpush2.xpose.msra.mxu0 0.0
        %3156 = vmatprep.subr.mxu0 0.0
        %3157 = vmatpush2.xpose.msra.mxu0 0.0
        %3158 = vmatprep.subr.mxu0 0.0
        %3159 = vmatpush2.xpose.msra.mxu0 0.0
        %3160 = vmatprep.subr.mxu0 0.0
        %3161 = vmatpush2.xpose.msra.mxu0 0.0
        %3162 = vmatprep.subr.mxu0 0.0
        %3163 = vmatpush2.xpose.msra.mxu0 0.0
        %3164 = vmatprep.subr.mxu0 0.0
        %3165 = vmatpush2.xpose.msra.mxu0 0.0
        %3166 = vmatprep.subr.mxu0 0.0
        %3167 = vmatpush2.xpose.msra.mxu0 0.0
        %3168 = vmatprep.subr.mxu0 0.0
        %3169 = vmatpush2.xpose.msra.mxu0 0.0
        %3170 = vmatprep.subr.mxu0 0.0
        %3171 = vmatpush2.xpose.msra.mxu0 0.0
        %3172 = vmatprep.subr.mxu0 0.0
        %3173 = vmatpush2.xpose.msra.mxu0 0.0
        %3174 = vmatprep.subr.mxu0 0.0
        %3175 = vmatpush2.xpose.msra.mxu0 0.0
        %3176 = vmatprep.subr.mxu0 0.0
        %3177 = vmatpush2.xpose.msra.mxu0 0.0
        %3178 = vmatprep.subr.mxu0 0.0
        %3179 = vmatpush2.xpose.msra.mxu0 0.0
        %3180 = vmatprep.subr.mxu0 0.0
        %3181 = vmatpush2.xpose.msra.mxu0 0.0
        %3182 = vmatprep.subr.mxu0 0.0
        %3183 = vmatpush2.xpose.msra.mxu0 0.0
        %3184 = vmatprep.mubr.f32.mxu0 0.0
        %3185 = vmatmul.mubr.f32.gmra.mxu0 %v3116
        %v3186 = vpop.f32.mrf.mxu0
        %v3187 = vadd.f32 %v1354, %v3186
        %v3188 = vpop.f32.mrf.mxu0
        %3189 = vdwg.mxu0
        %v3190 = vsel %vm1356, %v3187, -inf
        %3191 = vmax.xlane.f32.xlu0 %v3190
        %v3192 = vpop.xlane.xlu0 %3191
        %v3193 = vsub.f32 %v3187, %v3192
        %v3194 = vmul.f32 %v3193, 1.442695
        %v3195 = vpow.pop %v3194
        %v3196 = vsel %vm1356, %v3195, 0.0
        %3197 = vadd.xlane.f32.xlu0 %v3196
        %v3198 = vpop.xlane.xlu0 %3197
        %v3199 = vrcp.pop %v3198
        %v3200 = vmul.f32 %v3195, %v3199
        %3201 = vrot.lane.b32.xlu0 %v2631, 112
        %v3202 = vpop.permute.xlu0 %3201
        %v3205 = vsel %vm1356, %v3200, 0
        %3207 = vmatprep.subr.mxu0 0.0
        %3208 = vmatpush1.msra.mxu0 0.0
        %3209 = vmatprep.subr.mxu0 0.0
        %3210 = vmatpush1.msra.mxu0 0.0
        %3211 = vmatprep.subr.mxu0 0.0
        %3212 = vmatpush1.msra.mxu0 0.0
        %3213 = vmatprep.subr.mxu0 0.0
        %3214 = vmatpush1.msra.mxu0 0.0
        %3215 = vmatprep.subr.mxu0 0.0
        %3216 = vmatpush1.msra.mxu0 0.0
        %3217 = vmatprep.subr.mxu0 0.0
        %3218 = vmatpush1.msra.mxu0 0.0
        %3219 = vmatprep.subr.mxu0 0.0
        %3220 = vmatpush1.msra.mxu0 0.0
        %3221 = vmatprep.subr.mxu0 0.0
        %3222 = vmatpush1.msra.mxu0 0.0
        %3223 = vmatprep.subr.mxu0 0.0
        %3224 = vmatpush1.msra.mxu0 0.0
        %3225 = vmatprep.subr.mxu0 0.0
        %3226 = vmatpush1.msra.mxu0 0.0
        %3227 = vmatprep.subr.mxu0 0.0
        %3228 = vmatpush1.msra.mxu0 0.0
        %3229 = vmatprep.subr.mxu0 0.0
        %3230 = vmatpush1.msra.mxu0 0.0
        %3231 = vmatprep.subr.mxu0 0.0
        %3232 = vmatpush1.msra.mxu0 0.0
        %3233 = vmatprep.subr.mxu0 0.0
        %3234 = vmatpush1.msra.mxu0 0.0
        %3235 = vmatprep.subr.mxu0 0.0
        %3236 = vmatpush1.msra.mxu0 0.0
        %3237 = vmatprep.subr.mxu0 0.0
        %3238 = vmatpush1.msra.mxu0 %v3202
        %3239 = vmatprep.subr.mxu0 0.0
        %3240 = vmatpush2.msra.mxu0 0.0
        %3241 = vmatprep.subr.mxu0 0.0
        %3242 = vmatpush2.msra.mxu0 0.0
        %3243 = vmatprep.subr.mxu0 0.0
        %3244 = vmatpush2.msra.mxu0 0.0
        %3245 = vmatprep.subr.mxu0 0.0
        %3246 = vmatpush2.msra.mxu0 0.0
        %3247 = vmatprep.subr.mxu0 0.0
        %3248 = vmatpush2.msra.mxu0 0.0
        %3249 = vmatprep.subr.mxu0 0.0
        %3250 = vmatpush2.msra.mxu0 0.0
        %3251 = vmatprep.subr.mxu0 0.0
        %3252 = vmatpush2.msra.mxu0 0.0
        %3253 = vmatprep.subr.mxu0 0.0
        %3254 = vmatpush2.msra.mxu0 0.0
        %3255 = vmatprep.subr.mxu0 0.0
        %3256 = vmatpush2.msra.mxu0 0.0
        %3257 = vmatprep.subr.mxu0 0.0
        %3258 = vmatpush2.msra.mxu0 0.0
        %3259 = vmatprep.subr.mxu0 0.0
        %3260 = vmatpush2.msra.mxu0 0.0
        %3261 = vmatprep.subr.mxu0 0.0
        %3262 = vmatpush2.msra.mxu0 0.0
        %3263 = vmatprep.subr.mxu0 0.0
        %3264 = vmatpush2.msra.mxu0 0.0
        %3265 = vmatprep.subr.mxu0 0.0
        %3266 = vmatpush2.msra.mxu0 0.0
        %3267 = vmatprep.subr.mxu0 0.0
        %3268 = vmatpush2.msra.mxu0 0.0
        %3269 = vmatprep.subr.mxu0 0.0
        %3270 = vmatpush2.msra.mxu0 0.0
        %3271 = vmatprep.mubr.f32.mxu0 0.0
        %3272 = vmatmul.mubr.f32.gmra.mxu0 %v3205
        %v3273 = vpop.f32.mrf.mxu0
        %v3274 = vadd.f32 0.0, %v3273
        %v3275 = vpop.f32.mrf.mxu0
        %3276 = vdwg.mxu0
        %3277 = vrot.lane.b32.xlu0 %v2709, 104
        %v3278 = vpop.permute.xlu0 %3277
        %3279 = vrot.lane.b32.xlu0 %v2785, 104
        %v3280 = vpop.permute.xlu0 %3279
        %v3281 = vsel %vm1356, %v3278, 0
        %v3283 = vsel %vm1356, %v3280, 0
        %3285 = vmatprep.subr.mxu0 0.0
        %3286 = vmatpush1.xpose.msra.mxu0 0.0
        %3287 = vmatprep.subr.mxu0 0.0
        %3288 = vmatpush1.xpose.msra.mxu0 0.0
        %3289 = vmatprep.subr.mxu0 0.0
        %3290 = vmatpush1.xpose.msra.mxu0 0.0
        %3291 = vmatprep.subr.mxu0 0.0
        %3292 = vmatpush1.xpose.msra.mxu0 0.0
        %3293 = vmatprep.subr.mxu0 0.0
        %3294 = vmatpush1.xpose.msra.mxu0 0.0
        %3295 = vmatprep.subr.mxu0 0.0
        %3296 = vmatpush1.xpose.msra.mxu0 0.0
        %3297 = vmatprep.subr.mxu0 0.0
        %3298 = vmatpush1.xpose.msra.mxu0 0.0
        %3299 = vmatprep.subr.mxu0 0.0
        %3300 = vmatpush1.xpose.msra.mxu0 0.0
        %3301 = vmatprep.subr.mxu0 0.0
        %3302 = vmatpush1.xpose.msra.mxu0 0.0
        %3303 = vmatprep.subr.mxu0 0.0
        %3304 = vmatpush1.xpose.msra.mxu0 0.0
        %3305 = vmatprep.subr.mxu0 0.0
        %3306 = vmatpush1.xpose.msra.mxu0 0.0
        %3307 = vmatprep.subr.mxu0 0.0
        %3308 = vmatpush1.xpose.msra.mxu0 0.0
        %3309 = vmatprep.subr.mxu0 0.0
        %3310 = vmatpush1.xpose.msra.mxu0 0.0
        %3311 = vmatprep.subr.mxu0 0.0
        %3312 = vmatpush1.xpose.msra.mxu0 0.0
        %3313 = vmatprep.subr.mxu0 0.0
        %3314 = vmatpush1.xpose.msra.mxu0 0.0
        %3315 = vmatprep.subr.mxu0 0.0
        %3316 = vmatpush1.xpose.msra.mxu0 %v3283
        %3317 = vmatprep.subr.mxu0 0.0
        %3318 = vmatpush2.xpose.msra.mxu0 0.0
        %3319 = vmatprep.subr.mxu0 0.0
        %3320 = vmatpush2.xpose.msra.mxu0 0.0
        %3321 = vmatprep.subr.mxu0 0.0
        %3322 = vmatpush2.xpose.msra.mxu0 0.0
        %3323 = vmatprep.subr.mxu0 0.0
        %3324 = vmatpush2.xpose.msra.mxu0 0.0
        %3325 = vmatprep.subr.mxu0 0.0
        %3326 = vmatpush2.xpose.msra.mxu0 0.0
        %3327 = vmatprep.subr.mxu0 0.0
        %3328 = vmatpush2.xpose.msra.mxu0 0.0
        %3329 = vmatprep.subr.mxu0 0.0
        %3330 = vmatpush2.xpose.msra.mxu0 0.0
        %3331 = vmatprep.subr.mxu0 0.0
        %3332 = vmatpush2.xpose.msra.mxu0 0.0
        %3333 = vmatprep.subr.mxu0 0.0
        %3334 = vmatpush2.xpose.msra.mxu0 0.0
        %3335 = vmatprep.subr.mxu0 0.0
        %3336 = vmatpush2.xpose.msra.mxu0 0.0
        %3337 = vmatprep.subr.mxu0 0.0
        %3338 = vmatpush2.xpose.msra.mxu0 0.0
        %3339 = vmatprep.subr.mxu0 0.0
        %3340 = vmatpush2.xpose.msra.mxu0 0.0
        %3341 = vmatprep.subr.mxu0 0.0
        %3342 = vmatpush2.xpose.msra.mxu0 0.0
        %3343 = vmatprep.subr.mxu0 0.0
        %3344 = vmatpush2.xpose.msra.mxu0 0.0
        %3345 = vmatprep.subr.mxu0 0.0
        %3346 = vmatpush2.xpose.msra.mxu0 0.0
        %3347 = vmatprep.subr.mxu0 0.0
        %3348 = vmatpush2.xpose.msra.mxu0 0.0
        %3349 = vmatprep.mubr.f32.mxu0 0.0
        %3350 = vmatmul.mubr.f32.gmra.mxu0 %v3281
        %v3351 = vpop.f32.mrf.mxu0
        %v3352 = vadd.f32 %v1354, %v3351
        %v3353 = vpop.f32.mrf.mxu0
        %3354 = vdwg.mxu0
        %v3355 = vsel %vm1356, %v3352, -inf
        %3356 = vmax.xlane.f32.xlu0 %v3355
        %v3357 = vpop.xlane.xlu0 %3356
        %v3358 = vsub.f32 %v3352, %v3357
        %v3359 = vmul.f32 %v3358, 1.442695
        %v3360 = vpow.pop %v3359
        %v3361 = vsel %vm1356, %v3360, 0.0
        %3362 = vadd.xlane.f32.xlu0 %v3361
        %v3363 = vpop.xlane.xlu0 %3362
        %v3364 = vrcp.pop %v3363
        %v3365 = vmul.f32 %v3360, %v3364
        %3366 = vrot.lane.b32.xlu0 %v2631, 104
        %v3367 = vpop.permute.xlu0 %3366
        %v3370 = vsel %vm1356, %v3365, 0
        %3372 = vmatprep.subr.mxu0 0.0
        %3373 = vmatpush1.msra.mxu0 0.0
        %3374 = vmatprep.subr.mxu0 0.0
        %3375 = vmatpush1.msra.mxu0 0.0
        %3376 = vmatprep.subr.mxu0 0.0
        %3377 = vmatpush1.msra.mxu0 0.0
        %3378 = vmatprep.subr.mxu0 0.0
        %3379 = vmatpush1.msra.mxu0 0.0
        %3380 = vmatprep.subr.mxu0 0.0
        %3381 = vmatpush1.msra.mxu0 0.0
        %3382 = vmatprep.subr.mxu0 0.0
        %3383 = vmatpush1.msra.mxu0 0.0
        %3384 = vmatprep.subr.mxu0 0.0
        %3385 = vmatpush1.msra.mxu0 0.0
        %3386 = vmatprep.subr.mxu0 0.0
        %3387 = vmatpush1.msra.mxu0 0.0
        %3388 = vmatprep.subr.mxu0 0.0
        %3389 = vmatpush1.msra.mxu0 0.0
        %3390 = vmatprep.subr.mxu0 0.0
        %3391 = vmatpush1.msra.mxu0 0.0
        %3392 = vmatprep.subr.mxu0 0.0
        %3393 = vmatpush1.msra.mxu0 0.0
        %3394 = vmatprep.subr.mxu0 0.0
        %3395 = vmatpush1.msra.mxu0 0.0
        %3396 = vmatprep.subr.mxu0 0.0
        %3397 = vmatpush1.msra.mxu0 0.0
        %3398 = vmatprep.subr.mxu0 0.0
        %3399 = vmatpush1.msra.mxu0 0.0
        %3400 = vmatprep.subr.mxu0 0.0
        %3401 = vmatpush1.msra.mxu0 0.0
        %3402 = vmatprep.subr.mxu0 0.0
        %3403 = vmatpush1.msra.mxu0 %v3367
        %3404 = vmatprep.subr.mxu0 0.0
        %3405 = vmatpush2.msra.mxu0 0.0
        %3406 = vmatprep.subr.mxu0 0.0
        %3407 = vmatpush2.msra.mxu0 0.0
        %3408 = vmatprep.subr.mxu0 0.0
        %3409 = vmatpush2.msra.mxu0 0.0
        %3410 = vmatprep.subr.mxu0 0.0
        %3411 = vmatpush2.msra.mxu0 0.0
        %3412 = vmatprep.subr.mxu0 0.0
        %3413 = vmatpush2.msra.mxu0 0.0
        %3414 = vmatprep.subr.mxu0 0.0
        %3415 = vmatpush2.msra.mxu0 0.0
        %3416 = vmatprep.subr.mxu0 0.0
        %3417 = vmatpush2.msra.mxu0 0.0
        %3418 = vmatprep.subr.mxu0 0.0
        %3419 = vmatpush2.msra.mxu0 0.0
        %3420 = vmatprep.subr.mxu0 0.0
        %3421 = vmatpush2.msra.mxu0 0.0
        %3422 = vmatprep.subr.mxu0 0.0
        %3423 = vmatpush2.msra.mxu0 0.0
        %3424 = vmatprep.subr.mxu0 0.0
        %3425 = vmatpush2.msra.mxu0 0.0
        %3426 = vmatprep.subr.mxu0 0.0
        %3427 = vmatpush2.msra.mxu0 0.0
        %3428 = vmatprep.subr.mxu0 0.0
        %3429 = vmatpush2.msra.mxu0 0.0
        %3430 = vmatprep.subr.mxu0 0.0
        %3431 = vmatpush2.msra.mxu0 0.0
        %3432 = vmatprep.subr.mxu0 0.0
        %3433 = vmatpush2.msra.mxu0 0.0
        %3434 = vmatprep.subr.mxu0 0.0
        %3435 = vmatpush2.msra.mxu0 0.0
        %3436 = vmatprep.mubr.f32.mxu0 0.0
        %3437 = vmatmul.mubr.f32.gmra.mxu0 %v3370
        %v3438 = vpop.f32.mrf.mxu0
        %v3439 = vadd.f32 0.0, %v3438
        %v3440 = vpop.f32.mrf.mxu0
        %3441 = vdwg.mxu0
        %3443 = vrot.lane.b32.xlu0 %v3109, 8
        %v3444 = vpop.permute.xlu0 %3443
        %3447 = vrot.lane.b32.xlu0 %v3274, 16
        %v3448 = vpop.permute.xlu0 %3447
        %3451 = vrot.lane.b32.xlu0 %v3439, 24
        %v3452 = vpop.permute.xlu0 %3451
        %v3454 = vsel %vm1356, %v2943, %v3444
        %v3455 = vsel %vm2026, %v3454, %v3448
        %v3456 = vsel %vm2028, %v3455, %v3452
        %s3457 = scalar_lea.vmem %s27, 32
        %v3458 = vld [vmem:[%s3457] sm:$0xff]
        %v3459 = vld [vmem:[%s3457 + $0x8] sm:$0xff]
        %v3460 = vld [vmem:[%s3457 + $0x10] sm:$0xff]
        %v3461 = vld [vmem:[%s3457 + $0x18] sm:$0xff]
        %s3462 = scalar_lea.vmem %s29, 1
        %v3463 = vld [vmem:[%s3462] sm:$0x1]
        %v3465 = vlaneseq
        %v3466 = vshrl.u32 %v3465, 7
        %v3467 = vsub.s32 0, %v3466
        %v3468 = vrot.slane %v3463, %v3467
        %v3471 = vsel %vm922, %v3456, 0
        %3473 = vmatprep.subr.mxu0 0.0
        %3474 = vmatpush1.msra.mxu0 0.0
        %3475 = vmatprep.subr.mxu0 0.0
        %3476 = vmatpush1.msra.mxu0 0.0
        %3477 = vmatprep.subr.mxu0 0.0
        %3478 = vmatpush1.msra.mxu0 0.0
        %3479 = vmatprep.subr.mxu0 0.0
        %3480 = vmatpush1.msra.mxu0 0.0
        %3481 = vmatprep.subr.mxu0 0.0
        %3482 = vmatpush1.msra.mxu0 0.0
        %3483 = vmatprep.subr.mxu0 0.0
        %3484 = vmatpush1.msra.mxu0 0.0
        %3485 = vmatprep.subr.mxu0 0.0
        %3486 = vmatpush1.msra.mxu0 0.0
        %3487 = vmatprep.subr.mxu0 0.0
        %3488 = vmatpush1.msra.mxu0 0.0
        %3489 = vmatprep.subr.mxu0 0.0
        %3490 = vmatpush1.msra.mxu0 0.0
        %3491 = vmatprep.subr.mxu0 0.0
        %3492 = vmatpush1.msra.mxu0 0.0
        %3493 = vmatprep.subr.mxu0 0.0
        %3494 = vmatpush1.msra.mxu0 0.0
        %3495 = vmatprep.subr.mxu0 0.0
        %3496 = vmatpush1.msra.mxu0 0.0
        %3497 = vmatprep.subr.mxu0 0.0
        %3498 = vmatpush1.msra.mxu0 %v3461
        %3499 = vmatprep.subr.mxu0 0.0
        %3500 = vmatpush1.msra.mxu0 %v3460
        %3501 = vmatprep.subr.mxu0 0.0
        %3502 = vmatpush1.msra.mxu0 %v3459
        %3503 = vmatprep.subr.mxu0 0.0
        %3504 = vmatpush1.msra.mxu0 %v3458
        %3505 = vmatprep.subr.mxu0 0.0
        %3506 = vmatpush2.msra.mxu0 0.0
        %3507 = vmatprep.subr.mxu0 0.0
        %3508 = vmatpush2.msra.mxu0 0.0
        %3509 = vmatprep.subr.mxu0 0.0
        %3510 = vmatpush2.msra.mxu0 0.0
        %3511 = vmatprep.subr.mxu0 0.0
        %3512 = vmatpush2.msra.mxu0 0.0
        %3513 = vmatprep.subr.mxu0 0.0
        %3514 = vmatpush2.msra.mxu0 0.0
        %3515 = vmatprep.subr.mxu0 0.0
        %3516 = vmatpush2.msra.mxu0 0.0
        %3517 = vmatprep.subr.mxu0 0.0
        %3518 = vmatpush2.msra.mxu0 0.0
        %3519 = vmatprep.subr.mxu0 0.0
        %3520 = vmatpush2.msra.mxu0 0.0
        %3521 = vmatprep.subr.mxu0 0.0
        %3522 = vmatpush2.msra.mxu0 0.0
        %3523 = vmatprep.subr.mxu0 0.0
        %3524 = vmatpush2.msra.mxu0 0.0
        %3525 = vmatprep.subr.mxu0 0.0
        %3526 = vmatpush2.msra.mxu0 0.0
        %3527 = vmatprep.subr.mxu0 0.0
        %3528 = vmatpush2.msra.mxu0 0.0
        %3529 = vmatprep.subr.mxu0 0.0
        %3530 = vmatpush2.msra.mxu0 0.0
        %3531 = vmatprep.subr.mxu0 0.0
        %3532 = vmatpush2.msra.mxu0 0.0
        %3533 = vmatprep.subr.mxu0 0.0
        %3534 = vmatpush2.msra.mxu0 0.0
        %3535 = vmatprep.subr.mxu0 0.0
        %3536 = vmatpush2.msra.mxu0 0.0
        %3537 = vmatprep.mubr.f32.mxu0 0.0
        %3538 = vmatmul.mubr.f32.gmra.mxu0 %v3471
        %v3539 = vpop.f32.mrf.mxu0
        %v3540 = vadd.f32 %v3468, %v3539
        %v3541 = vpop.f32.mrf.mxu0
        %3542 = vdwg.mxu0
        %v3543 = vadd.f32 %v2349, %v3540
        %s3544 = scalar_lea.vmem %s31, 1
        %v3545 = vld [vmem:[%s3544] sm:$0x1]
        %s3546 = scalar_lea.vmem %s33, 1
        %v3547 = vld [vmem:[%s3546] sm:$0x1]
        %v3548 = vsel %vm922, %v3543, 0.0
        %3549 = vadd.xlane.f32.xlu0 %v3548
        %v3550 = vpop.xlane.xlu0 %3549
        %v3551 = vmul.f32 %v3550, %v926
        %v3552 = vsub.f32 %v3543, %v3551
        %v3553 = vmul.f32 %v3552, %v3552
        %v3554 = vsel %vm922, %v3553, 0.0
        %3555 = vadd.xlane.f32.xlu0 %v3554
        %v3556 = vpop.xlane.xlu0 %3555
        %v3557 = vmul.f32 %v3556, %v926
        %v3558 = vadd.f32 %v3557, 1e-05
        %v3559 = vrsqrt.pop %v3558
        %v3560 = vmul.f32 %v3552, %v3559
        %v3562 = vlaneseq
        %v3563 = vshrl.u32 %v3562, 7
        %v3564 = vsub.s32 0, %v3563
        %v3565 = vrot.slane %v3545, %v3564
        %v3567 = vmul.f32 %v3560, %v3565
        %v3569 = vlaneseq
        %v3570 = vshrl.u32 %v3569, 7
        %v3571 = vsub.s32 0, %v3570
        %v3572 = vrot.slane %v3547, %v3571
        %v3574 = vadd.f32 %v3567, %v3572
        %s3575 = scalar_lea.vmem %s35, 32
        %v3576 = vld [vmem:[%s3575] sm:$0xff]
        %v3577 = vld [vmem:[%s3575 + $0x8] sm:$0xff]
        %v3578 = vld [vmem:[%s3575 + $0x10] sm:$0xff]
        %v3579 = vld [vmem:[%s3575 + $0x18] sm:$0xff]
        %s3580 = scalar_lea.vmem %s37, 1
        %v3581 = vld [vmem:[%s3580] sm:$0x1]
        %v3583 = vlaneseq
        %v3584 = vshrl.u32 %v3583, 7
        %v3585 = vsub.s32 0, %v3584
        %v3586 = vrot.slane %v3581, %v3585
        %v3589 = vsel %vm922, %v3574, 0
        %3591 = vmatprep.subr.mxu0 0.0
        %3592 = vmatpush1.msra.mxu0 0.0
        %3593 = vmatprep.subr.mxu0 0.0
        %3594 = vmatpush1.msra.mxu0 0.0
        %3595 = vmatprep.subr.mxu0 0.0
        %3596 = vmatpush1.msra.mxu0 0.0
        %3597 = vmatprep.subr.mxu0 0.0
        %3598 = vmatpush1.msra.mxu0 0.0
        %3599 = vmatprep.subr.mxu0 0.0
        %3600 = vmatpush1.msra.mxu0 0.0
        %3601 = vmatprep.subr.mxu0 0.0
        %3602 = vmatpush1.msra.mxu0 0.0
        %3603 = vmatprep.subr.mxu0 0.0
        %3604 = vmatpush1.msra.mxu0 0.0
        %3605 = vmatprep.subr.mxu0 0.0
        %3606 = vmatpush1.msra.mxu0 0.0
        %3607 = vmatprep.subr.mxu0 0.0
        %3608 = vmatpush1.msra.mxu0 0.0
        %3609 = vmatprep.subr.mxu0 0.0
        %3610 = vmatpush1.msra.mxu0 0.0
        %3611 = vmatprep.subr.mxu0 0.0
        %3612 = vmatpush1.msra.mxu0 0.0
        %3613 = vmatprep.subr.mxu0 0.0
        %3614 = vmatpush1.msra.mxu0 0.0
        %3615 = vmatprep.subr.mxu0 0.0
        %3616 = vmatpush1.msra.mxu0 %v3579
        %3617 = vmatprep.subr.mxu0 0.0
        %3618 = vmatpush1.msra.mxu0 %v3578
        %3619 = vmatprep.subr.mxu0 0.0
        %3620 = vmatpush1.msra.mxu0 %v3577
        %3621 = vmatprep.subr.mxu0 0.0
        %3622 = vmatpush1.msra.mxu0 %v3576
        %3623 = vmatprep.subr.mxu0 0.0
        %3624 = vmatpush2.msra.mxu0 0.0
        %3625 = vmatprep.subr.mxu0 0.0
        %3626 = vmatpush2.msra.mxu0 0.0
        %3627 = vmatprep.subr.mxu0 0.0
        %3628 = vmatpush2.msra.mxu0 0.0
        %3629 = vmatprep.subr.mxu0 0.0
        %3630 = vmatpush2.msra.mxu0 0.0
        %3631 = vmatprep.subr.mxu0 0.0
        %3632 = vmatpush2.msra.mxu0 0.0
        %3633 = vmatprep.subr.mxu0 0.0
        %3634 = vmatpush2.msra.mxu0 0.0
        %3635 = vmatprep.subr.mxu0 0.0
        %3636 = vmatpush2.msra.mxu0 0.0
        %3637 = vmatprep.subr.mxu0 0.0
        %3638 = vmatpush2.msra.mxu0 0.0
        %3639 = vmatprep.subr.mxu0 0.0
        %3640 = vmatpush2.msra.mxu0 0.0
        %3641 = vmatprep.subr.mxu0 0.0
        %3642 = vmatpush2.msra.mxu0 0.0
        %3643 = vmatprep.subr.mxu0 0.0
        %3644 = vmatpush2.msra.mxu0 0.0
        %3645 = vmatprep.subr.mxu0 0.0
        %3646 = vmatpush2.msra.mxu0 0.0
        %3647 = vmatprep.subr.mxu0 0.0
        %3648 = vmatpush2.msra.mxu0 0.0
        %3649 = vmatprep.subr.mxu0 0.0
        %3650 = vmatpush2.msra.mxu0 0.0
        %3651 = vmatprep.subr.mxu0 0.0
        %3652 = vmatpush2.msra.mxu0 0.0
        %3653 = vmatprep.subr.mxu0 0.0
        %3654 = vmatpush2.msra.mxu0 0.0
        %3655 = vmatprep.mubr.f32.mxu0 0.0
        %3656 = vmatmul.mubr.f32.gmra.mxu0 %v3589
        %v3657 = vpop.f32.mrf.mxu0
        %v3658 = vadd.f32 %v3586, %v3657
        %v3659 = vpop.f32.mrf.mxu0
        %3660 = vdwg.mxu0
        %v3661 = vmul.f32 %v3658, 0.5
        %v3662 = vmul.f32 %v3658, 0.70710677
        %v3663 = vand.u32 2147483647, %v3662
        %v3664 = vmul.f32 %v3663, 0.3275911
        %v3665 = vadd.f32 %v3664, 1.0
        %v3666 = vrcp.pop %v3665
        %v3667 = vmul.f32 1.0, %v3666
        %v3668 = vmul.f32 %v3667, 1.0614054
        %v3669 = vadd.f32 %v3668, -1.4531521
        %v3670 = vmul.f32 %v3669, %v3667
        %v3671 = vadd.f32 %v3670, 1.4214138
        %v3672 = vmul.f32 %v3671, %v3667
        %v3673 = vadd.f32 %v3672, -0.28449672
        %v3674 = vmul.f32 %v3673, %v3667
        %v3675 = vadd.f32 %v3674, 0.2548296
        %v3676 = vmul.f32 %v3675, %v3667
        %v3677 = vsub.f32 0.0, %v3663
        %v3678 = vmul.f32 %v3677, %v3663
        %v3679 = vmul.f32 %v3678, 1.442695
        %v3680 = vpow.pop %v3679
        %v3681 = vmul.f32 %v3676, %v3680
        %v3682 = vsub.f32 1.0, %v3681
        %vm3683 = vcmp.lt.f32.partialorder %v3662, 0.0
        %v3684 = vsub.f32 0.0, %v3682
        %v3685 = vsel %vm3683, %v3684, %v3682
        %v3686 = vadd.f32 %v3685, 1.0
        %v3687 = vmul.f32 %v3661, %v3686
        %s3688 = scalar_lea.vmem %s39, 128
        %v3689 = vld [vmem:[%s3688] sm:$0xff]
        %v3690 = vld [vmem:[%s3688 + $0x8] sm:$0xff]
        %v3691 = vld [vmem:[%s3688 + $0x10] sm:$0xff]
        %v3692 = vld [vmem:[%s3688 + $0x18] sm:$0xff]
        %v3693 = vld [vmem:[%s3688 + $0x20] sm:$0xff]
        %v3694 = vld [vmem:[%s3688 + $0x28] sm:$0xff]
        %v3695 = vld [vmem:[%s3688 + $0x30] sm:$0xff]
        %v3696 = vld [vmem:[%s3688 + $0x38] sm:$0xff]
        %v3697 = vld [vmem:[%s3688 + $0x40] sm:$0xff]
        %v3698 = vld [vmem:[%s3688 + $0x48] sm:$0xff]
        %v3699 = vld [vmem:[%s3688 + $0x50] sm:$0xff]
        %v3700 = vld [vmem:[%s3688 + $0x58] sm:$0xff]
        %v3701 = vld [vmem:[%s3688 + $0x60] sm:$0xff]
        %v3702 = vld [vmem:[%s3688 + $0x68] sm:$0xff]
        %v3703 = vld [vmem:[%s3688 + $0x70] sm:$0xff]
        %v3704 = vld [vmem:[%s3688 + $0x78] sm:$0xff]
        %3705 = vmatprep.subr.mxu0 0.0
        %3706 = vmatpush1.msra.mxu0 %v3704
        %3707 = vmatprep.subr.mxu0 0.0
        %3708 = vmatpush1.msra.mxu0 %v3703
        %3709 = vmatprep.subr.mxu0 0.0
        %3710 = vmatpush1.msra.mxu0 %v3702
        %3711 = vmatprep.subr.mxu0 0.0
        %3712 = vmatpush1.msra.mxu0 %v3701
        %3713 = vmatprep.subr.mxu0 0.0
        %3714 = vmatpush1.msra.mxu0 %v3700
        %3715 = vmatprep.subr.mxu0 0.0
        %3716 = vmatpush1.msra.mxu0 %v3699
        %3717 = vmatprep.subr.mxu0 0.0
        %3718 = vmatpush1.msra.mxu0 %v3698
        %3719 = vmatprep.subr.mxu0 0.0
        %3720 = vmatpush1.msra.mxu0 %v3697
        %3721 = vmatprep.subr.mxu0 0.0
        %3722 = vmatpush1.msra.mxu0 %v3696
        %3723 = vmatprep.subr.mxu0 0.0
        %3724 = vmatpush1.msra.mxu0 %v3695
        %3725 = vmatprep.subr.mxu0 0.0
        %3726 = vmatpush1.msra.mxu0 %v3694
        %3727 = vmatprep.subr.mxu0 0.0
        %3728 = vmatpush1.msra.mxu0 %v3693
        %3729 = vmatprep.subr.mxu0 0.0
        %3730 = vmatpush1.msra.mxu0 %v3692
        %3731 = vmatprep.subr.mxu0 0.0
        %3732 = vmatpush1.msra.mxu0 %v3691
        %3733 = vmatprep.subr.mxu0 0.0
        %3734 = vmatpush1.msra.mxu0 %v3690
        %3735 = vmatprep.subr.mxu0 0.0
        %3736 = vmatpush1.msra.mxu0 %v3689
        %3737 = vmatprep.subr.mxu0 0.0
        %3738 = vmatpush2.msra.mxu0 0.0
        %3739 = vmatprep.subr.mxu0 0.0
        %3740 = vmatpush2.msra.mxu0 0.0
        %3741 = vmatprep.subr.mxu0 0.0
        %3742 = vmatpush2.msra.mxu0 0.0
        %3743 = vmatprep.subr.mxu0 0.0
        %3744 = vmatpush2.msra.mxu0 0.0
        %3745 = vmatprep.subr.mxu0 0.0
        %3746 = vmatpush2.msra.mxu0 0.0
        %3747 = vmatprep.subr.mxu0 0.0
        %3748 = vmatpush2.msra.mxu0 0.0
        %3749 = vmatprep.subr.mxu0 0.0
        %3750 = vmatpush2.msra.mxu0 0.0
        %3751 = vmatprep.subr.mxu0 0.0
        %3752 = vmatpush2.msra.mxu0 0.0
        %3753 = vmatprep.subr.mxu0 0.0
        %3754 = vmatpush2.msra.mxu0 0.0
        %3755 = vmatprep.subr.mxu0 0.0
        %3756 = vmatpush2.msra.mxu0 0.0
        %3757 = vmatprep.subr.mxu0 0.0
        %3758 = vmatpush2.msra.mxu0 0.0
        %3759 = vmatprep.subr.mxu0 0.0
        %3760 = vmatpush2.msra.mxu0 0.0
        %3761 = vmatprep.subr.mxu0 0.0
        %3762 = vmatpush2.msra.mxu0 0.0
        %3763 = vmatprep.subr.mxu0 0.0
        %3764 = vmatpush2.msra.mxu0 0.0
        %3765 = vmatprep.subr.mxu0 0.0
        %3766 = vmatpush2.msra.mxu0 0.0
        %3767 = vmatprep.subr.mxu0 0.0
        %3768 = vmatpush2.msra.mxu0 0.0
        %3769 = vmatprep.mubr.f32.mxu0 0.0
        %3770 = vmatmul.mubr.f32.gmra.mxu0 %v3687
        %v3771 = vpop.f32.mrf.mxu0
        %v3772 = vadd.f32 0.0, %v3771
        %v3773 = vpop.f32.mrf.mxu0
        %3774 = vdwg.mxu0
        %v3775 = vadd.f32 %v3543, %v3772
        %s3776 = scalar_lea.vmem %s41, 1
        %v3777 = vld [vmem:[%s3776] sm:$0x1]
        %v3779 = vlaneseq
        %v3780 = vshrl.u32 %v3779, 7
        %v3781 = vsub.s32 0, %v3780
        %v3782 = vrot.slane %v3777, %v3781
        %v3784 = vadd.f32 %v3775, %v3782
        %v3785 = vld [vmem:[%s43] sm:$0x1]
        %v3786 = vld [vmem:[%s45] sm:$0x1]
        %v3787 = vsel %vm922, %v3784, 0.0
        %3788 = vadd.xlane.f32.xlu0 %v3787
        %v3789 = vpop.xlane.xlu0 %3788
        %v3790 = vmul.f32 %v3789, %v926
        %v3791 = vsub.f32 %v3784, %v3790
        %v3792 = vmul.f32 %v3791, %v3791
        %v3793 = vsel %vm922, %v3792, 0.0
        %3794 = vadd.xlane.f32.xlu0 %v3793
        %v3795 = vpop.xlane.xlu0 %3794
        %v3796 = vmul.f32 %v3795, %v926
        %v3797 = vadd.f32 %v3796, 1e-05
        %v3798 = vrsqrt.pop %v3797
        %v3799 = vmul.f32 %v3791, %v3798
        %v3801 = vlaneseq
        %v3802 = vshrl.u32 %v3801, 7
        %v3803 = vsub.s32 0, %v3802
        %v3804 = vrot.slane %v3785, %v3803
        %v3806 = vmul.f32 %v3799, %v3804
        %v3808 = vlaneseq
        %v3809 = vshrl.u32 %v3808, 7
        %v3810 = vsub.s32 0, %v3809
        %v3811 = vrot.slane %v3786, %v3810
        %v3813 = vadd.f32 %v3806, %v3811
        %v3814 = vld [vmem:[%s47] sm:$0xff]
        %v3815 = vld [vmem:[%s47 + $0x8] sm:$0xff]
        %v3816 = vld [vmem:[%s47 + $0x10] sm:$0xff]
        %v3817 = vld [vmem:[%s47 + $0x18] sm:$0xff]
        %v3818 = vld [vmem:[%s49] sm:$0x1]
        %v3820 = vlaneseq
        %v3821 = vshrl.u32 %v3820, 7
        %v3822 = vsub.s32 0, %v3821
        %v3823 = vrot.slane %v3818, %v3822
        %v3826 = vsel %vm922, %v3813, 0
        %3828 = vmatprep.subr.mxu0 0.0
        %3829 = vmatpush1.msra.mxu0 0.0
        %3830 = vmatprep.subr.mxu0 0.0
        %3831 = vmatpush1.msra.mxu0 0.0
        %3832 = vmatprep.subr.mxu0 0.0
        %3833 = vmatpush1.msra.mxu0 0.0
        %3834 = vmatprep.subr.mxu0 0.0
        %3835 = vmatpush1.msra.mxu0 0.0
        %3836 = vmatprep.subr.mxu0 0.0
        %3837 = vmatpush1.msra.mxu0 0.0
        %3838 = vmatprep.subr.mxu0 0.0
        %3839 = vmatpush1.msra.mxu0 0.0
        %3840 = vmatprep.subr.mxu0 0.0
        %3841 = vmatpush1.msra.mxu0 0.0
        %3842 = vmatprep.subr.mxu0 0.0
        %3843 = vmatpush1.msra.mxu0 0.0
        %3844 = vmatprep.subr.mxu0 0.0
        %3845 = vmatpush1.msra.mxu0 0.0
        %3846 = vmatprep.subr.mxu0 0.0
        %3847 = vmatpush1.msra.mxu0 0.0
        %3848 = vmatprep.subr.mxu0 0.0
        %3849 = vmatpush1.msra.mxu0 0.0
        %3850 = vmatprep.subr.mxu0 0.0
        %3851 = vmatpush1.msra.mxu0 0.0
        %3852 = vmatprep.subr.mxu0 0.0
        %3853 = vmatpush1.msra.mxu0 %v3817
        %3854 = vmatprep.subr.mxu0 0.0
        %3855 = vmatpush1.msra.mxu0 %v3816
        %3856 = vmatprep.subr.mxu0 0.0
        %3857 = vmatpush1.msra.mxu0 %v3815
        %3858 = vmatprep.subr.mxu0 0.0
        %3859 = vmatpush1.msra.mxu0 %v3814
        %3860 = vmatprep.subr.mxu0 0.0
        %3861 = vmatpush2.msra.mxu0 0.0
        %3862 = vmatprep.subr.mxu0 0.0
        %3863 = vmatpush2.msra.mxu0 0.0
        %3864 = vmatprep.subr.mxu0 0.0
        %3865 = vmatpush2.msra.mxu0 0.0
        %3866 = vmatprep.subr.mxu0 0.0
        %3867 = vmatpush2.msra.mxu0 0.0
        %3868 = vmatprep.subr.mxu0 0.0
        %3869 = vmatpush2.msra.mxu0 0.0
        %3870 = vmatprep.subr.mxu0 0.0
        %3871 = vmatpush2.msra.mxu0 0.0
        %3872 = vmatprep.subr.mxu0 0.0
        %3873 = vmatpush2.msra.mxu0 0.0
        %3874 = vmatprep.subr.mxu0 0.0
        %3875 = vmatpush2.msra.mxu0 0.0
        %3876 = vmatprep.subr.mxu0 0.0
        %3877 = vmatpush2.msra.mxu0 0.0
        %3878 = vmatprep.subr.mxu0 0.0
        %3879 = vmatpush2.msra.mxu0 0.0
        %3880 = vmatprep.subr.mxu0 0.0
        %3881 = vmatpush2.msra.mxu0 0.0
        %3882 = vmatprep.subr.mxu0 0.0
        %3883 = vmatpush2.msra.mxu0 0.0
        %3884 = vmatprep.subr.mxu0 0.0
        %3885 = vmatpush2.msra.mxu0 0.0
        %3886 = vmatprep.subr.mxu0 0.0
        %3887 = vmatpush2.msra.mxu0 0.0
        %3888 = vmatprep.subr.mxu0 0.0
        %3889 = vmatpush2.msra.mxu0 0.0
        %3890 = vmatprep.subr.mxu0 0.0
        %3891 = vmatpush2.msra.mxu0 0.0
        %3892 = vmatprep.mubr.f32.mxu0 0.0
        %3893 = vmatmul.mubr.f32.gmra.mxu0 %v3826
        %v3894 = vpop.f32.mrf.mxu0
        %v3895 = vadd.f32 %v3823, %v3894
        %v3896 = vpop.f32.mrf.mxu0
        %3897 = vdwg.mxu0
        %v3898 = vmul.f32 %v3895, 0.5
        %v3899 = vmul.f32 %v3895, 0.70710677
        %v3900 = vand.u32 2147483647, %v3899
        %v3901 = vmul.f32 %v3900, 0.3275911
        %v3902 = vadd.f32 %v3901, 1.0
        %v3903 = vrcp.pop %v3902
        %v3904 = vmul.f32 1.0, %v3903
        %v3905 = vmul.f32 %v3904, 1.0614054
        %v3906 = vadd.f32 %v3905, -1.4531521
        %v3907 = vmul.f32 %v3906, %v3904
        %v3908 = vadd.f32 %v3907, 1.4214138
        %v3909 = vmul.f32 %v3908, %v3904
        %v3910 = vadd.f32 %v3909, -0.28449672
        %v3911 = vmul.f32 %v3910, %v3904
        %v3912 = vadd.f32 %v3911, 0.2548296
        %v3913 = vmul.f32 %v3912, %v3904
        %v3914 = vsub.f32 0.0, %v3900
        %v3915 = vmul.f32 %v3914, %v3900
        %v3916 = vmul.f32 %v3915, 1.442695
        %v3917 = vpow.pop %v3916
        %v3918 = vmul.f32 %v3913, %v3917
        %v3919 = vsub.f32 1.0, %v3918
        %vm3920 = vcmp.lt.f32.partialorder %v3899, 0.0
        %v3921 = vsub.f32 0.0, %v3919
        %v3922 = vsel %vm3920, %v3921, %v3919
        %v3923 = vadd.f32 %v3922, 1.0
        %v3924 = vmul.f32 %v3898, %v3923
        %v3925 = vld [vmem:[%s51] sm:$0x1]
        %v3926 = vld [vmem:[%s53] sm:$0x1]
        %v3927 = vsel %vm922, %v3924, 0.0
        %3928 = vadd.xlane.f32.xlu0 %v3927
        %v3929 = vpop.xlane.xlu0 %3928
        %v3930 = vmul.f32 %v3929, %v926
        %v3931 = vsub.f32 %v3924, %v3930
        %v3932 = vmul.f32 %v3931, %v3931
        %v3933 = vsel %vm922, %v3932, 0.0
        %3934 = vadd.xlane.f32.xlu0 %v3933
        %v3935 = vpop.xlane.xlu0 %3934
        %v3936 = vmul.f32 %v3935, %v926
        %v3937 = vadd.f32 %v3936, 1e-05
        %v3938 = vrsqrt.pop %v3937
        %v3939 = vmul.f32 %v3931, %v3938
        %v3941 = vlaneseq
        %v3942 = vshrl.u32 %v3941, 7
        %v3943 = vsub.s32 0, %v3942
        %v3944 = vrot.slane %v3925, %v3943
        %v3946 = vmul.f32 %v3939, %v3944
        %v3948 = vlaneseq
        %v3949 = vshrl.u32 %v3948, 7
        %v3950 = vsub.s32 0, %v3949
        %v3951 = vrot.slane %v3926, %v3950
        %v3953 = vadd.f32 %v3946, %v3951
        %v3954 = vld [vmem:[%s55] sm:$0xff]
        %v3955 = vld [vmem:[%s55 + $0x8] sm:$0xff]
        %v3956 = vld [vmem:[%s55 + $0x10] sm:$0xff]
        %v3957 = vld [vmem:[%s55 + $0x18] sm:$0xff]
        %v3958 = vld [vmem:[%s57] sm:$0x1]
        %v3960 = vlaneseq
        %v3961 = vshrl.u32 %v3960, 7
        %v3962 = vsub.s32 0, %v3961
        %v3963 = vrot.slane %v3958, %v3962
        %v3966 = vsel %vm922, %v3953, 0
        %3968 = vmatprep.subr.mxu0 0.0
        %3969 = vmatpush1.msra.mxu0 0.0
        %3970 = vmatprep.subr.mxu0 0.0
        %3971 = vmatpush1.msra.mxu0 0.0
        %3972 = vmatprep.subr.mxu0 0.0
        %3973 = vmatpush1.msra.mxu0 0.0
        %3974 = vmatprep.subr.mxu0 0.0
        %3975 = vmatpush1.msra.mxu0 0.0
        %3976 = vmatprep.subr.mxu0 0.0
        %3977 = vmatpush1.msra.mxu0 0.0
        %3978 = vmatprep.subr.mxu0 0.0
        %3979 = vmatpush1.msra.mxu0 0.0
        %3980 = vmatprep.subr.mxu0 0.0
        %3981 = vmatpush1.msra.mxu0 0.0
        %3982 = vmatprep.subr.mxu0 0.0
        %3983 = vmatpush1.msra.mxu0 0.0
        %3984 = vmatprep.subr.mxu0 0.0
        %3985 = vmatpush1.msra.mxu0 0.0
        %3986 = vmatprep.subr.mxu0 0.0
        %3987 = vmatpush1.msra.mxu0 0.0
        %3988 = vmatprep.subr.mxu0 0.0
        %3989 = vmatpush1.msra.mxu0 0.0
        %3990 = vmatprep.subr.mxu0 0.0
        %3991 = vmatpush1.msra.mxu0 0.0
        %3992 = vmatprep.subr.mxu0 0.0
        %3993 = vmatpush1.msra.mxu0 %v3957
        %3994 = vmatprep.subr.mxu0 0.0
        %3995 = vmatpush1.msra.mxu0 %v3956
        %3996 = vmatprep.subr.mxu0 0.0
        %3997 = vmatpush1.msra.mxu0 %v3955
        %3998 = vmatprep.subr.mxu0 0.0
        %3999 = vmatpush1.msra.mxu0 %v3954
        %4000 = vmatprep.subr.mxu0 0.0
        %4001 = vmatpush2.msra.mxu0 0.0
        %4002 = vmatprep.subr.mxu0 0.0
        %4003 = vmatpush2.msra.mxu0 0.0
        %4004 = vmatprep.subr.mxu0 0.0
        %4005 = vmatpush2.msra.mxu0 0.0
        %4006 = vmatprep.subr.mxu0 0.0
        %4007 = vmatpush2.msra.mxu0 0.0
        %4008 = vmatprep.subr.mxu0 0.0
        %4009 = vmatpush2.msra.mxu0 0.0
        %4010 = vmatprep.subr.mxu0 0.0
        %4011 = vmatpush2.msra.mxu0 0.0
        %4012 = vmatprep.subr.mxu0 0.0
        %4013 = vmatpush2.msra.mxu0 0.0
        %4014 = vmatprep.subr.mxu0 0.0
        %4015 = vmatpush2.msra.mxu0 0.0
        %4016 = vmatprep.subr.mxu0 0.0
        %4017 = vmatpush2.msra.mxu0 0.0
        %4018 = vmatprep.subr.mxu0 0.0
        %4019 = vmatpush2.msra.mxu0 0.0
        %4020 = vmatprep.subr.mxu0 0.0
        %4021 = vmatpush2.msra.mxu0 0.0
        %4022 = vmatprep.subr.mxu0 0.0
        %4023 = vmatpush2.msra.mxu0 0.0
        %4024 = vmatprep.subr.mxu0 0.0
        %4025 = vmatpush2.msra.mxu0 0.0
        %4026 = vmatprep.subr.mxu0 0.0
        %4027 = vmatpush2.msra.mxu0 0.0
        %4028 = vmatprep.subr.mxu0 0.0
        %4029 = vmatpush2.msra.mxu0 0.0
        %4030 = vmatprep.subr.mxu0 0.0
        %4031 = vmatpush2.msra.mxu0 0.0
        %4032 = vmatprep.mubr.f32.mxu0 0.0
        %4033 = vmatmul.mubr.f32.gmra.mxu0 %v3966
        %v4034 = vpop.f32.mrf.mxu0
        %v4035 = vadd.f32 %v3963, %v4034
        %v4036 = vpop.f32.mrf.mxu0
        %4037 = vdwg.mxu0
        %4038 = vst [vmem:[%s904] sm:$0xff] %v4035
        %s4039 = sand.u32 %s700, 1
        %s4040 = scalar_lea.sflag [#allocation3], %s4039
        %s4041 = sand.u32 %s700, 1
        %s4042 = smul.addr %s4041, 8
        %s4043 = scalar_lea.vmem [#allocation2], %s4042
        // Predicated region
        $region137: #{esm2_forward.1} parent=135 // pred_check
          %p4044 = pneg %p710
        $region138: #{esm2_forward.1} parent=135 // pred_check_branch
          %4046 = sbr.rel (%p4044) target = $region140
        $region139: #{esm2_forward.1} parent=135 // pred_region
          %s4048 = ssub.s32 128, 128
          %4049 = vsyncadd %s4040, %s4048
          %s4050 = smul.addr %s73, 128
          %s4051 = scalar_lea.hbm %s59, %s4050
          %s4053 = sshll.u32 %s4043, 4
          %s4054 = int_to_ptr.vmem [resolvable:$true] %s4053
          %4056 = dma.vmem_to_hbm [thread:$0]  %s4054, 128, %s4051, %s4040
        $region140: #{esm2_forward.1} parent=135 // pred_fallthru
          _
      $region136: #{esm2_forward.1} parent=5 // pred_fallthru
        _
      %p4057 = scmp.le.s32.totalorder 2, %s68
      // Predicated region
      $region141: #{esm2_forward.1} parent=5 // pred_check
        %p4058 = pneg %p4057
      $region142: #{esm2_forward.1} parent=5 // pred_check_branch
        %4060 = sbr.rel (%p4058) target = $region144
      $region143: #{esm2_forward.1} parent=5 // pred_region
        %s4061 = ssub.s32 %s68, 2
        // Predicated region
        $region145: #{esm2_forward.1} parent=143 // pred_check
          %p4062 = pneg %p716
        $region146: #{esm2_forward.1} parent=143 // pred_check_branch
          %4064 = sbr.rel (%p4062) target = $region148
        $region147: #{esm2_forward.1} parent=143 // pred_region
          %s4065 = sand.u32 %s701, 1
          %s4066 = scalar_lea.sflag [#allocation3], %s4065
          %s4067 = sand.u32 %s701, 1
          %s4068 = smul.addr %s4067, 8
          %s4069 = scalar_lea.vmem [#allocation2], %s4068
          %4070 = dma.done %s4066, 128
        $region148: #{esm2_forward.1} parent=143 // pred_fallthru
          _
      $region144: #{esm2_forward.1} parent=5 // pred_fallthru
        _
    $region6: #{esm2_forward.1} parent=1 // loop_footer
      %s72 = sadd.s32 1, %s68
    $region7: #{esm2_forward.1} parent=1 // loop_footer_branch
      %67 = sbr.rel target = $region3
    $region8: #{esm2_forward.1} parent=1 // loop_exit
      _
    %4071 = vsyncpa [#allocation3], 1
    %s4072 = scalar_lea.sflag [#allocation3], 1
    %4073 = vsyncpa %s4072, 1

</llo_original>
